<compile_context>
chip_gen: v7x
topology: tpu7x:2x2x1
jax: 0.10.0
libtpu: 0.0.40
codegen_flags: <defaults>
</compile_context>

<pallas_src>
import functools

import numpy as np
import jax
import jax.numpy as jnp
from jax.experimental import pallas as pl
from jax.experimental.pallas import tpu as pltpu


# Tap order (dy, dx), row-major over the 3x3 kernel: t = 3*ky + kx.
_TAPS = tuple((ky - 1, kx - 1) for ky in range(3) for kx in range(3))


def _conv3x3_taps(slab, w_ref, masks, img_w):
    """3x3 'same' conv as 9 per-tap MXU matmuls accumulated in f32.

    slab : (C_p, Lb)          activations, channel-major, batch*H*W on lanes
    w_ref: (9, Cout_p, C_p)   tap-major weights
    masks: (9, Lb)            1.0 where the tap's source pixel is inside its
                              image, 0.0 otherwise (also kills the circular
                              roll wrap and cross-image pickup)
    """
    lb = slab.shape[1]
    acc = None
    for t, (dy, dx) in enumerate(_TAPS):
        s = dy * img_w + dx                          # flat-pixel shift of this tap
        if s == 0:
            v = slab                                 # center tap: mask is all ones
        else:
            # want v[c, p] = slab[c, p + s] (0 outside the image); the roll is
            # circular and the mask zeroes exactly the wrapped / invalid lanes.
            v = pltpu.roll(slab, (-s) % lb, axis=1) * masks[t:t + 1, :]
        part = jnp.dot(w_ref[t], v, preferred_element_type=jnp.float32)
        acc = part if acc is None else acc + part
    return acc


def _intermediate_kernel(x_ref, w1_ref, b1_ref, w2_ref, b2_ref, m_ref, o_ref, *, img_w):
    """One grid step = N_blk packed images.

    x_ref : (Cin_p, Lb)   w1_ref: (9, Cout_p, Cin_p)   b1_ref: (Cout_p, 1) f32
    w2_ref: (9, Cout_p, Cout_p)                        b2_ref: (Cout_p, 1) f32
    m_ref : (9, Lb)       o_ref : (Cout_p, Lb) f32
    """
    masks = m_ref[...]
    x = x_ref[...]

    a1 = _conv3x3_taps(x, w1_ref, masks, img_w) + b1_ref[...]     # f32
    h = a1 * jax.nn.sigmoid(a1)                                   # Swish (EUP, f32)
    # TODO(synk): Dropout(p=0.2) is identity here (eval mode); training-mode RNG
    # masking (pltpu.prng_*) not implemented.
    h = h.astype(x.dtype)

    a2 = _conv3x3_taps(h, w2_ref, masks, img_w) + b2_ref[...]     # f32
    o_ref[...] = (a2 * jax.nn.sigmoid(a2)).astype(o_ref.dtype)    # lane-dense store


def _tap_masks(h, w, n_pack):
    """(9, n_pack*h*w) f32 validity masks, tiled once per packed image."""
    hh, ww = np.meshgrid(np.arange(h), np.arange(w), indexing="ij")
    rows = []
    for dy, dx in _TAPS:
        valid = ((hh + dy >= 0) & (hh + dy < h) &
                 (ww + dx >= 0) & (ww + dx < w))
        rows.append(valid.reshape(-1))
    m = np.stack(rows).astype(np.float32)            # (9, h*w)
    return np.tile(m, (1, n_pack))                   # (9, n_pack*h*w)


def _round_up(x, m):
    return (x + m - 1) // m * m


def _pick_batch_block(n):
    """Largest divisor of n that still leaves >= 2 grid steps (v7x: 2 TCs)."""
    if n <= 1:
        return max(n, 1)
    best = 1
    for cand in range(1, n // 2 + 1):
        if n % cand == 0:
            best = cand
    return best


@functools.partial(jax.jit, static_argnames=("compute_dtype",))
def intermediate_forward(x_nchw, w1_hwio, b1, w2_hwio, b2,
                         compute_dtype=jnp.bfloat16):
    """x: (N, Cin, H, W) f32; conv weights in HWIO (3,3,I,O). Returns (N, Cout, H, W) f32.

    compute_dtype controls the MXU operand precision (bf16 recommended on
    v5e/v6e/v7x — the MXU is bf16-native on all three; accumulation, bias and
    Swish stay f32). Use jnp.float32 when bit-tight accuracy is required.
    """
    n, cin, img_h, img_w = x_nchw.shape
    cout = w1_hwio.shape[-1]
    l = img_h * img_w

    # Sublane-tile channel padding (8 rows for f32, 16 for bf16 packed tiles).
    sub = 8 if jnp.dtype(compute_dtype).itemsize == 4 else 16
    cin_p = _round_up(cin, sub)
    cout_p = _round_up(cout, sub)

    # Pack n_blk images onto the lane axis per grid step.
    n_blk = _pick_batch_block(n)
    grid_n = n // n_blk
    lb = n_blk * l

    # (N, Cin, H, W) -> (Cin_p, N*L): channel-major, images concatenated on lanes.
    x_cl = jnp.transpose(x_nchw.reshape(n, cin, l), (1, 0, 2)).reshape(cin, n * l)
    x_cl = jnp.pad(x_cl, ((0, cin_p - cin), (0, 0))).astype(compute_dtype)

    # (3,3,I,O) -> (9, Cout_p, C_p), tap-major; zero rows/cols for the channel pad.
    w1_k = jnp.transpose(w1_hwio, (0, 1, 3, 2)).reshape(9, cout, cin)
    w1_k = jnp.pad(w1_k, ((0, 0), (0, cout_p - cout), (0, cin_p - cin))).astype(compute_dtype)
    w2_k = jnp.transpose(w2_hwio, (0, 1, 3, 2)).reshape(9, cout, cout)
    w2_k = jnp.pad(w2_k, ((0, 0), (0, cout_p - cout), (0, cout_p - cout))).astype(compute_dtype)
    b1_k = jnp.pad(b1, (0, cout_p - cout)).reshape(cout_p, 1).astype(jnp.float32)
    b2_k = jnp.pad(b2, (0, cout_p - cout)).reshape(cout_p, 1).astype(jnp.float32)

    masks = jnp.asarray(_tap_masks(img_h, img_w, n_blk), dtype=compute_dtype)   # (9, Lb)

    bpe = jnp.dtype(compute_dtype).itemsize
    cost = pl.CostEstimate(
        flops=2 * n * l * 9 * (cout * cin + cout * cout),
        transcendentals=2 * n * l * cout,                       # two sigmoids per output elem
        bytes_accessed=int((x_cl.size + w1_k.size + w2_k.size + masks.size) * bpe
                           + (b1_k.size + b2_k.size) * 4 + cout_p * n * l * 4),
    )

    kernel = functools.partial(_intermediate_kernel, img_w=img_w)
    # TODO(synk): for production-sized H*W add a spatial grid axis (row strips with a
    # 1-row halo); on v7x budget the strip so activation blocks stay well under the
    # ~32 MiB default scoped VMEM (64 MiB physical) — half the strip affordable on v5e/v6e.
    out_cl = pl.pallas_call(
        kernel,
        out_shape=jax.ShapeDtypeStruct((cout_p, n * l), jnp.float32),
        grid_spec=pltpu.PrefetchScalarGridSpec(
            num_scalar_prefetch=0,
            grid=(grid_n,),
            in_specs=[
                pl.BlockSpec((cin_p, lb), lambda g: (0, g)),
                pl.BlockSpec((9, cout_p, cin_p), lambda g: (0, 0, 0)),
                pl.BlockSpec((cout_p, 1), lambda g: (0, 0)),
                pl.BlockSpec((9, cout_p, cout_p), lambda g: (0, 0, 0)),
                pl.BlockSpec((cout_p, 1), lambda g: (0, 0)),
                pl.BlockSpec((9, lb), lambda g: (0, 0)),
            ],
            out_specs=pl.BlockSpec((cout_p, lb), lambda g: (0, g)),
        ),
        compiler_params=pltpu.CompilerParams(
            dimension_semantics=("parallel",),
        ),
        cost_estimate=cost,
    )(x_cl, w1_k, b1_k, w2_k, b2_k, masks)

    out = out_cl[:cout].reshape(cout, n, l)
    return jnp.transpose(out, (1, 0, 2)).reshape(n, cout, img_h, img_w)


def _reference_forward(x_nchw, w1, b1, w2, b2):
    """Pure-JAX reference (lax conv) matching PyTorch semantics, eval mode."""
    def conv(x, w_hwio, b):
        y = jax.lax.conv_general_dilated(
            x, w_hwio, window_strides=(1, 1), padding=((1, 1), (1, 1)),
            dimension_numbers=("NCHW", "HWIO", "NCHW"))
        return y + b.reshape(1, -1, 1, 1)

    h = conv(x_nchw, w1, b1)
    h = h * jax.nn.sigmoid(h)
    h = conv(h, w2, b2)
    return h * jax.nn.sigmoid(h)


if __name__ == "__main__":
    key = jax.random.PRNGKey(0)
    N, Cin, Cout, H, W = 4, 4, 8, 16, 16   # batch=4 -> 2 images packed per grid step, 2 grid steps

    k_x, k_w1, k_b1, k_w2, k_b2 = jax.random.split(key, 5)
    x = jax.random.normal(k_x, (N, Cin, H, W), jnp.float32)

    # Deterministic parameter init (kaiming-uniform-ish scale, not a checkpoint).
    fan1 = Cin * 3 * 3
    fan2 = Cout * 3 * 3
    w1 = jax.random.uniform(k_w1, (3, 3, Cin, Cout), jnp.float32,
                            -1.0 / jnp.sqrt(fan1), 1.0 / jnp.sqrt(fan1))
    b1 = jax.random.uniform(k_b1, (Cout,), jnp.float32,
                            -1.0 / jnp.sqrt(fan1), 1.0 / jnp.sqrt(fan1))
    w2 = jax.random.uniform(k_w2, (3, 3, Cout, Cout), jnp.float32,
                            -1.0 / jnp.sqrt(fan2), 1.0 / jnp.sqrt(fan2))
    b2 = jax.random.uniform(k_b2, (Cout,), jnp.float32,
                            -1.0 / jnp.sqrt(fan2), 1.0 / jnp.sqrt(fan2))

    ref = _reference_forward(x, w1, b1, w2, b2)

    # Strict check: f32 MXU operands.
    out_f32 = jax.block_until_ready(
        intermediate_forward(x, w1, b1, w2, b2, compute_dtype=jnp.float32))
    if not jnp.allclose(out_f32, ref, atol=1e-4, rtol=1e-4):
        raise AssertionError("f32 Pallas kernel output mismatch vs reference")

    # Default (bf16 MXU operands, f32 accumulation): loose tolerance sanity check.
    out_bf16 = jax.block_until_ready(intermediate_forward(x, w1, b1, w2, b2))
    if not jnp.allclose(out_bf16, ref, atol=5e-2, rtol=5e-2):
        raise AssertionError("bf16 Pallas kernel output mismatch vs reference")

    print("KERNEL_OK")
</pallas_src>

<mosaic_0001>
module attributes {stable_mosaic.version = 11 : i64} {
  func.func @_intermediate_kernel(%arg0: i32, %arg1: memref<8x512xf32, #tpu.memory_space<vmem>>, %arg2: memref<9x8x8xf32, #tpu.memory_space<vmem>>, %arg3: memref<8x1xf32, #tpu.memory_space<vmem>>, %arg4: memref<9x8x8xf32, #tpu.memory_space<vmem>>, %arg5: memref<8x1xf32, #tpu.memory_space<vmem>>, %arg6: memref<9x512xf32, #tpu.memory_space<vmem>>, %arg7: memref<8x512xf32, #tpu.memory_space<vmem>>) attributes {dimension_semantics = [#tpu.dimension_semantics<parallel>], iteration_bounds = array<i64: 2>, scalar_prefetch = 0 : i64, scratch_operands = 0 : i64, tpu.core_type = #tpu.core_type<tc>, window_params = [{transform_indices = @transform_0, window_bounds = array<i64: 8, 512>}, {pipeline_mode = #tpu.pipeline_mode<synchronous>, transform_indices = @transform_1, window_bounds = array<i64: 9, 8, 8>}, {pipeline_mode = #tpu.pipeline_mode<synchronous>, transform_indices = @transform_2, window_bounds = array<i64: 8, 1>}, {pipeline_mode = #tpu.pipeline_mode<synchronous>, transform_indices = @transform_3, window_bounds = array<i64: 9, 8, 8>}, {pipeline_mode = #tpu.pipeline_mode<synchronous>, transform_indices = @transform_4, window_bounds = array<i64: 8, 1>}, {pipeline_mode = #tpu.pipeline_mode<synchronous>, transform_indices = @transform_5, window_bounds = array<i64: 9, 512>}, {transform_indices = @transform_6, window_bounds = array<i64: 8, 512>}]} {
    %c0 = arith.constant 0 : index
    %c0_0 = arith.constant 0 : index
    %0 = vector.load %arg6[%c0, %c0_0] : memref<9x512xf32, #tpu.memory_space<vmem>>, vector<9x512xf32>
    %c0_1 = arith.constant 0 : index
    %c0_2 = arith.constant 0 : index
    %1 = vector.load %arg1[%c0_1, %c0_2] : memref<8x512xf32, #tpu.memory_space<vmem>>, vector<8x512xf32>
    %c17_i32 = arith.constant 17 : i32
    %2 = tpu.dynamic_rotate %1 by %c17_i32 dim 1 : vector<8x512xf32>, i32 -> vector<8x512xf32>
    %3 = vector.extract_strided_slice %0 {offsets = [0, 0], sizes = [1, 512], strides = [1, 1]} : vector<9x512xf32> to vector<1x512xf32>
    %4 = vector.broadcast %3 : vector<1x512xf32> to vector<8x512xf32>
    %5 = arith.mulf %2, %4 : vector<8x512xf32>
    %c0_3 = arith.constant 0 : index
    %c0_4 = arith.constant 0 : index
    %c0_5 = arith.constant 0 : index
    %6 = vector.load %arg2[%c0_3, %c0_4, %c0_5] : memref<9x8x8xf32, #tpu.memory_space<vmem>>, vector<1x8x8xf32>
    %7 = vector.shape_cast %6 : vector<1x8x8xf32> to vector<8x8xf32>
    %cst = arith.constant dense<0.000000e+00> : vector<8x512xf32>
    %8 = tpu.matmul %7, %5, %cst {dimension_numbers = #tpu.dot_dimension_numbers<[1], [0], [0], [1], [0, 0, 1, 1], [], []>} : vector<8x8xf32>, vector<8x512xf32>, vector<8x512xf32> -> vector<8x512xf32>
    %c16_i32 = arith.constant 16 : i32
    %9 = tpu.dynamic_rotate %1 by %c16_i32 dim 1 : vector<8x512xf32>, i32 -> vector<8x512xf32>
    %10 = vector.extract_strided_slice %0 {offsets = [1, 0], sizes = [1, 512], strides = [1, 1]} : vector<9x512xf32> to vector<1x512xf32>
    %11 = vector.broadcast %10 : vector<1x512xf32> to vector<8x512xf32>
    %12 = arith.mulf %9, %11 : vector<8x512xf32>
    %c1 = arith.constant 1 : index
    %c0_6 = arith.constant 0 : index
    %c0_7 = arith.constant 0 : index
    %13 = vector.load %arg2[%c1, %c0_6, %c0_7] : memref<9x8x8xf32, #tpu.memory_space<vmem>>, vector<1x8x8xf32>
    %14 = vector.shape_cast %13 : vector<1x8x8xf32> to vector<8x8xf32>
    %cst_8 = arith.constant dense<0.000000e+00> : vector<8x512xf32>
    %15 = tpu.matmul %14, %12, %cst_8 {dimension_numbers = #tpu.dot_dimension_numbers<[1], [0], [0], [1], [0, 0, 1, 1], [], []>} : vector<8x8xf32>, vector<8x512xf32>, vector<8x512xf32> -> vector<8x512xf32>
    %16 = arith.addf %8, %15 : vector<8x512xf32>
    %c15_i32 = arith.constant 15 : i32
    %17 = tpu.dynamic_rotate %1 by %c15_i32 dim 1 : vector<8x512xf32>, i32 -> vector<8x512xf32>
    %18 = vector.extract_strided_slice %0 {offsets = [2, 0], sizes = [1, 512], strides = [1, 1]} : vector<9x512xf32> to vector<1x512xf32>
    %19 = vector.broadcast %18 : vector<1x512xf32> to vector<8x512xf32>
    %20 = arith.mulf %17, %19 : vector<8x512xf32>
    %c2 = arith.constant 2 : index
    %c0_9 = arith.constant 0 : index
    %c0_10 = arith.constant 0 : index
    %21 = vector.load %arg2[%c2, %c0_9, %c0_10] : memref<9x8x8xf32, #tpu.memory_space<vmem>>, vector<1x8x8xf32>
    %22 = vector.shape_cast %21 : vector<1x8x8xf32> to vector<8x8xf32>
    %cst_11 = arith.constant dense<0.000000e+00> : vector<8x512xf32>
    %23 = tpu.matmul %22, %20, %cst_11 {dimension_numbers = #tpu.dot_dimension_numbers<[1], [0], [0], [1], [0, 0, 1, 1], [], []>} : vector<8x8xf32>, vector<8x512xf32>, vector<8x512xf32> -> vector<8x512xf32>
    %24 = arith.addf %16, %23 : vector<8x512xf32>
    %c1_i32 = arith.constant 1 : i32
    %25 = tpu.dynamic_rotate %1 by %c1_i32 dim 1 : vector<8x512xf32>, i32 -> vector<8x512xf32>
    %26 = vector.extract_strided_slice %0 {offsets = [3, 0], sizes = [1, 512], strides = [1, 1]} : vector<9x512xf32> to vector<1x512xf32>
    %27 = vector.broadcast %26 : vector<1x512xf32> to vector<8x512xf32>
    %28 = arith.mulf %25, %27 : vector<8x512xf32>
    %c3 = arith.constant 3 : index
    %c0_12 = arith.constant 0 : index
    %c0_13 = arith.constant 0 : index
    %29 = vector.load %arg2[%c3, %c0_12, %c0_13] : memref<9x8x8xf32, #tpu.memory_space<vmem>>, vector<1x8x8xf32>
    %30 = vector.shape_cast %29 : vector<1x8x8xf32> to vector<8x8xf32>
    %cst_14 = arith.constant dense<0.000000e+00> : vector<8x512xf32>
    %31 = tpu.matmul %30, %28, %cst_14 {dimension_numbers = #tpu.dot_dimension_numbers<[1], [0], [0], [1], [0, 0, 1, 1], [], []>} : vector<8x8xf32>, vector<8x512xf32>, vector<8x512xf32> -> vector<8x512xf32>
    %32 = arith.addf %24, %31 : vector<8x512xf32>
    %c4 = arith.constant 4 : index
    %c0_15 = arith.constant 0 : index
    %c0_16 = arith.constant 0 : index
    %33 = vector.load %arg2[%c4, %c0_15, %c0_16] : memref<9x8x8xf32, #tpu.memory_space<vmem>>, vector<1x8x8xf32>
    %34 = vector.shape_cast %33 : vector<1x8x8xf32> to vector<8x8xf32>
    %cst_17 = arith.constant dense<0.000000e+00> : vector<8x512xf32>
    %35 = tpu.matmul %34, %1, %cst_17 {dimension_numbers = #tpu.dot_dimension_numbers<[1], [0], [0], [1], [0, 0, 1, 1], [], []>} : vector<8x8xf32>, vector<8x512xf32>, vector<8x512xf32> -> vector<8x512xf32>
    %36 = arith.addf %32, %35 : vector<8x512xf32>
    %c511_i32 = arith.constant 511 : i32
    %37 = tpu.dynamic_rotate %1 by %c511_i32 dim 1 : vector<8x512xf32>, i32 -> vector<8x512xf32>
    %38 = vector.extract_strided_slice %0 {offsets = [5, 0], sizes = [1, 512], strides = [1, 1]} : vector<9x512xf32> to vector<1x512xf32>
    %39 = vector.broadcast %38 : vector<1x512xf32> to vector<8x512xf32>
    %40 = arith.mulf %37, %39 : vector<8x512xf32>
    %c5 = arith.constant 5 : index
    %c0_18 = arith.constant 0 : index
    %c0_19 = arith.constant 0 : index
    %41 = vector.load %arg2[%c5, %c0_18, %c0_19] : memref<9x8x8xf32, #tpu.memory_space<vmem>>, vector<1x8x8xf32>
    %42 = vector.shape_cast %41 : vector<1x8x8xf32> to vector<8x8xf32>
    %cst_20 = arith.constant dense<0.000000e+00> : vector<8x512xf32>
    %43 = tpu.matmul %42, %40, %cst_20 {dimension_numbers = #tpu.dot_dimension_numbers<[1], [0], [0], [1], [0, 0, 1, 1], [], []>} : vector<8x8xf32>, vector<8x512xf32>, vector<8x512xf32> -> vector<8x512xf32>
    %44 = arith.addf %36, %43 : vector<8x512xf32>
    %c497_i32 = arith.constant 497 : i32
    %45 = tpu.dynamic_rotate %1 by %c497_i32 dim 1 : vector<8x512xf32>, i32 -> vector<8x512xf32>
    %46 = vector.extract_strided_slice %0 {offsets = [6, 0], sizes = [1, 512], strides = [1, 1]} : vector<9x512xf32> to vector<1x512xf32>
    %47 = vector.broadcast %46 : vector<1x512xf32> to vector<8x512xf32>
    %48 = arith.mulf %45, %47 : vector<8x512xf32>
    %c6 = arith.constant 6 : index
    %c0_21 = arith.constant 0 : index
    %c0_22 = arith.constant 0 : index
    %49 = vector.load %arg2[%c6, %c0_21, %c0_22] : memref<9x8x8xf32, #tpu.memory_space<vmem>>, vector<1x8x8xf32>
    %50 = vector.shape_cast %49 : vector<1x8x8xf32> to vector<8x8xf32>
    %cst_23 = arith.constant dense<0.000000e+00> : vector<8x512xf32>
    %51 = tpu.matmul %50, %48, %cst_23 {dimension_numbers = #tpu.dot_dimension_numbers<[1], [0], [0], [1], [0, 0, 1, 1], [], []>} : vector<8x8xf32>, vector<8x512xf32>, vector<8x512xf32> -> vector<8x512xf32>
    %52 = arith.addf %44, %51 : vector<8x512xf32>
    %c496_i32 = arith.constant 496 : i32
    %53 = tpu.dynamic_rotate %1 by %c496_i32 dim 1 : vector<8x512xf32>, i32 -> vector<8x512xf32>
    %54 = vector.extract_strided_slice %0 {offsets = [7, 0], sizes = [1, 512], strides = [1, 1]} : vector<9x512xf32> to vector<1x512xf32>
    %55 = vector.broadcast %54 : vector<1x512xf32> to vector<8x512xf32>
    %56 = arith.mulf %53, %55 : vector<8x512xf32>
    %c7 = arith.constant 7 : index
    %c0_24 = arith.constant 0 : index
    %c0_25 = arith.constant 0 : index
    %57 = vector.load %arg2[%c7, %c0_24, %c0_25] : memref<9x8x8xf32, #tpu.memory_space<vmem>>, vector<1x8x8xf32>
    %58 = vector.shape_cast %57 : vector<1x8x8xf32> to vector<8x8xf32>
    %cst_26 = arith.constant dense<0.000000e+00> : vector<8x512xf32>
    %59 = tpu.matmul %58, %56, %cst_26 {dimension_numbers = #tpu.dot_dimension_numbers<[1], [0], [0], [1], [0, 0, 1, 1], [], []>} : vector<8x8xf32>, vector<8x512xf32>, vector<8x512xf32> -> vector<8x512xf32>
    %60 = arith.addf %52, %59 : vector<8x512xf32>
    %c495_i32 = arith.constant 495 : i32
    %61 = tpu.dynamic_rotate %1 by %c495_i32 dim 1 : vector<8x512xf32>, i32 -> vector<8x512xf32>
    %62 = vector.extract_strided_slice %0 {offsets = [8, 0], sizes = [1, 512], strides = [1, 1]} : vector<9x512xf32> to vector<1x512xf32>
    %63 = vector.broadcast %62 : vector<1x512xf32> to vector<8x512xf32>
    %64 = arith.mulf %61, %63 : vector<8x512xf32>
    %c8 = arith.constant 8 : index
    %c0_27 = arith.constant 0 : index
    %c0_28 = arith.constant 0 : index
    %65 = vector.load %arg2[%c8, %c0_27, %c0_28] : memref<9x8x8xf32, #tpu.memory_space<vmem>>, vector<1x8x8xf32>
    %66 = vector.shape_cast %65 : vector<1x8x8xf32> to vector<8x8xf32>
    %cst_29 = arith.constant dense<0.000000e+00> : vector<8x512xf32>
    %67 = tpu.matmul %66, %64, %cst_29 {dimension_numbers = #tpu.dot_dimension_numbers<[1], [0], [0], [1], [0, 0, 1, 1], [], []>} : vector<8x8xf32>, vector<8x512xf32>, vector<8x512xf32> -> vector<8x512xf32>
    %68 = arith.addf %60, %67 : vector<8x512xf32>
    %c0_30 = arith.constant 0 : index
    %c0_31 = arith.constant 0 : index
    %69 = vector.load %arg3[%c0_30, %c0_31] : memref<8x1xf32, #tpu.memory_space<vmem>>, vector<8x1xf32>
    %70 = vector.broadcast %69 : vector<8x1xf32> to vector<8x512xf32>
    %71 = arith.addf %68, %70 : vector<8x512xf32>
    %72 = arith.negf %71 : vector<8x512xf32>
    %73 = math.exp %72 : vector<8x512xf32>
    %cst_32 = arith.constant 1.000000e+00 : f32
    %74 = vector.broadcast %cst_32 : f32 to vector<8x512xf32>
    %75 = arith.addf %74, %73 : vector<8x512xf32>
    %76 = arith.divf %74, %75 : vector<8x512xf32>
    %77 = arith.mulf %71, %76 : vector<8x512xf32>
    %c17_i32_33 = arith.constant 17 : i32
    %78 = tpu.dynamic_rotate %77 by %c17_i32_33 dim 1 : vector<8x512xf32>, i32 -> vector<8x512xf32>
    %79 = vector.extract_strided_slice %0 {offsets = [0, 0], sizes = [1, 512], strides = [1, 1]} : vector<9x512xf32> to vector<1x512xf32>
    %80 = vector.broadcast %79 : vector<1x512xf32> to vector<8x512xf32>
    %81 = arith.mulf %78, %80 : vector<8x512xf32>
    %c0_34 = arith.constant 0 : index
    %c0_35 = arith.constant 0 : index
    %c0_36 = arith.constant 0 : index
    %82 = vector.load %arg4[%c0_34, %c0_35, %c0_36] : memref<9x8x8xf32, #tpu.memory_space<vmem>>, vector<1x8x8xf32>
    %83 = vector.shape_cast %82 : vector<1x8x8xf32> to vector<8x8xf32>
    %cst_37 = arith.constant dense<0.000000e+00> : vector<8x512xf32>
    %84 = tpu.matmul %83, %81, %cst_37 {dimension_numbers = #tpu.dot_dimension_numbers<[1], [0], [0], [1], [0, 0, 1, 1], [], []>} : vector<8x8xf32>, vector<8x512xf32>, vector<8x512xf32> -> vector<8x512xf32>
    %c16_i32_38 = arith.constant 16 : i32
    %85 = tpu.dynamic_rotate %77 by %c16_i32_38 dim 1 : vector<8x512xf32>, i32 -> vector<8x512xf32>
    %86 = vector.extract_strided_slice %0 {offsets = [1, 0], sizes = [1, 512], strides = [1, 1]} : vector<9x512xf32> to vector<1x512xf32>
    %87 = vector.broadcast %86 : vector<1x512xf32> to vector<8x512xf32>
    %88 = arith.mulf %85, %87 : vector<8x512xf32>
    %c1_39 = arith.constant 1 : index
    %c0_40 = arith.constant 0 : index
    %c0_41 = arith.constant 0 : index
    %89 = vector.load %arg4[%c1_39, %c0_40, %c0_41] : memref<9x8x8xf32, #tpu.memory_space<vmem>>, vector<1x8x8xf32>
    %90 = vector.shape_cast %89 : vector<1x8x8xf32> to vector<8x8xf32>
    %cst_42 = arith.constant dense<0.000000e+00> : vector<8x512xf32>
    %91 = tpu.matmul %90, %88, %cst_42 {dimension_numbers = #tpu.dot_dimension_numbers<[1], [0], [0], [1], [0, 0, 1, 1], [], []>} : vector<8x8xf32>, vector<8x512xf32>, vector<8x512xf32> -> vector<8x512xf32>
    %92 = arith.addf %84, %91 : vector<8x512xf32>
    %c15_i32_43 = arith.constant 15 : i32
    %93 = tpu.dynamic_rotate %77 by %c15_i32_43 dim 1 : vector<8x512xf32>, i32 -> vector<8x512xf32>
    %94 = vector.extract_strided_slice %0 {offsets = [2, 0], sizes = [1, 512], strides = [1, 1]} : vector<9x512xf32> to vector<1x512xf32>
    %95 = vector.broadcast %94 : vector<1x512xf32> to vector<8x512xf32>
    %96 = arith.mulf %93, %95 : vector<8x512xf32>
    %c2_44 = arith.constant 2 : index
    %c0_45 = arith.constant 0 : index
    %c0_46 = arith.constant 0 : index
    %97 = vector.load %arg4[%c2_44, %c0_45, %c0_46] : memref<9x8x8xf32, #tpu.memory_space<vmem>>, vector<1x8x8xf32>
    %98 = vector.shape_cast %97 : vector<1x8x8xf32> to vector<8x8xf32>
    %cst_47 = arith.constant dense<0.000000e+00> : vector<8x512xf32>
    %99 = tpu.matmul %98, %96, %cst_47 {dimension_numbers = #tpu.dot_dimension_numbers<[1], [0], [0], [1], [0, 0, 1, 1], [], []>} : vector<8x8xf32>, vector<8x512xf32>, vector<8x512xf32> -> vector<8x512xf32>
    %100 = arith.addf %92, %99 : vector<8x512xf32>
    %c1_i32_48 = arith.constant 1 : i32
    %101 = tpu.dynamic_rotate %77 by %c1_i32_48 dim 1 : vector<8x512xf32>, i32 -> vector<8x512xf32>
    %102 = vector.extract_strided_slice %0 {offsets = [3, 0], sizes = [1, 512], strides = [1, 1]} : vector<9x512xf32> to vector<1x512xf32>
    %103 = vector.broadcast %102 : vector<1x512xf32> to vector<8x512xf32>
    %104 = arith.mulf %101, %103 : vector<8x512xf32>
    %c3_49 = arith.constant 3 : index
    %c0_50 = arith.constant 0 : index
    %c0_51 = arith.constant 0 : index
    %105 = vector.load %arg4[%c3_49, %c0_50, %c0_51] : memref<9x8x8xf32, #tpu.memory_space<vmem>>, vector<1x8x8xf32>
    %106 = vector.shape_cast %105 : vector<1x8x8xf32> to vector<8x8xf32>
    %cst_52 = arith.constant dense<0.000000e+00> : vector<8x512xf32>
    %107 = tpu.matmul %106, %104, %cst_52 {dimension_numbers = #tpu.dot_dimension_numbers<[1], [0], [0], [1], [0, 0, 1, 1], [], []>} : vector<8x8xf32>, vector<8x512xf32>, vector<8x512xf32> -> vector<8x512xf32>
    %108 = arith.addf %100, %107 : vector<8x512xf32>
    %c4_53 = arith.constant 4 : index
    %c0_54 = arith.constant 0 : index
    %c0_55 = arith.constant 0 : index
    %109 = vector.load %arg4[%c4_53, %c0_54, %c0_55] : memref<9x8x8xf32, #tpu.memory_space<vmem>>, vector<1x8x8xf32>
    %110 = vector.shape_cast %109 : vector<1x8x8xf32> to vector<8x8xf32>
    %cst_56 = arith.constant dense<0.000000e+00> : vector<8x512xf32>
    %111 = tpu.matmul %110, %77, %cst_56 {dimension_numbers = #tpu.dot_dimension_numbers<[1], [0], [0], [1], [0, 0, 1, 1], [], []>} : vector<8x8xf32>, vector<8x512xf32>, vector<8x512xf32> -> vector<8x512xf32>
    %112 = arith.addf %108, %111 : vector<8x512xf32>
    %c511_i32_57 = arith.constant 511 : i32
    %113 = tpu.dynamic_rotate %77 by %c511_i32_57 dim 1 : vector<8x512xf32>, i32 -> vector<8x512xf32>
    %114 = vector.extract_strided_slice %0 {offsets = [5, 0], sizes = [1, 512], strides = [1, 1]} : vector<9x512xf32> to vector<1x512xf32>
    %115 = vector.broadcast %114 : vector<1x512xf32> to vector<8x512xf32>
    %116 = arith.mulf %113, %115 : vector<8x512xf32>
    %c5_58 = arith.constant 5 : index
    %c0_59 = arith.constant 0 : index
    %c0_60 = arith.constant 0 : index
    %117 = vector.load %arg4[%c5_58, %c0_59, %c0_60] : memref<9x8x8xf32, #tpu.memory_space<vmem>>, vector<1x8x8xf32>
    %118 = vector.shape_cast %117 : vector<1x8x8xf32> to vector<8x8xf32>
    %cst_61 = arith.constant dense<0.000000e+00> : vector<8x512xf32>
    %119 = tpu.matmul %118, %116, %cst_61 {dimension_numbers = #tpu.dot_dimension_numbers<[1], [0], [0], [1], [0, 0, 1, 1], [], []>} : vector<8x8xf32>, vector<8x512xf32>, vector<8x512xf32> -> vector<8x512xf32>
    %120 = arith.addf %112, %119 : vector<8x512xf32>
    %c497_i32_62 = arith.constant 497 : i32
    %121 = tpu.dynamic_rotate %77 by %c497_i32_62 dim 1 : vector<8x512xf32>, i32 -> vector<8x512xf32>
    %122 = vector.extract_strided_slice %0 {offsets = [6, 0], sizes = [1, 512], strides = [1, 1]} : vector<9x512xf32> to vector<1x512xf32>
    %123 = vector.broadcast %122 : vector<1x512xf32> to vector<8x512xf32>
    %124 = arith.mulf %121, %123 : vector<8x512xf32>
    %c6_63 = arith.constant 6 : index
    %c0_64 = arith.constant 0 : index
    %c0_65 = arith.constant 0 : index
    %125 = vector.load %arg4[%c6_63, %c0_64, %c0_65] : memref<9x8x8xf32, #tpu.memory_space<vmem>>, vector<1x8x8xf32>
    %126 = vector.shape_cast %125 : vector<1x8x8xf32> to vector<8x8xf32>
    %cst_66 = arith.constant dense<0.000000e+00> : vector<8x512xf32>
    %127 = tpu.matmul %126, %124, %cst_66 {dimension_numbers = #tpu.dot_dimension_numbers<[1], [0], [0], [1], [0, 0, 1, 1], [], []>} : vector<8x8xf32>, vector<8x512xf32>, vector<8x512xf32> -> vector<8x512xf32>
    %128 = arith.addf %120, %127 : vector<8x512xf32>
    %c496_i32_67 = arith.constant 496 : i32
    %129 = tpu.dynamic_rotate %77 by %c496_i32_67 dim 1 : vector<8x512xf32>, i32 -> vector<8x512xf32>
    %130 = vector.extract_strided_slice %0 {offsets = [7, 0], sizes = [1, 512], strides = [1, 1]} : vector<9x512xf32> to vector<1x512xf32>
    %131 = vector.broadcast %130 : vector<1x512xf32> to vector<8x512xf32>
    %132 = arith.mulf %129, %131 : vector<8x512xf32>
    %c7_68 = arith.constant 7 : index
    %c0_69 = arith.constant 0 : index
    %c0_70 = arith.constant 0 : index
    %133 = vector.load %arg4[%c7_68, %c0_69, %c0_70] : memref<9x8x8xf32, #tpu.memory_space<vmem>>, vector<1x8x8xf32>
    %134 = vector.shape_cast %133 : vector<1x8x8xf32> to vector<8x8xf32>
    %cst_71 = arith.constant dense<0.000000e+00> : vector<8x512xf32>
    %135 = tpu.matmul %134, %132, %cst_71 {dimension_numbers = #tpu.dot_dimension_numbers<[1], [0], [0], [1], [0, 0, 1, 1], [], []>} : vector<8x8xf32>, vector<8x512xf32>, vector<8x512xf32> -> vector<8x512xf32>
    %136 = arith.addf %128, %135 : vector<8x512xf32>
    %c495_i32_72 = arith.constant 495 : i32
    %137 = tpu.dynamic_rotate %77 by %c495_i32_72 dim 1 : vector<8x512xf32>, i32 -> vector<8x512xf32>
    %138 = vector.extract_strided_slice %0 {offsets = [8, 0], sizes = [1, 512], strides = [1, 1]} : vector<9x512xf32> to vector<1x512xf32>
    %139 = vector.broadcast %138 : vector<1x512xf32> to vector<8x512xf32>
    %140 = arith.mulf %137, %139 : vector<8x512xf32>
    %c8_73 = arith.constant 8 : index
    %c0_74 = arith.constant 0 : index
    %c0_75 = arith.constant 0 : index
    %141 = vector.load %arg4[%c8_73, %c0_74, %c0_75] : memref<9x8x8xf32, #tpu.memory_space<vmem>>, vector<1x8x8xf32>
    %142 = vector.shape_cast %141 : vector<1x8x8xf32> to vector<8x8xf32>
    %cst_76 = arith.constant dense<0.000000e+00> : vector<8x512xf32>
    %143 = tpu.matmul %142, %140, %cst_76 {dimension_numbers = #tpu.dot_dimension_numbers<[1], [0], [0], [1], [0, 0, 1, 1], [], []>} : vector<8x8xf32>, vector<8x512xf32>, vector<8x512xf32> -> vector<8x512xf32>
    %144 = arith.addf %136, %143 : vector<8x512xf32>
    %c0_77 = arith.constant 0 : index
    %c0_78 = arith.constant 0 : index
    %145 = vector.load %arg5[%c0_77, %c0_78] : memref<8x1xf32, #tpu.memory_space<vmem>>, vector<8x1xf32>
    %146 = vector.broadcast %145 : vector<8x1xf32> to vector<8x512xf32>
    %147 = arith.addf %144, %146 : vector<8x512xf32>
    %148 = arith.negf %147 : vector<8x512xf32>
    %149 = math.exp %148 : vector<8x512xf32>
    %cst_79 = arith.constant 1.000000e+00 : f32
    %150 = vector.broadcast %cst_79 : f32 to vector<8x512xf32>
    %151 = arith.addf %150, %149 : vector<8x512xf32>
    %152 = arith.divf %150, %151 : vector<8x512xf32>
    %153 = arith.mulf %147, %152 : vector<8x512xf32>
    %c0_80 = arith.constant 0 : index
    %c0_81 = arith.constant 0 : index
    %154 = vector.load %arg7[%c0_80, %c0_81] : memref<8x512xf32, #tpu.memory_space<vmem>>, vector<8x512xf32>
    tpu.vector_store %arg7[%c0_80, %c0_81], %153 {strides = array<i32>} : memref<8x512xf32, #tpu.memory_space<vmem>>, vector<8x512xf32>,
    return
  }
  func.func @transform_0(%arg0: i32) -> (i32, i32) {
    %c0_i32 = arith.constant 0 : i32
    %c0_i32_0 = arith.constant 0 : i32
    return %c0_i32, %arg0 : i32, i32
  }
  func.func @transform_1(%arg0: i32) -> (i32, i32, i32) {
    %c0_i32 = arith.constant 0 : i32
    %c0_i32_0 = arith.constant 0 : i32
    %c0_i32_1 = arith.constant 0 : i32
    %c0_i32_2 = arith.constant 0 : i32
    return %c0_i32, %c0_i32_0, %c0_i32_1 : i32, i32, i32
  }
  func.func @transform_2(%arg0: i32) -> (i32, i32) {
    %c0_i32 = arith.constant 0 : i32
    %c0_i32_0 = arith.constant 0 : i32
    %c0_i32_1 = arith.constant 0 : i32
    return %c0_i32, %c0_i32_0 : i32, i32
  }
  func.func @transform_3(%arg0: i32) -> (i32, i32, i32) {
    %c0_i32 = arith.constant 0 : i32
    %c0_i32_0 = arith.constant 0 : i32
    %c0_i32_1 = arith.constant 0 : i32
    %c0_i32_2 = arith.constant 0 : i32
    return %c0_i32, %c0_i32_0, %c0_i32_1 : i32, i32, i32
  }
  func.func @transform_4(%arg0: i32) -> (i32, i32) {
    %c0_i32 = arith.constant 0 : i32
    %c0_i32_0 = arith.constant 0 : i32
    %c0_i32_1 = arith.constant 0 : i32
    return %c0_i32, %c0_i32_0 : i32, i32
  }
  func.func @transform_5(%arg0: i32) -> (i32, i32) {
    %c0_i32 = arith.constant 0 : i32
    %c0_i32_0 = arith.constant 0 : i32
    %c0_i32_1 = arith.constant 0 : i32
    return %c0_i32, %c0_i32_0 : i32, i32
  }
  func.func @transform_6(%arg0: i32) -> (i32, i32) {
    %c0_i32 = arith.constant 0 : i32
    %c0_i32_0 = arith.constant 0 : i32
    return %c0_i32, %arg0 : i32, i32
  }
}

</mosaic_0001>

<llo_original>
// kernel: intermediate_forward.1
$region0: #{intermediate_forward.1}
  #allocation0 [shape = 'u32[]', space=smem, size = 0x4, offset = 0x4, fixed_abs, tag = 'smem constant byte address 0x4 - core index']
  #allocation1 [shape = 'u32[144,128]{1,0:T(1,128)}', space=vmem, size = 0x12000, scoped, tag = 'internal scratch']
  %s0 = inlined_call_operand.vmem [shape: f32[8,1024], index: 0, kind: input, shape index: {}]
  %s1 = inlined_call_operand.vmem [shape: f32[9,8,8], index: 1, kind: input, shape index: {}]
  %s2 = inlined_call_operand.vmem [shape: f32[8,1], index: 2, kind: input, shape index: {}]
  %s3 = inlined_call_operand.vmem [shape: f32[9,8,8], index: 3, kind: input, shape index: {}]
  %s4 = inlined_call_operand.vmem [shape: f32[8,1], index: 4, kind: input, shape index: {}]
  %s5 = inlined_call_operand.vmem [shape: f32[9,512], index: 5, kind: input, shape index: {}]
  %s6 = inlined_call_operand.vmem [shape: f32[8,1024], index: 6, kind: output, shape index: {}]
  %s7 = sld [smem:[#allocation0]]
  $region57: #{intermediate_forward.1} parent=0
    _
  %s9 = ssub.s32 1, %s7
  %s10 = scalar_select 0, %s9, %s7
  loop: start=0, step=1, limit=4
  $region2: #{intermediate_forward.1} parent=0 // loop_pre_header
    _
  $region3: #{intermediate_forward.1} parent=0 // loop_header
    %s12 = sphi 0, %s16
    %p13 = scmp.ge.s32.totalorder %s12, 4
    %s22 = sphi 0, %s24
    %s25 = sphi 0, %s22
    %s26 = sphi 0, %s25
    %s42 = sphi 0, %s26
    %s46 = sphi 0, %s46
    %s48 = sphi 0, %s46
    %s49 = sphi 0, %s48
    %s63 = sphi 0, %s49
    %s67 = sphi 0, %s67
    %s69 = sphi 0, %s67
    %s70 = sphi 0, %s69
    %s84 = sphi 0, %s70
    %s88 = sphi 0, %s88
    %s90 = sphi 0, %s88
    %s91 = sphi 0, %s90
    %s105 = sphi 0, %s91
    %s109 = sphi 0, %s109
    %s111 = sphi 0, %s109
    %s112 = sphi 0, %s111
    %s126 = sphi 0, %s112
    %s130 = sphi 0, %s130
    %s132 = sphi 0, %s130
    %s133 = sphi 0, %s132
    %s147 = sphi 0, %s133
    %s153 = sphi 0, %s155
    %s156 = sphi 0, %s153
    %s157 = sphi 0, %s156
    %s173 = sphi 0, %s157
  $region4: #{intermediate_forward.1} parent=0 // loop_header_branch
    %15 = sbr.rel (%p13) target = $region8
  $region5: #{intermediate_forward.1} parent=0 // loop_body
    %s17 = ssub.s32 %s12, 1
    %s18 = ssub.s32 %s12, 2
    %s19 = sadd.s32 %s12, 1
    %s20 = ssub.s32 %s12, %s19
    %p21 = scmp.eq.s32.totalorder %s20, 0
    %s23 = sadd.s32 %s22, 1
    %s24 = scalar_select %p21, %s22, %s23
    %p27 = pneg %p21
    %p28 = scmp.eq.s32.totalorder %s12, 1
    %p29 = por %p27, %p28
    %p30 = scmp.ne.s32.totalorder %s22, %s25
    %p31 = scmp.eq.s32.totalorder %s12, 0
    %p32 = por %p30, %p31
    %p33 = scmp.ne.s32.totalorder %s22, %s25
    %p34 = scmp.eq.s32.totalorder %s17, 1
    %p35 = por %p33, %p34
    %p36 = scmp.ne.s32.totalorder %s25, %s26
    %p37 = scmp.eq.s32.totalorder %s17, 0
    %p38 = por %p36, %p37
    %p39 = scmp.ne.s32.totalorder %s25, %s26
    %p40 = scmp.eq.s32.totalorder %s18, 1
    %p41 = por %p39, %p40
    %p43 = scmp.ne.s32.totalorder %s26, %s42
    %p44 = scmp.eq.s32.totalorder %s18, 0
    %p45 = por %p43, %p44
    %s47 = sadd.s32 %s46, 1
    %p50 = scmp.eq.s32.totalorder %s12, 1
    %p51 = scmp.ne.s32.totalorder %s46, %s48
    %p52 = scmp.eq.s32.totalorder %s12, 0
    %p53 = por %p51, %p52
    %p54 = scmp.ne.s32.totalorder %s46, %s48
    %p55 = scmp.eq.s32.totalorder %s17, 1
    %p56 = por %p54, %p55
    %p57 = scmp.ne.s32.totalorder %s48, %s49
    %p58 = scmp.eq.s32.totalorder %s17, 0
    %p59 = por %p57, %p58
    %p60 = scmp.ne.s32.totalorder %s48, %s49
    %p61 = scmp.eq.s32.totalorder %s18, 1
    %p62 = por %p60, %p61
    %p64 = scmp.ne.s32.totalorder %s49, %s63
    %p65 = scmp.eq.s32.totalorder %s18, 0
    %p66 = por %p64, %p65
    %s68 = sadd.s32 %s67, 1
    %p71 = scmp.eq.s32.totalorder %s12, 1
    %p72 = scmp.ne.s32.totalorder %s67, %s69
    %p73 = scmp.eq.s32.totalorder %s12, 0
    %p74 = por %p72, %p73
    %p75 = scmp.ne.s32.totalorder %s67, %s69
    %p76 = scmp.eq.s32.totalorder %s17, 1
    %p77 = por %p75, %p76
    %p78 = scmp.ne.s32.totalorder %s69, %s70
    %p79 = scmp.eq.s32.totalorder %s17, 0
    %p80 = por %p78, %p79
    %p81 = scmp.ne.s32.totalorder %s69, %s70
    %p82 = scmp.eq.s32.totalorder %s18, 1
    %p83 = por %p81, %p82
    %p85 = scmp.ne.s32.totalorder %s70, %s84
    %p86 = scmp.eq.s32.totalorder %s18, 0
    %p87 = por %p85, %p86
    %s89 = sadd.s32 %s88, 1
    %p92 = scmp.eq.s32.totalorder %s12, 1
    %p93 = scmp.ne.s32.totalorder %s88, %s90
    %p94 = scmp.eq.s32.totalorder %s12, 0
    %p95 = por %p93, %p94
    %p96 = scmp.ne.s32.totalorder %s88, %s90
    %p97 = scmp.eq.s32.totalorder %s17, 1
    %p98 = por %p96, %p97
    %p99 = scmp.ne.s32.totalorder %s90, %s91
    %p100 = scmp.eq.s32.totalorder %s17, 0
    %p101 = por %p99, %p100
    %p102 = scmp.ne.s32.totalorder %s90, %s91
    %p103 = scmp.eq.s32.totalorder %s18, 1
    %p104 = por %p102, %p103
    %p106 = scmp.ne.s32.totalorder %s91, %s105
    %p107 = scmp.eq.s32.totalorder %s18, 0
    %p108 = por %p106, %p107
    %s110 = sadd.s32 %s109, 1
    %p113 = scmp.eq.s32.totalorder %s12, 1
    %p114 = scmp.ne.s32.totalorder %s109, %s111
    %p115 = scmp.eq.s32.totalorder %s12, 0
    %p116 = por %p114, %p115
    %p117 = scmp.ne.s32.totalorder %s109, %s111
    %p118 = scmp.eq.s32.totalorder %s17, 1
    %p119 = por %p117, %p118
    %p120 = scmp.ne.s32.totalorder %s111, %s112
    %p121 = scmp.eq.s32.totalorder %s17, 0
    %p122 = por %p120, %p121
    %p123 = scmp.ne.s32.totalorder %s111, %s112
    %p124 = scmp.eq.s32.totalorder %s18, 1
    %p125 = por %p123, %p124
    %p127 = scmp.ne.s32.totalorder %s112, %s126
    %p128 = scmp.eq.s32.totalorder %s18, 0
    %p129 = por %p127, %p128
    %s131 = sadd.s32 %s130, 1
    %p134 = scmp.eq.s32.totalorder %s12, 1
    %p135 = scmp.ne.s32.totalorder %s130, %s132
    %p136 = scmp.eq.s32.totalorder %s12, 0
    %p137 = por %p135, %p136
    %p138 = scmp.ne.s32.totalorder %s130, %s132
    %p139 = scmp.eq.s32.totalorder %s17, 1
    %p140 = por %p138, %p139
    %p141 = scmp.ne.s32.totalorder %s132, %s133
    %p142 = scmp.eq.s32.totalorder %s17, 0
    %p143 = por %p141, %p142
    %p144 = scmp.ne.s32.totalorder %s132, %s133
    %p145 = scmp.eq.s32.totalorder %s18, 1
    %p146 = por %p144, %p145
    %p148 = scmp.ne.s32.totalorder %s133, %s147
    %p149 = scmp.eq.s32.totalorder %s18, 0
    %p150 = por %p148, %p149
    %s151 = ssub.s32 %s12, %s19
    %p152 = scmp.eq.s32.totalorder %s151, 0
    %s154 = sadd.s32 %s153, 1
    %s155 = scalar_select %p152, %s153, %s154
    %p158 = pneg %p152
    %p159 = scmp.eq.s32.totalorder %s12, 1
    %p160 = por %p158, %p159
    %p161 = scmp.ne.s32.totalorder %s153, %s156
    %p162 = scmp.eq.s32.totalorder %s12, 0
    %p163 = por %p161, %p162
    %p164 = scmp.ne.s32.totalorder %s153, %s156
    %p165 = scmp.eq.s32.totalorder %s17, 1
    %p166 = por %p164, %p165
    %p167 = scmp.ne.s32.totalorder %s156, %s157
    %p168 = scmp.eq.s32.totalorder %s17, 0
    %p169 = por %p167, %p168
    %p170 = scmp.ne.s32.totalorder %s156, %s157
    %p171 = scmp.eq.s32.totalorder %s18, 1
    %p172 = por %p170, %p171
    %p174 = scmp.ne.s32.totalorder %s157, %s173
    %p175 = scmp.eq.s32.totalorder %s18, 0
    %p176 = por %p174, %p175
    %p177 = scmp.le.s32.totalorder 1, %s12
    %p178 = scmp.lt.s32.totalorder %s12, 3
    %p179 = pnand %p177, %p178
    %p180 = pneg %p179
    // Predicated region
    $region9: #{intermediate_forward.1} parent=5 // pred_check
      _
    $region10: #{intermediate_forward.1} parent=5 // pred_check_branch
      %182 = sbr.rel (%p179) target = $region12
    $region11: #{intermediate_forward.1} parent=5 // pred_region
      %s183 = ssub.s32 %s12, 1
      // Predicated region
      $region13: #{intermediate_forward.1} parent=11 // pred_check
        %p184 = pneg %p59
      $region14: #{intermediate_forward.1} parent=11 // pred_check_branch
        %186 = sbr.rel (%p184) target = $region16
      $region15: #{intermediate_forward.1} parent=11 // pred_region
        _
      $region16: #{intermediate_forward.1} parent=11 // pred_fallthru
        _
      // Predicated region
      $region17: #{intermediate_forward.1} parent=11 // pred_check
        %p187 = pneg %p80
      $region18: #{intermediate_forward.1} parent=11 // pred_check_branch
        %189 = sbr.rel (%p187) target = $region20
      $region19: #{intermediate_forward.1} parent=11 // pred_region
        _
      $region20: #{intermediate_forward.1} parent=11 // pred_fallthru
        _
      // Predicated region
      $region21: #{intermediate_forward.1} parent=11 // pred_check
        %p190 = pneg %p101
      $region22: #{intermediate_forward.1} parent=11 // pred_check_branch
        %192 = sbr.rel (%p190) target = $region24
      $region23: #{intermediate_forward.1} parent=11 // pred_region
        _
      $region24: #{intermediate_forward.1} parent=11 // pred_fallthru
        _
      // Predicated region
      $region25: #{intermediate_forward.1} parent=11 // pred_check
        %p193 = pneg %p122
      $region26: #{intermediate_forward.1} parent=11 // pred_check_branch
        %195 = sbr.rel (%p193) target = $region28
      $region27: #{intermediate_forward.1} parent=11 // pred_region
        _
      $region28: #{intermediate_forward.1} parent=11 // pred_fallthru
        _
      // Predicated region
      $region29: #{intermediate_forward.1} parent=11 // pred_check
        %p196 = pneg %p143
      $region30: #{intermediate_forward.1} parent=11 // pred_check_branch
        %198 = sbr.rel (%p196) target = $region32
      $region31: #{intermediate_forward.1} parent=11 // pred_region
        _
      $region32: #{intermediate_forward.1} parent=11 // pred_fallthru
        _
    $region12: #{intermediate_forward.1} parent=5 // pred_fallthru
      _
    %p199 = scmp.lt.s32.totalorder %s12, 2
    // Predicated region
    $region33: #{intermediate_forward.1} parent=5 // pred_check
      %p200 = pneg %p199
    $region34: #{intermediate_forward.1} parent=5 // pred_check_branch
      %202 = sbr.rel (%p200) target = $region36
    $region35: #{intermediate_forward.1} parent=5 // pred_region
      // Predicated region
      $region37: #{intermediate_forward.1} parent=35 // pred_check
        %p203 = pneg %p32
      $region38: #{intermediate_forward.1} parent=35 // pred_check_branch
        %205 = sbr.rel (%p203) target = $region40
      $region39: #{intermediate_forward.1} parent=35 // pred_region
        %s206 = smul.u32 4, %s12
        %p207 = scmp.lt.s32.totalorder %s206, 7
        %s208 = scalar_select %p207, %s206, 7
        %s209 = smul.addr %s208, 8
        %s210 = scalar_lea.vmem %s0, %s209
        %s211 = smul.u32 4, %s12
      $region40: #{intermediate_forward.1} parent=35 // pred_fallthru
        _
    $region36: #{intermediate_forward.1} parent=5 // pred_fallthru
      _
    %p212 = scmp.le.s32.totalorder 1, %s12
    %p213 = scmp.lt.s32.totalorder %s12, 3
    %p214 = pnand %p212, %p213
    %p215 = pneg %p214
    // Predicated region
    $region41: #{intermediate_forward.1} parent=5 // pred_check
      _
    $region42: #{intermediate_forward.1} parent=5 // pred_check_branch
      %217 = sbr.rel (%p214) target = $region44
    $region43: #{intermediate_forward.1} parent=5 // pred_region
      %s218 = ssub.s32 %s12, 1
      %s219 = smul.u32 4, %s17
      %p220 = scmp.lt.s32.totalorder %s219, 7
      %s221 = scalar_select %p220, %s219, 7
      %s222 = smul.addr %s221, 8
      %s223 = scalar_lea.vmem %s0, %s222
      %p224 = pneg %p38
      %p225 = pneg %p35
      %p226 = pneg %p59
      %p227 = pneg %p56
      %p228 = pneg %p80
      %p229 = pneg %p77
      %p230 = pneg %p101
      %p231 = pneg %p98
      %p232 = pneg %p122
      %p233 = pneg %p119
      %p234 = pneg %p143
      %p235 = pneg %p140
      %p236 = pneg %p169
      %p237 = pneg %p166
      %s238 = smul.u32 4, %s17
      %p239 = scmp.lt.s32.totalorder %s238, 7
      %s240 = scalar_select %p239, %s238, 7
      %s241 = smul.addr %s240, 8
      %s242 = scalar_lea.vmem %s6, %s241
      %s243 = smul.u32 4, %s17
      %p244 = scmp.lt.s32.totalorder %s243, 7
      %s245 = scalar_select %p244, %s243, 7
      %s246 = smul.addr %s245, 8
      %s247 = scalar_lea.vmem %s0, %s246
      %s248 = smul.u32 4, %s17
      %s249 = smul.u32 4, %s17
      %p250 = scmp.lt.s32.totalorder %s249, 7
      %s251 = scalar_select %p250, %s249, 7
      %s252 = smul.addr %s251, 8
      %s253 = scalar_lea.vmem %s6, %s252
      %s254 = smul.u32 4, %s17
      %v255 = vld [vmem:[%s5] sm:$0xff]
      %v256 = vld [vmem:[%s5 + $0x8] sm:$0xff]
      %v257 = vld [vmem:[%s5 + $0x10] sm:$0xff]
      %v258 = vld [vmem:[%s5 + $0x18] sm:$0xff]
      %v259 = vld [vmem:[%s5 + $0x20] sm:$0x1]
      %v260 = vld [vmem:[%s5 + $0x28] sm:$0x1]
      %v261 = vld [vmem:[%s5 + $0x30] sm:$0x1]
      %v262 = vld [vmem:[%s5 + $0x38] sm:$0x1]
      %v263 = vld [vmem:[%s247] sm:$0xff]
      %v264 = vld [vmem:[%s247 + $0x8] sm:$0xff]
      %v265 = vld [vmem:[%s247 + $0x10] sm:$0xff]
      %v266 = vld [vmem:[%s247 + $0x18] sm:$0xff]
      %267 = vrot.lane.b32.xlu0 %v263, 17
      %v268 = vpop.permute.xlu0 %267
      %269 = vrot.lane.b32.xlu0 %v264, 17
      %v270 = vpop.permute.xlu0 %269
      %271 = vrot.lane.b32.xlu0 %v265, 17
      %v272 = vpop.permute.xlu0 %271
      %273 = vrot.lane.b32.xlu0 %v266, 17
      %v274 = vpop.permute.xlu0 %273
      %v275 = vlaneseq
      %v276 = vand.u32 %v275, 127
      %vm277 = vcmp.lt.s32.totalorder %v276, 17
      %v278 = vsel %vm277, %v272, %v274
      %v279 = vsel %vm277, %v270, %v272
      %v280 = vsel %vm277, %v268, %v270
      %v281 = vsel %vm277, %v274, %v268
      %v282 = vlaneseq
      %v283 = vshrl.u32 %v282, 7
      %v284 = vsub.s32 0, %v283
      %v285 = vrot.slane %v255, %v284
      %v286 = vlaneseq
      %v287 = vshrl.u32 %v286, 7
      %v288 = vsub.s32 0, %v287
      %v289 = vrot.slane %v256, %v288
      %v290 = vlaneseq
      %v291 = vshrl.u32 %v290, 7
      %v292 = vsub.s32 0, %v291
      %v293 = vrot.slane %v257, %v292
      %v294 = vlaneseq
      %v295 = vshrl.u32 %v294, 7
      %v296 = vsub.s32 0, %v295
      %v297 = vrot.slane %v258, %v296
      %v298 = vmul.f32 %v281, %v285
      %v299 = vmul.f32 %v280, %v289
      %v300 = vmul.f32 %v279, %v293
      %v301 = vmul.f32 %v278, %v297
      %v302 = vld [vmem:[%s1] sm:$0xff]
      %303 = vrot.lane.b32.xlu0 %v263, 16
      %v304 = vpop.permute.xlu0 %303
      %305 = vrot.lane.b32.xlu0 %v264, 16
      %v306 = vpop.permute.xlu0 %305
      %307 = vrot.lane.b32.xlu0 %v265, 16
      %v308 = vpop.permute.xlu0 %307
      %309 = vrot.lane.b32.xlu0 %v266, 16
      %v310 = vpop.permute.xlu0 %309
      %vm311 = vcmp.lt.s32.totalorder %v276, 16
      %v312 = vsel %vm311, %v308, %v310
      %v313 = vsel %vm311, %v306, %v308
      %v314 = vsel %vm311, %v304, %v306
      %v315 = vsel %vm311, %v310, %v304
      %v316 = vlaneseq
      %v317 = vshrl.u32 %v316, 7
      %v318 = vsub.s32 1, %v317
      %v319 = vrot.slane %v255, %v318
      %v320 = vlaneseq
      %v321 = vshrl.u32 %v320, 7
      %v322 = vsub.s32 1, %v321
      %v323 = vrot.slane %v256, %v322
      %v324 = vlaneseq
      %v325 = vshrl.u32 %v324, 7
      %v326 = vsub.s32 1, %v325
      %v327 = vrot.slane %v257, %v326
      %v328 = vlaneseq
      %v329 = vshrl.u32 %v328, 7
      %v330 = vsub.s32 1, %v329
      %v331 = vrot.slane %v258, %v330
      %v332 = vmul.f32 %v315, %v319
      %v333 = vmul.f32 %v314, %v323
      %v334 = vmul.f32 %v313, %v327
      %v335 = vmul.f32 %v312, %v331
      %s336 = scalar_lea.vmem %s1, 8
      %v337 = vld [vmem:[%s336] sm:$0xff]
      %vm338 = vcmask 64512
      %v340 = vsel %vm338, %v337, 0
      %342 = vmatprep.subr.mxu0 %v333
      %343 = vmatpush1.msra.mxu0 %v332
      %344 = vmatprep.subr.mxu0 0.0
      %345 = vmatpush1.msra.mxu0 0.0
      %346 = vmatprep.subr.mxu0 0.0
      %347 = vmatpush1.msra.mxu0 0.0
      %348 = vmatprep.subr.mxu0 0.0
      %349 = vmatpush1.msra.mxu0 0.0
      %350 = vmatprep.subr.mxu0 0.0
      %351 = vmatpush1.msra.mxu0 0.0
      %352 = vmatprep.subr.mxu0 0.0
      %353 = vmatpush1.msra.mxu0 0.0
      %354 = vmatprep.subr.mxu0 0.0
      %355 = vmatpush1.msra.mxu0 0.0
      %356 = vmatprep.subr.mxu0 0.0
      %357 = vmatpush1.msra.mxu0 0.0
      %358 = vmatprep.subr.mxu0 0.0
      %359 = vmatpush1.msra.mxu0 0.0
      %360 = vmatprep.subr.mxu0 0.0
      %361 = vmatpush1.msra.mxu0 0.0
      %362 = vmatprep.subr.mxu0 0.0
      %363 = vmatpush1.msra.mxu0 0.0
      %364 = vmatprep.subr.mxu0 0.0
      %365 = vmatpush1.msra.mxu0 0.0
      %366 = vmatprep.subr.mxu0 0.0
      %367 = vmatpush1.msra.mxu0 0.0
      %368 = vmatprep.subr.mxu0 0.0
      %369 = vmatpush1.msra.mxu0 0.0
      %370 = vmatprep.subr.mxu0 0.0
      %371 = vmatpush1.msra.mxu0 0.0
      %372 = vmatprep.subr.mxu0 0.0
      %373 = vmatpush1.msra.mxu0 0.0
      %374 = vmatprep.subr.mxu0 0.0
      %375 = vmatpush1.msra.mxu0 0.0
      %376 = vmatprep.subr.mxu0 0.0
      %377 = vmatpush1.msra.mxu0 0.0
      %378 = vmatprep.subr.mxu0 0.0
      %379 = vmatpush1.msra.mxu0 0.0
      %380 = vmatprep.subr.mxu0 0.0
      %381 = vmatpush1.msra.mxu0 0.0
      %382 = vmatprep.subr.mxu0 0.0
      %383 = vmatpush1.msra.mxu0 0.0
      %384 = vmatprep.subr.mxu0 0.0
      %385 = vmatpush1.msra.mxu0 0.0
      %386 = vmatprep.subr.mxu0 0.0
      %387 = vmatpush1.msra.mxu0 0.0
      %388 = vmatprep.subr.mxu0 0.0
      %389 = vmatpush1.msra.mxu0 0.0
      %390 = vmatprep.subr.mxu0 0.0
      %391 = vmatpush1.msra.mxu0 0.0
      %392 = vmatprep.subr.mxu0 0.0
      %393 = vmatpush1.msra.mxu0 0.0
      %394 = vmatprep.subr.mxu0 0.0
      %395 = vmatpush1.msra.mxu0 0.0
      %396 = vmatprep.subr.mxu0 0.0
      %397 = vmatpush1.msra.mxu0 0.0
      %398 = vmatprep.subr.mxu0 0.0
      %399 = vmatpush1.msra.mxu0 0.0
      %400 = vmatprep.subr.mxu0 0.0
      %401 = vmatpush1.msra.mxu0 0.0
      %402 = vmatprep.subr.mxu0 0.0
      %403 = vmatpush1.msra.mxu0 0.0
      %404 = vmatprep.subr.mxu0 0.0
      %405 = vmatpush1.msra.mxu0 0.0
      %406 = vmatprep.mubr.f32.mxu0 0.0
      %407 = vmatmul.mubr.f32.gmra.mrb[0].mxu0 %v340
      %v408 = vpop.f32.mrb[0].mxu0
      %v409 = vadd.f32 0.0, %v408
      %v410 = vpop.f32.mrb[0].mxu0
      %v411 = vadd.f32 0.0, %v410
      %412 = vdwg.mxu0
      %413 = vmatprep.subr.mxu0 %v335
      %414 = vmatpush1.msra.mxu0 %v334
      %415 = vmatprep.subr.mxu0 0.0
      %416 = vmatpush1.msra.mxu0 0.0
      %417 = vmatprep.subr.mxu0 0.0
      %418 = vmatpush1.msra.mxu0 0.0
      %419 = vmatprep.subr.mxu0 0.0
      %420 = vmatpush1.msra.mxu0 0.0
      %421 = vmatprep.subr.mxu0 0.0
      %422 = vmatpush1.msra.mxu0 0.0
      %423 = vmatprep.subr.mxu0 0.0
      %424 = vmatpush1.msra.mxu0 0.0
      %425 = vmatprep.subr.mxu0 0.0
      %426 = vmatpush1.msra.mxu0 0.0
      %427 = vmatprep.subr.mxu0 0.0
      %428 = vmatpush1.msra.mxu0 0.0
      %429 = vmatprep.subr.mxu0 0.0
      %430 = vmatpush1.msra.mxu0 0.0
      %431 = vmatprep.subr.mxu0 0.0
      %432 = vmatpush1.msra.mxu0 0.0
      %433 = vmatprep.subr.mxu0 0.0
      %434 = vmatpush1.msra.mxu0 0.0
      %435 = vmatprep.subr.mxu0 0.0
      %436 = vmatpush1.msra.mxu0 0.0
      %437 = vmatprep.subr.mxu0 0.0
      %438 = vmatpush1.msra.mxu0 0.0
      %439 = vmatprep.subr.mxu0 0.0
      %440 = vmatpush1.msra.mxu0 0.0
      %441 = vmatprep.subr.mxu0 0.0
      %442 = vmatpush1.msra.mxu0 0.0
      %443 = vmatprep.subr.mxu0 0.0
      %444 = vmatpush1.msra.mxu0 0.0
      %445 = vmatprep.subr.mxu0 0.0
      %446 = vmatpush1.msra.mxu0 0.0
      %447 = vmatprep.subr.mxu0 0.0
      %448 = vmatpush1.msra.mxu0 0.0
      %449 = vmatprep.subr.mxu0 0.0
      %450 = vmatpush1.msra.mxu0 0.0
      %451 = vmatprep.subr.mxu0 0.0
      %452 = vmatpush1.msra.mxu0 0.0
      %453 = vmatprep.subr.mxu0 0.0
      %454 = vmatpush1.msra.mxu0 0.0
      %455 = vmatprep.subr.mxu0 0.0
      %456 = vmatpush1.msra.mxu0 0.0
      %457 = vmatprep.subr.mxu0 0.0
      %458 = vmatpush1.msra.mxu0 0.0
      %459 = vmatprep.subr.mxu0 0.0
      %460 = vmatpush1.msra.mxu0 0.0
      %461 = vmatprep.subr.mxu0 0.0
      %462 = vmatpush1.msra.mxu0 0.0
      %463 = vmatprep.subr.mxu0 0.0
      %464 = vmatpush1.msra.mxu0 0.0
      %465 = vmatprep.subr.mxu0 0.0
      %466 = vmatpush1.msra.mxu0 0.0
      %467 = vmatprep.subr.mxu0 0.0
      %468 = vmatpush1.msra.mxu0 0.0
      %469 = vmatprep.subr.mxu0 0.0
      %470 = vmatpush1.msra.mxu0 0.0
      %471 = vmatprep.subr.mxu0 0.0
      %472 = vmatpush1.msra.mxu0 0.0
      %473 = vmatprep.subr.mxu0 0.0
      %474 = vmatpush1.msra.mxu0 0.0
      %475 = vmatprep.subr.mxu0 0.0
      %476 = vmatpush1.msra.mxu0 0.0
      %477 = vmatprep.mubr.f32.mxu0 0.0
      %478 = vmatmul.mubr.f32.gmra.mrb[0].mxu0 %v340
      %v479 = vpop.f32.mrb[0].mxu0
      %v480 = vadd.f32 0.0, %v479
      %v481 = vpop.f32.mrb[0].mxu0
      %v482 = vadd.f32 0.0, %v481
      %483 = vdwg.mxu0
      %v485 = vsel %vm338, %v302, 0
      %487 = vmatprep.subr.mxu0 %v299
      %488 = vmatpush1.msra.mxu0 %v298
      %489 = vmatprep.subr.mxu0 0.0
      %490 = vmatpush1.msra.mxu0 0.0
      %491 = vmatprep.subr.mxu0 0.0
      %492 = vmatpush1.msra.mxu0 0.0
      %493 = vmatprep.subr.mxu0 0.0
      %494 = vmatpush1.msra.mxu0 0.0
      %495 = vmatprep.subr.mxu0 0.0
      %496 = vmatpush1.msra.mxu0 0.0
      %497 = vmatprep.subr.mxu0 0.0
      %498 = vmatpush1.msra.mxu0 0.0
      %499 = vmatprep.subr.mxu0 0.0
      %500 = vmatpush1.msra.mxu0 0.0
      %501 = vmatprep.subr.mxu0 0.0
      %502 = vmatpush1.msra.mxu0 0.0
      %503 = vmatprep.subr.mxu0 0.0
      %504 = vmatpush1.msra.mxu0 0.0
      %505 = vmatprep.subr.mxu0 0.0
      %506 = vmatpush1.msra.mxu0 0.0
      %507 = vmatprep.subr.mxu0 0.0
      %508 = vmatpush1.msra.mxu0 0.0
      %509 = vmatprep.subr.mxu0 0.0
      %510 = vmatpush1.msra.mxu0 0.0
      %511 = vmatprep.subr.mxu0 0.0
      %512 = vmatpush1.msra.mxu0 0.0
      %513 = vmatprep.subr.mxu0 0.0
      %514 = vmatpush1.msra.mxu0 0.0
      %515 = vmatprep.subr.mxu0 0.0
      %516 = vmatpush1.msra.mxu0 0.0
      %517 = vmatprep.subr.mxu0 0.0
      %518 = vmatpush1.msra.mxu0 0.0
      %519 = vmatprep.subr.mxu0 0.0
      %520 = vmatpush1.msra.mxu0 0.0
      %521 = vmatprep.subr.mxu0 0.0
      %522 = vmatpush1.msra.mxu0 0.0
      %523 = vmatprep.subr.mxu0 0.0
      %524 = vmatpush1.msra.mxu0 0.0
      %525 = vmatprep.subr.mxu0 0.0
      %526 = vmatpush1.msra.mxu0 0.0
      %527 = vmatprep.subr.mxu0 0.0
      %528 = vmatpush1.msra.mxu0 0.0
      %529 = vmatprep.subr.mxu0 0.0
      %530 = vmatpush1.msra.mxu0 0.0
      %531 = vmatprep.subr.mxu0 0.0
      %532 = vmatpush1.msra.mxu0 0.0
      %533 = vmatprep.subr.mxu0 0.0
      %534 = vmatpush1.msra.mxu0 0.0
      %535 = vmatprep.subr.mxu0 0.0
      %536 = vmatpush1.msra.mxu0 0.0
      %537 = vmatprep.subr.mxu0 0.0
      %538 = vmatpush1.msra.mxu0 0.0
      %539 = vmatprep.subr.mxu0 0.0
      %540 = vmatpush1.msra.mxu0 0.0
      %541 = vmatprep.subr.mxu0 0.0
      %542 = vmatpush1.msra.mxu0 0.0
      %543 = vmatprep.subr.mxu0 0.0
      %544 = vmatpush1.msra.mxu0 0.0
      %545 = vmatprep.subr.mxu0 0.0
      %546 = vmatpush1.msra.mxu0 0.0
      %547 = vmatprep.subr.mxu0 0.0
      %548 = vmatpush1.msra.mxu0 0.0
      %549 = vmatprep.subr.mxu0 0.0
      %550 = vmatpush1.msra.mxu0 0.0
      %551 = vmatprep.mubr.f32.mxu0 0.0
      %552 = vmatmul.mubr.f32.gmra.mrb[0].mxu0 %v485
      %v553 = vpop.f32.mrb[0].mxu0
      %v554 = vadd.f32 %v409, %v553
      %v555 = vpop.f32.mrb[0].mxu0
      %v556 = vadd.f32 %v411, %v555
      %557 = vdwg.mxu0
      %558 = vmatprep.subr.mxu0 %v301
      %559 = vmatpush1.msra.mxu0 %v300
      %560 = vmatprep.subr.mxu0 0.0
      %561 = vmatpush1.msra.mxu0 0.0
      %562 = vmatprep.subr.mxu0 0.0
      %563 = vmatpush1.msra.mxu0 0.0
      %564 = vmatprep.subr.mxu0 0.0
      %565 = vmatpush1.msra.mxu0 0.0
      %566 = vmatprep.subr.mxu0 0.0
      %567 = vmatpush1.msra.mxu0 0.0
      %568 = vmatprep.subr.mxu0 0.0
      %569 = vmatpush1.msra.mxu0 0.0
      %570 = vmatprep.subr.mxu0 0.0
      %571 = vmatpush1.msra.mxu0 0.0
      %572 = vmatprep.subr.mxu0 0.0
      %573 = vmatpush1.msra.mxu0 0.0
      %574 = vmatprep.subr.mxu0 0.0
      %575 = vmatpush1.msra.mxu0 0.0
      %576 = vmatprep.subr.mxu0 0.0
      %577 = vmatpush1.msra.mxu0 0.0
      %578 = vmatprep.subr.mxu0 0.0
      %579 = vmatpush1.msra.mxu0 0.0
      %580 = vmatprep.subr.mxu0 0.0
      %581 = vmatpush1.msra.mxu0 0.0
      %582 = vmatprep.subr.mxu0 0.0
      %583 = vmatpush1.msra.mxu0 0.0
      %584 = vmatprep.subr.mxu0 0.0
      %585 = vmatpush1.msra.mxu0 0.0
      %586 = vmatprep.subr.mxu0 0.0
      %587 = vmatpush1.msra.mxu0 0.0
      %588 = vmatprep.subr.mxu0 0.0
      %589 = vmatpush1.msra.mxu0 0.0
      %590 = vmatprep.subr.mxu0 0.0
      %591 = vmatpush1.msra.mxu0 0.0
      %592 = vmatprep.subr.mxu0 0.0
      %593 = vmatpush1.msra.mxu0 0.0
      %594 = vmatprep.subr.mxu0 0.0
      %595 = vmatpush1.msra.mxu0 0.0
      %596 = vmatprep.subr.mxu0 0.0
      %597 = vmatpush1.msra.mxu0 0.0
      %598 = vmatprep.subr.mxu0 0.0
      %599 = vmatpush1.msra.mxu0 0.0
      %600 = vmatprep.subr.mxu0 0.0
      %601 = vmatpush1.msra.mxu0 0.0
      %602 = vmatprep.subr.mxu0 0.0
      %603 = vmatpush1.msra.mxu0 0.0
      %604 = vmatprep.subr.mxu0 0.0
      %605 = vmatpush1.msra.mxu0 0.0
      %606 = vmatprep.subr.mxu0 0.0
      %607 = vmatpush1.msra.mxu0 0.0
      %608 = vmatprep.subr.mxu0 0.0
      %609 = vmatpush1.msra.mxu0 0.0
      %610 = vmatprep.subr.mxu0 0.0
      %611 = vmatpush1.msra.mxu0 0.0
      %612 = vmatprep.subr.mxu0 0.0
      %613 = vmatpush1.msra.mxu0 0.0
      %614 = vmatprep.subr.mxu0 0.0
      %615 = vmatpush1.msra.mxu0 0.0
      %616 = vmatprep.subr.mxu0 0.0
      %617 = vmatpush1.msra.mxu0 0.0
      %618 = vmatprep.subr.mxu0 0.0
      %619 = vmatpush1.msra.mxu0 0.0
      %620 = vmatprep.subr.mxu0 0.0
      %621 = vmatpush1.msra.mxu0 0.0
      %622 = vmatprep.mubr.f32.mxu0 0.0
      %623 = vmatmul.mubr.f32.gmra.mrb[0].mxu0 %v485
      %v624 = vpop.f32.mrb[0].mxu0
      %v625 = vadd.f32 %v480, %v624
      %v626 = vpop.f32.mrb[0].mxu0
      %v627 = vadd.f32 %v482, %v626
      %628 = vdwg.mxu0
      %629 = vrot.lane.b32.xlu0 %v263, 15
      %v630 = vpop.permute.xlu0 %629
      %631 = vrot.lane.b32.xlu0 %v264, 15
      %v632 = vpop.permute.xlu0 %631
      %633 = vrot.lane.b32.xlu0 %v265, 15
      %v634 = vpop.permute.xlu0 %633
      %635 = vrot.lane.b32.xlu0 %v266, 15
      %v636 = vpop.permute.xlu0 %635
      %vm637 = vcmp.lt.s32.totalorder %v276, 15
      %v638 = vsel %vm637, %v634, %v636
      %v639 = vsel %vm637, %v632, %v634
      %v640 = vsel %vm637, %v630, %v632
      %v641 = vsel %vm637, %v636, %v630
      %v642 = vlaneseq
      %v643 = vshrl.u32 %v642, 7
      %v644 = vsub.s32 2, %v643
      %v645 = vrot.slane %v255, %v644
      %v646 = vlaneseq
      %v647 = vshrl.u32 %v646, 7
      %v648 = vsub.s32 2, %v647
      %v649 = vrot.slane %v256, %v648
      %v650 = vlaneseq
      %v651 = vshrl.u32 %v650, 7
      %v652 = vsub.s32 2, %v651
      %v653 = vrot.slane %v257, %v652
      %v654 = vlaneseq
      %v655 = vshrl.u32 %v654, 7
      %v656 = vsub.s32 2, %v655
      %v657 = vrot.slane %v258, %v656
      %v658 = vmul.f32 %v641, %v645
      %v659 = vmul.f32 %v640, %v649
      %v660 = vmul.f32 %v639, %v653
      %v661 = vmul.f32 %v638, %v657
      %s662 = scalar_lea.vmem %s1, 16
      %v663 = vld [vmem:[%s662] sm:$0xff]
      %v665 = vsel %vm338, %v663, 0
      %667 = vmatprep.subr.mxu0 %v659
      %668 = vmatpush1.msra.mxu0 %v658
      %669 = vmatprep.subr.mxu0 0.0
      %670 = vmatpush1.msra.mxu0 0.0
      %671 = vmatprep.subr.mxu0 0.0
      %672 = vmatpush1.msra.mxu0 0.0
      %673 = vmatprep.subr.mxu0 0.0
      %674 = vmatpush1.msra.mxu0 0.0
      %675 = vmatprep.subr.mxu0 0.0
      %676 = vmatpush1.msra.mxu0 0.0
      %677 = vmatprep.subr.mxu0 0.0
      %678 = vmatpush1.msra.mxu0 0.0
      %679 = vmatprep.subr.mxu0 0.0
      %680 = vmatpush1.msra.mxu0 0.0
      %681 = vmatprep.subr.mxu0 0.0
      %682 = vmatpush1.msra.mxu0 0.0
      %683 = vmatprep.subr.mxu0 0.0
      %684 = vmatpush1.msra.mxu0 0.0
      %685 = vmatprep.subr.mxu0 0.0
      %686 = vmatpush1.msra.mxu0 0.0
      %687 = vmatprep.subr.mxu0 0.0
      %688 = vmatpush1.msra.mxu0 0.0
      %689 = vmatprep.subr.mxu0 0.0
      %690 = vmatpush1.msra.mxu0 0.0
      %691 = vmatprep.subr.mxu0 0.0
      %692 = vmatpush1.msra.mxu0 0.0
      %693 = vmatprep.subr.mxu0 0.0
      %694 = vmatpush1.msra.mxu0 0.0
      %695 = vmatprep.subr.mxu0 0.0
      %696 = vmatpush1.msra.mxu0 0.0
      %697 = vmatprep.subr.mxu0 0.0
      %698 = vmatpush1.msra.mxu0 0.0
      %699 = vmatprep.subr.mxu0 0.0
      %700 = vmatpush1.msra.mxu0 0.0
      %701 = vmatprep.subr.mxu0 0.0
      %702 = vmatpush1.msra.mxu0 0.0
      %703 = vmatprep.subr.mxu0 0.0
      %704 = vmatpush1.msra.mxu0 0.0
      %705 = vmatprep.subr.mxu0 0.0
      %706 = vmatpush1.msra.mxu0 0.0
      %707 = vmatprep.subr.mxu0 0.0
      %708 = vmatpush1.msra.mxu0 0.0
      %709 = vmatprep.subr.mxu0 0.0
      %710 = vmatpush1.msra.mxu0 0.0
      %711 = vmatprep.subr.mxu0 0.0
      %712 = vmatpush1.msra.mxu0 0.0
      %713 = vmatprep.subr.mxu0 0.0
      %714 = vmatpush1.msra.mxu0 0.0
      %715 = vmatprep.subr.mxu0 0.0
      %716 = vmatpush1.msra.mxu0 0.0
      %717 = vmatprep.subr.mxu0 0.0
      %718 = vmatpush1.msra.mxu0 0.0
      %719 = vmatprep.subr.mxu0 0.0
      %720 = vmatpush1.msra.mxu0 0.0
      %721 = vmatprep.subr.mxu0 0.0
      %722 = vmatpush1.msra.mxu0 0.0
      %723 = vmatprep.subr.mxu0 0.0
      %724 = vmatpush1.msra.mxu0 0.0
      %725 = vmatprep.subr.mxu0 0.0
      %726 = vmatpush1.msra.mxu0 0.0
      %727 = vmatprep.subr.mxu0 0.0
      %728 = vmatpush1.msra.mxu0 0.0
      %729 = vmatprep.subr.mxu0 0.0
      %730 = vmatpush1.msra.mxu0 0.0
      %731 = vmatprep.mubr.f32.mxu0 0.0
      %732 = vmatmul.mubr.f32.gmra.mrb[0].mxu0 %v665
      %v733 = vpop.f32.mrb[0].mxu0
      %v734 = vadd.f32 0.0, %v733
      %v735 = vpop.f32.mrb[0].mxu0
      %v736 = vadd.f32 0.0, %v735
      %737 = vdwg.mxu0
      %738 = vmatprep.subr.mxu0 %v661
      %739 = vmatpush1.msra.mxu0 %v660
      %740 = vmatprep.subr.mxu0 0.0
      %741 = vmatpush1.msra.mxu0 0.0
      %742 = vmatprep.subr.mxu0 0.0
      %743 = vmatpush1.msra.mxu0 0.0
      %744 = vmatprep.subr.mxu0 0.0
      %745 = vmatpush1.msra.mxu0 0.0
      %746 = vmatprep.subr.mxu0 0.0
      %747 = vmatpush1.msra.mxu0 0.0
      %748 = vmatprep.subr.mxu0 0.0
      %749 = vmatpush1.msra.mxu0 0.0
      %750 = vmatprep.subr.mxu0 0.0
      %751 = vmatpush1.msra.mxu0 0.0
      %752 = vmatprep.subr.mxu0 0.0
      %753 = vmatpush1.msra.mxu0 0.0
      %754 = vmatprep.subr.mxu0 0.0
      %755 = vmatpush1.msra.mxu0 0.0
      %756 = vmatprep.subr.mxu0 0.0
      %757 = vmatpush1.msra.mxu0 0.0
      %758 = vmatprep.subr.mxu0 0.0
      %759 = vmatpush1.msra.mxu0 0.0
      %760 = vmatprep.subr.mxu0 0.0
      %761 = vmatpush1.msra.mxu0 0.0
      %762 = vmatprep.subr.mxu0 0.0
      %763 = vmatpush1.msra.mxu0 0.0
      %764 = vmatprep.subr.mxu0 0.0
      %765 = vmatpush1.msra.mxu0 0.0
      %766 = vmatprep.subr.mxu0 0.0
      %767 = vmatpush1.msra.mxu0 0.0
      %768 = vmatprep.subr.mxu0 0.0
      %769 = vmatpush1.msra.mxu0 0.0
      %770 = vmatprep.subr.mxu0 0.0
      %771 = vmatpush1.msra.mxu0 0.0
      %772 = vmatprep.subr.mxu0 0.0
      %773 = vmatpush1.msra.mxu0 0.0
      %774 = vmatprep.subr.mxu0 0.0
      %775 = vmatpush1.msra.mxu0 0.0
      %776 = vmatprep.subr.mxu0 0.0
      %777 = vmatpush1.msra.mxu0 0.0
      %778 = vmatprep.subr.mxu0 0.0
      %779 = vmatpush1.msra.mxu0 0.0
      %780 = vmatprep.subr.mxu0 0.0
      %781 = vmatpush1.msra.mxu0 0.0
      %782 = vmatprep.subr.mxu0 0.0
      %783 = vmatpush1.msra.mxu0 0.0
      %784 = vmatprep.subr.mxu0 0.0
      %785 = vmatpush1.msra.mxu0 0.0
      %786 = vmatprep.subr.mxu0 0.0
      %787 = vmatpush1.msra.mxu0 0.0
      %788 = vmatprep.subr.mxu0 0.0
      %789 = vmatpush1.msra.mxu0 0.0
      %790 = vmatprep.subr.mxu0 0.0
      %791 = vmatpush1.msra.mxu0 0.0
      %792 = vmatprep.subr.mxu0 0.0
      %793 = vmatpush1.msra.mxu0 0.0
      %794 = vmatprep.subr.mxu0 0.0
      %795 = vmatpush1.msra.mxu0 0.0
      %796 = vmatprep.subr.mxu0 0.0
      %797 = vmatpush1.msra.mxu0 0.0
      %798 = vmatprep.subr.mxu0 0.0
      %799 = vmatpush1.msra.mxu0 0.0
      %800 = vmatprep.subr.mxu0 0.0
      %801 = vmatpush1.msra.mxu0 0.0
      %802 = vmatprep.mubr.f32.mxu0 0.0
      %803 = vmatmul.mubr.f32.gmra.mrb[0].mxu0 %v665
      %v804 = vpop.f32.mrb[0].mxu0
      %v805 = vadd.f32 0.0, %v804
      %v806 = vpop.f32.mrb[0].mxu0
      %v807 = vadd.f32 0.0, %v806
      %808 = vdwg.mxu0
      %v809 = vadd.f32 %v554, %v734
      %v810 = vadd.f32 %v556, %v736
      %v811 = vadd.f32 %v625, %v805
      %v812 = vadd.f32 %v627, %v807
      %813 = vrot.lane.b32.xlu0 %v263, 1
      %v814 = vpop.permute.xlu0 %813
      %815 = vrot.lane.b32.xlu0 %v264, 1
      %v816 = vpop.permute.xlu0 %815
      %817 = vrot.lane.b32.xlu0 %v265, 1
      %v818 = vpop.permute.xlu0 %817
      %819 = vrot.lane.b32.xlu0 %v266, 1
      %v820 = vpop.permute.xlu0 %819
      %vm821 = vcmp.lt.s32.totalorder %v276, 1
      %v822 = vsel %vm821, %v818, %v820
      %v823 = vsel %vm821, %v816, %v818
      %v824 = vsel %vm821, %v814, %v816
      %v825 = vsel %vm821, %v820, %v814
      %v826 = vlaneseq
      %v827 = vshrl.u32 %v826, 7
      %v828 = vsub.s32 3, %v827
      %v829 = vrot.slane %v255, %v828
      %v830 = vlaneseq
      %v831 = vshrl.u32 %v830, 7
      %v832 = vsub.s32 3, %v831
      %v833 = vrot.slane %v256, %v832
      %v834 = vlaneseq
      %v835 = vshrl.u32 %v834, 7
      %v836 = vsub.s32 3, %v835
      %v837 = vrot.slane %v257, %v836
      %v838 = vlaneseq
      %v839 = vshrl.u32 %v838, 7
      %v840 = vsub.s32 3, %v839
      %v841 = vrot.slane %v258, %v840
      %v842 = vmul.f32 %v825, %v829
      %v843 = vmul.f32 %v824, %v833
      %v844 = vmul.f32 %v823, %v837
      %v845 = vmul.f32 %v822, %v841
      %s846 = scalar_lea.vmem %s1, 24
      %v847 = vld [vmem:[%s846] sm:$0xff]
      %v849 = vsel %vm338, %v847, 0
      %851 = vmatprep.subr.mxu0 %v843
      %852 = vmatpush1.msra.mxu0 %v842
      %853 = vmatprep.subr.mxu0 0.0
      %854 = vmatpush1.msra.mxu0 0.0
      %855 = vmatprep.subr.mxu0 0.0
      %856 = vmatpush1.msra.mxu0 0.0
      %857 = vmatprep.subr.mxu0 0.0
      %858 = vmatpush1.msra.mxu0 0.0
      %859 = vmatprep.subr.mxu0 0.0
      %860 = vmatpush1.msra.mxu0 0.0
      %861 = vmatprep.subr.mxu0 0.0
      %862 = vmatpush1.msra.mxu0 0.0
      %863 = vmatprep.subr.mxu0 0.0
      %864 = vmatpush1.msra.mxu0 0.0
      %865 = vmatprep.subr.mxu0 0.0
      %866 = vmatpush1.msra.mxu0 0.0
      %867 = vmatprep.subr.mxu0 0.0
      %868 = vmatpush1.msra.mxu0 0.0
      %869 = vmatprep.subr.mxu0 0.0
      %870 = vmatpush1.msra.mxu0 0.0
      %871 = vmatprep.subr.mxu0 0.0
      %872 = vmatpush1.msra.mxu0 0.0
      %873 = vmatprep.subr.mxu0 0.0
      %874 = vmatpush1.msra.mxu0 0.0
      %875 = vmatprep.subr.mxu0 0.0
      %876 = vmatpush1.msra.mxu0 0.0
      %877 = vmatprep.subr.mxu0 0.0
      %878 = vmatpush1.msra.mxu0 0.0
      %879 = vmatprep.subr.mxu0 0.0
      %880 = vmatpush1.msra.mxu0 0.0
      %881 = vmatprep.subr.mxu0 0.0
      %882 = vmatpush1.msra.mxu0 0.0
      %883 = vmatprep.subr.mxu0 0.0
      %884 = vmatpush1.msra.mxu0 0.0
      %885 = vmatprep.subr.mxu0 0.0
      %886 = vmatpush1.msra.mxu0 0.0
      %887 = vmatprep.subr.mxu0 0.0
      %888 = vmatpush1.msra.mxu0 0.0
      %889 = vmatprep.subr.mxu0 0.0
      %890 = vmatpush1.msra.mxu0 0.0
      %891 = vmatprep.subr.mxu0 0.0
      %892 = vmatpush1.msra.mxu0 0.0
      %893 = vmatprep.subr.mxu0 0.0
      %894 = vmatpush1.msra.mxu0 0.0
      %895 = vmatprep.subr.mxu0 0.0
      %896 = vmatpush1.msra.mxu0 0.0
      %897 = vmatprep.subr.mxu0 0.0
      %898 = vmatpush1.msra.mxu0 0.0
      %899 = vmatprep.subr.mxu0 0.0
      %900 = vmatpush1.msra.mxu0 0.0
      %901 = vmatprep.subr.mxu0 0.0
      %902 = vmatpush1.msra.mxu0 0.0
      %903 = vmatprep.subr.mxu0 0.0
      %904 = vmatpush1.msra.mxu0 0.0
      %905 = vmatprep.subr.mxu0 0.0
      %906 = vmatpush1.msra.mxu0 0.0
      %907 = vmatprep.subr.mxu0 0.0
      %908 = vmatpush1.msra.mxu0 0.0
      %909 = vmatprep.subr.mxu0 0.0
      %910 = vmatpush1.msra.mxu0 0.0
      %911 = vmatprep.subr.mxu0 0.0
      %912 = vmatpush1.msra.mxu0 0.0
      %913 = vmatprep.subr.mxu0 0.0
      %914 = vmatpush1.msra.mxu0 0.0
      %915 = vmatprep.mubr.f32.mxu0 0.0
      %916 = vmatmul.mubr.f32.gmra.mrb[0].mxu0 %v849
      %v917 = vpop.f32.mrb[0].mxu0
      %v918 = vadd.f32 0.0, %v917
      %v919 = vpop.f32.mrb[0].mxu0
      %v920 = vadd.f32 0.0, %v919
      %921 = vdwg.mxu0
      %922 = vmatprep.subr.mxu0 %v845
      %923 = vmatpush1.msra.mxu0 %v844
      %924 = vmatprep.subr.mxu0 0.0
      %925 = vmatpush1.msra.mxu0 0.0
      %926 = vmatprep.subr.mxu0 0.0
      %927 = vmatpush1.msra.mxu0 0.0
      %928 = vmatprep.subr.mxu0 0.0
      %929 = vmatpush1.msra.mxu0 0.0
      %930 = vmatprep.subr.mxu0 0.0
      %931 = vmatpush1.msra.mxu0 0.0
      %932 = vmatprep.subr.mxu0 0.0
      %933 = vmatpush1.msra.mxu0 0.0
      %934 = vmatprep.subr.mxu0 0.0
      %935 = vmatpush1.msra.mxu0 0.0
      %936 = vmatprep.subr.mxu0 0.0
      %937 = vmatpush1.msra.mxu0 0.0
      %938 = vmatprep.subr.mxu0 0.0
      %939 = vmatpush1.msra.mxu0 0.0
      %940 = vmatprep.subr.mxu0 0.0
      %941 = vmatpush1.msra.mxu0 0.0
      %942 = vmatprep.subr.mxu0 0.0
      %943 = vmatpush1.msra.mxu0 0.0
      %944 = vmatprep.subr.mxu0 0.0
      %945 = vmatpush1.msra.mxu0 0.0
      %946 = vmatprep.subr.mxu0 0.0
      %947 = vmatpush1.msra.mxu0 0.0
      %948 = vmatprep.subr.mxu0 0.0
      %949 = vmatpush1.msra.mxu0 0.0
      %950 = vmatprep.subr.mxu0 0.0
      %951 = vmatpush1.msra.mxu0 0.0
      %952 = vmatprep.subr.mxu0 0.0
      %953 = vmatpush1.msra.mxu0 0.0
      %954 = vmatprep.subr.mxu0 0.0
      %955 = vmatpush1.msra.mxu0 0.0
      %956 = vmatprep.subr.mxu0 0.0
      %957 = vmatpush1.msra.mxu0 0.0
      %958 = vmatprep.subr.mxu0 0.0
      %959 = vmatpush1.msra.mxu0 0.0
      %960 = vmatprep.subr.mxu0 0.0
      %961 = vmatpush1.msra.mxu0 0.0
      %962 = vmatprep.subr.mxu0 0.0
      %963 = vmatpush1.msra.mxu0 0.0
      %964 = vmatprep.subr.mxu0 0.0
      %965 = vmatpush1.msra.mxu0 0.0
      %966 = vmatprep.subr.mxu0 0.0
      %967 = vmatpush1.msra.mxu0 0.0
      %968 = vmatprep.subr.mxu0 0.0
      %969 = vmatpush1.msra.mxu0 0.0
      %970 = vmatprep.subr.mxu0 0.0
      %971 = vmatpush1.msra.mxu0 0.0
      %972 = vmatprep.subr.mxu0 0.0
      %973 = vmatpush1.msra.mxu0 0.0
      %974 = vmatprep.subr.mxu0 0.0
      %975 = vmatpush1.msra.mxu0 0.0
      %976 = vmatprep.subr.mxu0 0.0
      %977 = vmatpush1.msra.mxu0 0.0
      %978 = vmatprep.subr.mxu0 0.0
      %979 = vmatpush1.msra.mxu0 0.0
      %980 = vmatprep.subr.mxu0 0.0
      %981 = vmatpush1.msra.mxu0 0.0
      %982 = vmatprep.subr.mxu0 0.0
      %983 = vmatpush1.msra.mxu0 0.0
      %984 = vmatprep.subr.mxu0 0.0
      %985 = vmatpush1.msra.mxu0 0.0
      %986 = vmatprep.mubr.f32.mxu0 0.0
      %987 = vmatmul.mubr.f32.gmra.mrb[0].mxu0 %v849
      %v988 = vpop.f32.mrb[0].mxu0
      %v989 = vadd.f32 0.0, %v988
      %v990 = vpop.f32.mrb[0].mxu0
      %v991 = vadd.f32 0.0, %v990
      %992 = vdwg.mxu0
      %v993 = vadd.f32 %v809, %v918
      %v994 = vadd.f32 %v810, %v920
      %v995 = vadd.f32 %v811, %v989
      %v996 = vadd.f32 %v812, %v991
      %s997 = scalar_lea.vmem %s1, 32
      %v998 = vld [vmem:[%s997] sm:$0xff]
      %v1000 = vsel %vm338, %v998, 0
      %1002 = vmatprep.subr.mxu0 %v264
      %1003 = vmatpush1.msra.mxu0 %v263
      %1004 = vmatprep.subr.mxu0 0.0
      %1005 = vmatpush1.msra.mxu0 0.0
      %1006 = vmatprep.subr.mxu0 0.0
      %1007 = vmatpush1.msra.mxu0 0.0
      %1008 = vmatprep.subr.mxu0 0.0
      %1009 = vmatpush1.msra.mxu0 0.0
      %1010 = vmatprep.subr.mxu0 0.0
      %1011 = vmatpush1.msra.mxu0 0.0
      %1012 = vmatprep.subr.mxu0 0.0
      %1013 = vmatpush1.msra.mxu0 0.0
      %1014 = vmatprep.subr.mxu0 0.0
      %1015 = vmatpush1.msra.mxu0 0.0
      %1016 = vmatprep.subr.mxu0 0.0
      %1017 = vmatpush1.msra.mxu0 0.0
      %1018 = vmatprep.subr.mxu0 0.0
      %1019 = vmatpush1.msra.mxu0 0.0
      %1020 = vmatprep.subr.mxu0 0.0
      %1021 = vmatpush1.msra.mxu0 0.0
      %1022 = vmatprep.subr.mxu0 0.0
      %1023 = vmatpush1.msra.mxu0 0.0
      %1024 = vmatprep.subr.mxu0 0.0
      %1025 = vmatpush1.msra.mxu0 0.0
      %1026 = vmatprep.subr.mxu0 0.0
      %1027 = vmatpush1.msra.mxu0 0.0
      %1028 = vmatprep.subr.mxu0 0.0
      %1029 = vmatpush1.msra.mxu0 0.0
      %1030 = vmatprep.subr.mxu0 0.0
      %1031 = vmatpush1.msra.mxu0 0.0
      %1032 = vmatprep.subr.mxu0 0.0
      %1033 = vmatpush1.msra.mxu0 0.0
      %1034 = vmatprep.subr.mxu0 0.0
      %1035 = vmatpush1.msra.mxu0 0.0
      %1036 = vmatprep.subr.mxu0 0.0
      %1037 = vmatpush1.msra.mxu0 0.0
      %1038 = vmatprep.subr.mxu0 0.0
      %1039 = vmatpush1.msra.mxu0 0.0
      %1040 = vmatprep.subr.mxu0 0.0
      %1041 = vmatpush1.msra.mxu0 0.0
      %1042 = vmatprep.subr.mxu0 0.0
      %1043 = vmatpush1.msra.mxu0 0.0
      %1044 = vmatprep.subr.mxu0 0.0
      %1045 = vmatpush1.msra.mxu0 0.0
      %1046 = vmatprep.subr.mxu0 0.0
      %1047 = vmatpush1.msra.mxu0 0.0
      %1048 = vmatprep.subr.mxu0 0.0
      %1049 = vmatpush1.msra.mxu0 0.0
      %1050 = vmatprep.subr.mxu0 0.0
      %1051 = vmatpush1.msra.mxu0 0.0
      %1052 = vmatprep.subr.mxu0 0.0
      %1053 = vmatpush1.msra.mxu0 0.0
      %1054 = vmatprep.subr.mxu0 0.0
      %1055 = vmatpush1.msra.mxu0 0.0
      %1056 = vmatprep.subr.mxu0 0.0
      %1057 = vmatpush1.msra.mxu0 0.0
      %1058 = vmatprep.subr.mxu0 0.0
      %1059 = vmatpush1.msra.mxu0 0.0
      %1060 = vmatprep.subr.mxu0 0.0
      %1061 = vmatpush1.msra.mxu0 0.0
      %1062 = vmatprep.subr.mxu0 0.0
      %1063 = vmatpush1.msra.mxu0 0.0
      %1064 = vmatprep.subr.mxu0 0.0
      %1065 = vmatpush1.msra.mxu0 0.0
      %1066 = vmatprep.mubr.f32.mxu0 0.0
      %1067 = vmatmul.mubr.f32.gmra.mrb[0].mxu0 %v1000
      %v1068 = vpop.f32.mrb[0].mxu0
      %v1069 = vadd.f32 0.0, %v1068
      %v1070 = vpop.f32.mrb[0].mxu0
      %v1071 = vadd.f32 0.0, %v1070
      %1072 = vdwg.mxu0
      %1073 = vmatprep.subr.mxu0 %v266
      %1074 = vmatpush1.msra.mxu0 %v265
      %1075 = vmatprep.subr.mxu0 0.0
      %1076 = vmatpush1.msra.mxu0 0.0
      %1077 = vmatprep.subr.mxu0 0.0
      %1078 = vmatpush1.msra.mxu0 0.0
      %1079 = vmatprep.subr.mxu0 0.0
      %1080 = vmatpush1.msra.mxu0 0.0
      %1081 = vmatprep.subr.mxu0 0.0
      %1082 = vmatpush1.msra.mxu0 0.0
      %1083 = vmatprep.subr.mxu0 0.0
      %1084 = vmatpush1.msra.mxu0 0.0
      %1085 = vmatprep.subr.mxu0 0.0
      %1086 = vmatpush1.msra.mxu0 0.0
      %1087 = vmatprep.subr.mxu0 0.0
      %1088 = vmatpush1.msra.mxu0 0.0
      %1089 = vmatprep.subr.mxu0 0.0
      %1090 = vmatpush1.msra.mxu0 0.0
      %1091 = vmatprep.subr.mxu0 0.0
      %1092 = vmatpush1.msra.mxu0 0.0
      %1093 = vmatprep.subr.mxu0 0.0
      %1094 = vmatpush1.msra.mxu0 0.0
      %1095 = vmatprep.subr.mxu0 0.0
      %1096 = vmatpush1.msra.mxu0 0.0
      %1097 = vmatprep.subr.mxu0 0.0
      %1098 = vmatpush1.msra.mxu0 0.0
      %1099 = vmatprep.subr.mxu0 0.0
      %1100 = vmatpush1.msra.mxu0 0.0
      %1101 = vmatprep.subr.mxu0 0.0
      %1102 = vmatpush1.msra.mxu0 0.0
      %1103 = vmatprep.subr.mxu0 0.0
      %1104 = vmatpush1.msra.mxu0 0.0
      %1105 = vmatprep.subr.mxu0 0.0
      %1106 = vmatpush1.msra.mxu0 0.0
      %1107 = vmatprep.subr.mxu0 0.0
      %1108 = vmatpush1.msra.mxu0 0.0
      %1109 = vmatprep.subr.mxu0 0.0
      %1110 = vmatpush1.msra.mxu0 0.0
      %1111 = vmatprep.subr.mxu0 0.0
      %1112 = vmatpush1.msra.mxu0 0.0
      %1113 = vmatprep.subr.mxu0 0.0
      %1114 = vmatpush1.msra.mxu0 0.0
      %1115 = vmatprep.subr.mxu0 0.0
      %1116 = vmatpush1.msra.mxu0 0.0
      %1117 = vmatprep.subr.mxu0 0.0
      %1118 = vmatpush1.msra.mxu0 0.0
      %1119 = vmatprep.subr.mxu0 0.0
      %1120 = vmatpush1.msra.mxu0 0.0
      %1121 = vmatprep.subr.mxu0 0.0
      %1122 = vmatpush1.msra.mxu0 0.0
      %1123 = vmatprep.subr.mxu0 0.0
      %1124 = vmatpush1.msra.mxu0 0.0
      %1125 = vmatprep.subr.mxu0 0.0
      %1126 = vmatpush1.msra.mxu0 0.0
      %1127 = vmatprep.subr.mxu0 0.0
      %1128 = vmatpush1.msra.mxu0 0.0
      %1129 = vmatprep.subr.mxu0 0.0
      %1130 = vmatpush1.msra.mxu0 0.0
      %1131 = vmatprep.subr.mxu0 0.0
      %1132 = vmatpush1.msra.mxu0 0.0
      %1133 = vmatprep.subr.mxu0 0.0
      %1134 = vmatpush1.msra.mxu0 0.0
      %1135 = vmatprep.subr.mxu0 0.0
      %1136 = vmatpush1.msra.mxu0 0.0
      %1137 = vmatprep.mubr.f32.mxu0 0.0
      %1138 = vmatmul.mubr.f32.gmra.mrb[0].mxu0 %v1000
      %v1139 = vpop.f32.mrb[0].mxu0
      %v1140 = vadd.f32 0.0, %v1139
      %v1141 = vpop.f32.mrb[0].mxu0
      %v1142 = vadd.f32 0.0, %v1141
      %1143 = vdwg.mxu0
      %v1144 = vadd.f32 %v993, %v1069
      %v1145 = vadd.f32 %v994, %v1071
      %v1146 = vadd.f32 %v995, %v1140
      %v1147 = vadd.f32 %v996, %v1142
      %1148 = vrot.lane.b32.xlu0 %v263, 127
      %v1149 = vpop.permute.xlu0 %1148
      %1150 = vrot.lane.b32.xlu0 %v264, 127
      %v1151 = vpop.permute.xlu0 %1150
      %1152 = vrot.lane.b32.xlu0 %v265, 127
      %v1153 = vpop.permute.xlu0 %1152
      %1154 = vrot.lane.b32.xlu0 %v266, 127
      %v1155 = vpop.permute.xlu0 %1154
      %vm1156 = vcmp.lt.s32.totalorder %v276, 127
      %v1157 = vsel %vm1156, %v1153, %v1155
      %v1158 = vsel %vm1156, %v1151, %v1153
      %v1159 = vsel %vm1156, %v1149, %v1151
      %v1160 = vsel %vm1156, %v1155, %v1149
      %v1161 = vlaneseq
      %v1162 = vshrl.u32 %v1161, 7
      %v1163 = vsub.s32 5, %v1162
      %v1164 = vrot.slane %v255, %v1163
      %v1165 = vlaneseq
      %v1166 = vshrl.u32 %v1165, 7
      %v1167 = vsub.s32 5, %v1166
      %v1168 = vrot.slane %v256, %v1167
      %v1169 = vlaneseq
      %v1170 = vshrl.u32 %v1169, 7
      %v1171 = vsub.s32 5, %v1170
      %v1172 = vrot.slane %v257, %v1171
      %v1173 = vlaneseq
      %v1174 = vshrl.u32 %v1173, 7
      %v1175 = vsub.s32 5, %v1174
      %v1176 = vrot.slane %v258, %v1175
      %v1177 = vmul.f32 %v1159, %v1164
      %v1178 = vmul.f32 %v1158, %v1168
      %v1179 = vmul.f32 %v1157, %v1172
      %v1180 = vmul.f32 %v1160, %v1176
      %s1181 = scalar_lea.vmem %s1, 40
      %v1182 = vld [vmem:[%s1181] sm:$0xff]
      %v1184 = vsel %vm338, %v1182, 0
      %1186 = vmatprep.subr.mxu0 %v1178
      %1187 = vmatpush1.msra.mxu0 %v1177
      %1188 = vmatprep.subr.mxu0 0.0
      %1189 = vmatpush1.msra.mxu0 0.0
      %1190 = vmatprep.subr.mxu0 0.0
      %1191 = vmatpush1.msra.mxu0 0.0
      %1192 = vmatprep.subr.mxu0 0.0
      %1193 = vmatpush1.msra.mxu0 0.0
      %1194 = vmatprep.subr.mxu0 0.0
      %1195 = vmatpush1.msra.mxu0 0.0
      %1196 = vmatprep.subr.mxu0 0.0
      %1197 = vmatpush1.msra.mxu0 0.0
      %1198 = vmatprep.subr.mxu0 0.0
      %1199 = vmatpush1.msra.mxu0 0.0
      %1200 = vmatprep.subr.mxu0 0.0
      %1201 = vmatpush1.msra.mxu0 0.0
      %1202 = vmatprep.subr.mxu0 0.0
      %1203 = vmatpush1.msra.mxu0 0.0
      %1204 = vmatprep.subr.mxu0 0.0
      %1205 = vmatpush1.msra.mxu0 0.0
      %1206 = vmatprep.subr.mxu0 0.0
      %1207 = vmatpush1.msra.mxu0 0.0
      %1208 = vmatprep.subr.mxu0 0.0
      %1209 = vmatpush1.msra.mxu0 0.0
      %1210 = vmatprep.subr.mxu0 0.0
      %1211 = vmatpush1.msra.mxu0 0.0
      %1212 = vmatprep.subr.mxu0 0.0
      %1213 = vmatpush1.msra.mxu0 0.0
      %1214 = vmatprep.subr.mxu0 0.0
      %1215 = vmatpush1.msra.mxu0 0.0
      %1216 = vmatprep.subr.mxu0 0.0
      %1217 = vmatpush1.msra.mxu0 0.0
      %1218 = vmatprep.subr.mxu0 0.0
      %1219 = vmatpush1.msra.mxu0 0.0
      %1220 = vmatprep.subr.mxu0 0.0
      %1221 = vmatpush1.msra.mxu0 0.0
      %1222 = vmatprep.subr.mxu0 0.0
      %1223 = vmatpush1.msra.mxu0 0.0
      %1224 = vmatprep.subr.mxu0 0.0
      %1225 = vmatpush1.msra.mxu0 0.0
      %1226 = vmatprep.subr.mxu0 0.0
      %1227 = vmatpush1.msra.mxu0 0.0
      %1228 = vmatprep.subr.mxu0 0.0
      %1229 = vmatpush1.msra.mxu0 0.0
      %1230 = vmatprep.subr.mxu0 0.0
      %1231 = vmatpush1.msra.mxu0 0.0
      %1232 = vmatprep.subr.mxu0 0.0
      %1233 = vmatpush1.msra.mxu0 0.0
      %1234 = vmatprep.subr.mxu0 0.0
      %1235 = vmatpush1.msra.mxu0 0.0
      %1236 = vmatprep.subr.mxu0 0.0
      %1237 = vmatpush1.msra.mxu0 0.0
      %1238 = vmatprep.subr.mxu0 0.0
      %1239 = vmatpush1.msra.mxu0 0.0
      %1240 = vmatprep.subr.mxu0 0.0
      %1241 = vmatpush1.msra.mxu0 0.0
      %1242 = vmatprep.subr.mxu0 0.0
      %1243 = vmatpush1.msra.mxu0 0.0
      %1244 = vmatprep.subr.mxu0 0.0
      %1245 = vmatpush1.msra.mxu0 0.0
      %1246 = vmatprep.subr.mxu0 0.0
      %1247 = vmatpush1.msra.mxu0 0.0
      %1248 = vmatprep.subr.mxu0 0.0
      %1249 = vmatpush1.msra.mxu0 0.0
      %1250 = vmatprep.mubr.f32.mxu0 0.0
      %1251 = vmatmul.mubr.f32.gmra.mrb[0].mxu0 %v1184
      %v1252 = vpop.f32.mrb[0].mxu0
      %v1253 = vadd.f32 0.0, %v1252
      %v1254 = vpop.f32.mrb[0].mxu0
      %v1255 = vadd.f32 0.0, %v1254
      %1256 = vdwg.mxu0
      %1257 = vmatprep.subr.mxu0 %v1180
      %1258 = vmatpush1.msra.mxu0 %v1179
      %1259 = vmatprep.subr.mxu0 0.0
      %1260 = vmatpush1.msra.mxu0 0.0
      %1261 = vmatprep.subr.mxu0 0.0
      %1262 = vmatpush1.msra.mxu0 0.0
      %1263 = vmatprep.subr.mxu0 0.0
      %1264 = vmatpush1.msra.mxu0 0.0
      %1265 = vmatprep.subr.mxu0 0.0
      %1266 = vmatpush1.msra.mxu0 0.0
      %1267 = vmatprep.subr.mxu0 0.0
      %1268 = vmatpush1.msra.mxu0 0.0
      %1269 = vmatprep.subr.mxu0 0.0
      %1270 = vmatpush1.msra.mxu0 0.0
      %1271 = vmatprep.subr.mxu0 0.0
      %1272 = vmatpush1.msra.mxu0 0.0
      %1273 = vmatprep.subr.mxu0 0.0
      %1274 = vmatpush1.msra.mxu0 0.0
      %1275 = vmatprep.subr.mxu0 0.0
      %1276 = vmatpush1.msra.mxu0 0.0
      %1277 = vmatprep.subr.mxu0 0.0
      %1278 = vmatpush1.msra.mxu0 0.0
      %1279 = vmatprep.subr.mxu0 0.0
      %1280 = vmatpush1.msra.mxu0 0.0
      %1281 = vmatprep.subr.mxu0 0.0
      %1282 = vmatpush1.msra.mxu0 0.0
      %1283 = vmatprep.subr.mxu0 0.0
      %1284 = vmatpush1.msra.mxu0 0.0
      %1285 = vmatprep.subr.mxu0 0.0
      %1286 = vmatpush1.msra.mxu0 0.0
      %1287 = vmatprep.subr.mxu0 0.0
      %1288 = vmatpush1.msra.mxu0 0.0
      %1289 = vmatprep.subr.mxu0 0.0
      %1290 = vmatpush1.msra.mxu0 0.0
      %1291 = vmatprep.subr.mxu0 0.0
      %1292 = vmatpush1.msra.mxu0 0.0
      %1293 = vmatprep.subr.mxu0 0.0
      %1294 = vmatpush1.msra.mxu0 0.0
      %1295 = vmatprep.subr.mxu0 0.0
      %1296 = vmatpush1.msra.mxu0 0.0
      %1297 = vmatprep.subr.mxu0 0.0
      %1298 = vmatpush1.msra.mxu0 0.0
      %1299 = vmatprep.subr.mxu0 0.0
      %1300 = vmatpush1.msra.mxu0 0.0
      %1301 = vmatprep.subr.mxu0 0.0
      %1302 = vmatpush1.msra.mxu0 0.0
      %1303 = vmatprep.subr.mxu0 0.0
      %1304 = vmatpush1.msra.mxu0 0.0
      %1305 = vmatprep.subr.mxu0 0.0
      %1306 = vmatpush1.msra.mxu0 0.0
      %1307 = vmatprep.subr.mxu0 0.0
      %1308 = vmatpush1.msra.mxu0 0.0
      %1309 = vmatprep.subr.mxu0 0.0
      %1310 = vmatpush1.msra.mxu0 0.0
      %1311 = vmatprep.subr.mxu0 0.0
      %1312 = vmatpush1.msra.mxu0 0.0
      %1313 = vmatprep.subr.mxu0 0.0
      %1314 = vmatpush1.msra.mxu0 0.0
      %1315 = vmatprep.subr.mxu0 0.0
      %1316 = vmatpush1.msra.mxu0 0.0
      %1317 = vmatprep.subr.mxu0 0.0
      %1318 = vmatpush1.msra.mxu0 0.0
      %1319 = vmatprep.subr.mxu0 0.0
      %1320 = vmatpush1.msra.mxu0 0.0
      %1321 = vmatprep.mubr.f32.mxu0 0.0
      %1322 = vmatmul.mubr.f32.gmra.mrb[0].mxu0 %v1184
      %v1323 = vpop.f32.mrb[0].mxu0
      %v1324 = vadd.f32 0.0, %v1323
      %v1325 = vpop.f32.mrb[0].mxu0
      %v1326 = vadd.f32 0.0, %v1325
      %1327 = vdwg.mxu0
      %v1328 = vadd.f32 %v1144, %v1253
      %v1329 = vadd.f32 %v1145, %v1255
      %v1330 = vadd.f32 %v1146, %v1324
      %v1331 = vadd.f32 %v1147, %v1326
      %1332 = vrot.lane.b32.xlu0 %v263, 113
      %v1333 = vpop.permute.xlu0 %1332
      %1334 = vrot.lane.b32.xlu0 %v264, 113
      %v1335 = vpop.permute.xlu0 %1334
      %1336 = vrot.lane.b32.xlu0 %v265, 113
      %v1337 = vpop.permute.xlu0 %1336
      %1338 = vrot.lane.b32.xlu0 %v266, 113
      %v1339 = vpop.permute.xlu0 %1338
      %vm1340 = vcmp.lt.s32.totalorder %v276, 113
      %v1341 = vsel %vm1340, %v1337, %v1339
      %v1342 = vsel %vm1340, %v1335, %v1337
      %v1343 = vsel %vm1340, %v1333, %v1335
      %v1344 = vsel %vm1340, %v1339, %v1333
      %v1345 = vlaneseq
      %v1346 = vshrl.u32 %v1345, 7
      %v1347 = vsub.s32 6, %v1346
      %v1348 = vrot.slane %v255, %v1347
      %v1349 = vlaneseq
      %v1350 = vshrl.u32 %v1349, 7
      %v1351 = vsub.s32 6, %v1350
      %v1352 = vrot.slane %v256, %v1351
      %v1353 = vlaneseq
      %v1354 = vshrl.u32 %v1353, 7
      %v1355 = vsub.s32 6, %v1354
      %v1356 = vrot.slane %v257, %v1355
      %v1357 = vlaneseq
      %v1358 = vshrl.u32 %v1357, 7
      %v1359 = vsub.s32 6, %v1358
      %v1360 = vrot.slane %v258, %v1359
      %v1361 = vmul.f32 %v1343, %v1348
      %v1362 = vmul.f32 %v1342, %v1352
      %v1363 = vmul.f32 %v1341, %v1356
      %v1364 = vmul.f32 %v1344, %v1360
      %s1365 = scalar_lea.vmem %s1, 48
      %v1366 = vld [vmem:[%s1365] sm:$0xff]
      %v1368 = vsel %vm338, %v1366, 0
      %1370 = vmatprep.subr.mxu0 %v1362
      %1371 = vmatpush1.msra.mxu0 %v1361
      %1372 = vmatprep.subr.mxu0 0.0
      %1373 = vmatpush1.msra.mxu0 0.0
      %1374 = vmatprep.subr.mxu0 0.0
      %1375 = vmatpush1.msra.mxu0 0.0
      %1376 = vmatprep.subr.mxu0 0.0
      %1377 = vmatpush1.msra.mxu0 0.0
      %1378 = vmatprep.subr.mxu0 0.0
      %1379 = vmatpush1.msra.mxu0 0.0
      %1380 = vmatprep.subr.mxu0 0.0
      %1381 = vmatpush1.msra.mxu0 0.0
      %1382 = vmatprep.subr.mxu0 0.0
      %1383 = vmatpush1.msra.mxu0 0.0
      %1384 = vmatprep.subr.mxu0 0.0
      %1385 = vmatpush1.msra.mxu0 0.0
      %1386 = vmatprep.subr.mxu0 0.0
      %1387 = vmatpush1.msra.mxu0 0.0
      %1388 = vmatprep.subr.mxu0 0.0
      %1389 = vmatpush1.msra.mxu0 0.0
      %1390 = vmatprep.subr.mxu0 0.0
      %1391 = vmatpush1.msra.mxu0 0.0
      %1392 = vmatprep.subr.mxu0 0.0
      %1393 = vmatpush1.msra.mxu0 0.0
      %1394 = vmatprep.subr.mxu0 0.0
      %1395 = vmatpush1.msra.mxu0 0.0
      %1396 = vmatprep.subr.mxu0 0.0
      %1397 = vmatpush1.msra.mxu0 0.0
      %1398 = vmatprep.subr.mxu0 0.0
      %1399 = vmatpush1.msra.mxu0 0.0
      %1400 = vmatprep.subr.mxu0 0.0
      %1401 = vmatpush1.msra.mxu0 0.0
      %1402 = vmatprep.subr.mxu0 0.0
      %1403 = vmatpush1.msra.mxu0 0.0
      %1404 = vmatprep.subr.mxu0 0.0
      %1405 = vmatpush1.msra.mxu0 0.0
      %1406 = vmatprep.subr.mxu0 0.0
      %1407 = vmatpush1.msra.mxu0 0.0
      %1408 = vmatprep.subr.mxu0 0.0
      %1409 = vmatpush1.msra.mxu0 0.0
      %1410 = vmatprep.subr.mxu0 0.0
      %1411 = vmatpush1.msra.mxu0 0.0
      %1412 = vmatprep.subr.mxu0 0.0
      %1413 = vmatpush1.msra.mxu0 0.0
      %1414 = vmatprep.subr.mxu0 0.0
      %1415 = vmatpush1.msra.mxu0 0.0
      %1416 = vmatprep.subr.mxu0 0.0
      %1417 = vmatpush1.msra.mxu0 0.0
      %1418 = vmatprep.subr.mxu0 0.0
      %1419 = vmatpush1.msra.mxu0 0.0
      %1420 = vmatprep.subr.mxu0 0.0
      %1421 = vmatpush1.msra.mxu0 0.0
      %1422 = vmatprep.subr.mxu0 0.0
      %1423 = vmatpush1.msra.mxu0 0.0
      %1424 = vmatprep.subr.mxu0 0.0
      %1425 = vmatpush1.msra.mxu0 0.0
      %1426 = vmatprep.subr.mxu0 0.0
      %1427 = vmatpush1.msra.mxu0 0.0
      %1428 = vmatprep.subr.mxu0 0.0
      %1429 = vmatpush1.msra.mxu0 0.0
      %1430 = vmatprep.subr.mxu0 0.0
      %1431 = vmatpush1.msra.mxu0 0.0
      %1432 = vmatprep.subr.mxu0 0.0
      %1433 = vmatpush1.msra.mxu0 0.0
      %1434 = vmatprep.mubr.f32.mxu0 0.0
      %1435 = vmatmul.mubr.f32.gmra.mrb[0].mxu0 %v1368
      %v1436 = vpop.f32.mrb[0].mxu0
      %v1437 = vadd.f32 0.0, %v1436
      %v1438 = vpop.f32.mrb[0].mxu0
      %v1439 = vadd.f32 0.0, %v1438
      %1440 = vdwg.mxu0
      %1441 = vmatprep.subr.mxu0 %v1364
      %1442 = vmatpush1.msra.mxu0 %v1363
      %1443 = vmatprep.subr.mxu0 0.0
      %1444 = vmatpush1.msra.mxu0 0.0
      %1445 = vmatprep.subr.mxu0 0.0
      %1446 = vmatpush1.msra.mxu0 0.0
      %1447 = vmatprep.subr.mxu0 0.0
      %1448 = vmatpush1.msra.mxu0 0.0
      %1449 = vmatprep.subr.mxu0 0.0
      %1450 = vmatpush1.msra.mxu0 0.0
      %1451 = vmatprep.subr.mxu0 0.0
      %1452 = vmatpush1.msra.mxu0 0.0
      %1453 = vmatprep.subr.mxu0 0.0
      %1454 = vmatpush1.msra.mxu0 0.0
      %1455 = vmatprep.subr.mxu0 0.0
      %1456 = vmatpush1.msra.mxu0 0.0
      %1457 = vmatprep.subr.mxu0 0.0
      %1458 = vmatpush1.msra.mxu0 0.0
      %1459 = vmatprep.subr.mxu0 0.0
      %1460 = vmatpush1.msra.mxu0 0.0
      %1461 = vmatprep.subr.mxu0 0.0
      %1462 = vmatpush1.msra.mxu0 0.0
      %1463 = vmatprep.subr.mxu0 0.0
      %1464 = vmatpush1.msra.mxu0 0.0
      %1465 = vmatprep.subr.mxu0 0.0
      %1466 = vmatpush1.msra.mxu0 0.0
      %1467 = vmatprep.subr.mxu0 0.0
      %1468 = vmatpush1.msra.mxu0 0.0
      %1469 = vmatprep.subr.mxu0 0.0
      %1470 = vmatpush1.msra.mxu0 0.0
      %1471 = vmatprep.subr.mxu0 0.0
      %1472 = vmatpush1.msra.mxu0 0.0
      %1473 = vmatprep.subr.mxu0 0.0
      %1474 = vmatpush1.msra.mxu0 0.0
      %1475 = vmatprep.subr.mxu0 0.0
      %1476 = vmatpush1.msra.mxu0 0.0
      %1477 = vmatprep.subr.mxu0 0.0
      %1478 = vmatpush1.msra.mxu0 0.0
      %1479 = vmatprep.subr.mxu0 0.0
      %1480 = vmatpush1.msra.mxu0 0.0
      %1481 = vmatprep.subr.mxu0 0.0
      %1482 = vmatpush1.msra.mxu0 0.0
      %1483 = vmatprep.subr.mxu0 0.0
      %1484 = vmatpush1.msra.mxu0 0.0
      %1485 = vmatprep.subr.mxu0 0.0
      %1486 = vmatpush1.msra.mxu0 0.0
      %1487 = vmatprep.subr.mxu0 0.0
      %1488 = vmatpush1.msra.mxu0 0.0
      %1489 = vmatprep.subr.mxu0 0.0
      %1490 = vmatpush1.msra.mxu0 0.0
      %1491 = vmatprep.subr.mxu0 0.0
      %1492 = vmatpush1.msra.mxu0 0.0
      %1493 = vmatprep.subr.mxu0 0.0
      %1494 = vmatpush1.msra.mxu0 0.0
      %1495 = vmatprep.subr.mxu0 0.0
      %1496 = vmatpush1.msra.mxu0 0.0
      %1497 = vmatprep.subr.mxu0 0.0
      %1498 = vmatpush1.msra.mxu0 0.0
      %1499 = vmatprep.subr.mxu0 0.0
      %1500 = vmatpush1.msra.mxu0 0.0
      %1501 = vmatprep.subr.mxu0 0.0
      %1502 = vmatpush1.msra.mxu0 0.0
      %1503 = vmatprep.subr.mxu0 0.0
      %1504 = vmatpush1.msra.mxu0 0.0
      %1505 = vmatprep.mubr.f32.mxu0 0.0
      %1506 = vmatmul.mubr.f32.gmra.mrb[0].mxu0 %v1368
      %v1507 = vpop.f32.mrb[0].mxu0
      %v1508 = vadd.f32 0.0, %v1507
      %v1509 = vpop.f32.mrb[0].mxu0
      %v1510 = vadd.f32 0.0, %v1509
      %1511 = vdwg.mxu0
      %v1512 = vadd.f32 %v1328, %v1437
      %v1513 = vadd.f32 %v1329, %v1439
      %v1514 = vadd.f32 %v1330, %v1508
      %v1515 = vadd.f32 %v1331, %v1510
      %1516 = vrot.lane.b32.xlu0 %v263, 112
      %v1517 = vpop.permute.xlu0 %1516
      %1518 = vrot.lane.b32.xlu0 %v264, 112
      %v1519 = vpop.permute.xlu0 %1518
      %1520 = vrot.lane.b32.xlu0 %v265, 112
      %v1521 = vpop.permute.xlu0 %1520
      %1522 = vrot.lane.b32.xlu0 %v266, 112
      %v1523 = vpop.permute.xlu0 %1522
      %vm1524 = vcmp.lt.s32.totalorder %v276, 112
      %v1525 = vsel %vm1524, %v1521, %v1523
      %v1526 = vsel %vm1524, %v1519, %v1521
      %v1527 = vsel %vm1524, %v1517, %v1519
      %v1528 = vsel %vm1524, %v1523, %v1517
      %v1529 = vlaneseq
      %v1530 = vshrl.u32 %v1529, 7
      %v1531 = vsub.s32 7, %v1530
      %v1532 = vrot.slane %v255, %v1531
      %v1533 = vlaneseq
      %v1534 = vshrl.u32 %v1533, 7
      %v1535 = vsub.s32 7, %v1534
      %v1536 = vrot.slane %v256, %v1535
      %v1537 = vlaneseq
      %v1538 = vshrl.u32 %v1537, 7
      %v1539 = vsub.s32 7, %v1538
      %v1540 = vrot.slane %v257, %v1539
      %v1541 = vlaneseq
      %v1542 = vshrl.u32 %v1541, 7
      %v1543 = vsub.s32 7, %v1542
      %v1544 = vrot.slane %v258, %v1543
      %v1545 = vmul.f32 %v1527, %v1532
      %v1546 = vmul.f32 %v1526, %v1536
      %v1547 = vmul.f32 %v1525, %v1540
      %v1548 = vmul.f32 %v1528, %v1544
      %s1549 = scalar_lea.vmem %s1, 56
      %v1550 = vld [vmem:[%s1549] sm:$0xff]
      %v1552 = vsel %vm338, %v1550, 0
      %1554 = vmatprep.subr.mxu0 %v1546
      %1555 = vmatpush1.msra.mxu0 %v1545
      %1556 = vmatprep.subr.mxu0 0.0
      %1557 = vmatpush1.msra.mxu0 0.0
      %1558 = vmatprep.subr.mxu0 0.0
      %1559 = vmatpush1.msra.mxu0 0.0
      %1560 = vmatprep.subr.mxu0 0.0
      %1561 = vmatpush1.msra.mxu0 0.0
      %1562 = vmatprep.subr.mxu0 0.0
      %1563 = vmatpush1.msra.mxu0 0.0
      %1564 = vmatprep.subr.mxu0 0.0
      %1565 = vmatpush1.msra.mxu0 0.0
      %1566 = vmatprep.subr.mxu0 0.0
      %1567 = vmatpush1.msra.mxu0 0.0
      %1568 = vmatprep.subr.mxu0 0.0
      %1569 = vmatpush1.msra.mxu0 0.0
      %1570 = vmatprep.subr.mxu0 0.0
      %1571 = vmatpush1.msra.mxu0 0.0
      %1572 = vmatprep.subr.mxu0 0.0
      %1573 = vmatpush1.msra.mxu0 0.0
      %1574 = vmatprep.subr.mxu0 0.0
      %1575 = vmatpush1.msra.mxu0 0.0
      %1576 = vmatprep.subr.mxu0 0.0
      %1577 = vmatpush1.msra.mxu0 0.0
      %1578 = vmatprep.subr.mxu0 0.0
      %1579 = vmatpush1.msra.mxu0 0.0
      %1580 = vmatprep.subr.mxu0 0.0
      %1581 = vmatpush1.msra.mxu0 0.0
      %1582 = vmatprep.subr.mxu0 0.0
      %1583 = vmatpush1.msra.mxu0 0.0
      %1584 = vmatprep.subr.mxu0 0.0
      %1585 = vmatpush1.msra.mxu0 0.0
      %1586 = vmatprep.subr.mxu0 0.0
      %1587 = vmatpush1.msra.mxu0 0.0
      %1588 = vmatprep.subr.mxu0 0.0
      %1589 = vmatpush1.msra.mxu0 0.0
      %1590 = vmatprep.subr.mxu0 0.0
      %1591 = vmatpush1.msra.mxu0 0.0
      %1592 = vmatprep.subr.mxu0 0.0
      %1593 = vmatpush1.msra.mxu0 0.0
      %1594 = vmatprep.subr.mxu0 0.0
      %1595 = vmatpush1.msra.mxu0 0.0
      %1596 = vmatprep.subr.mxu0 0.0
      %1597 = vmatpush1.msra.mxu0 0.0
      %1598 = vmatprep.subr.mxu0 0.0
      %1599 = vmatpush1.msra.mxu0 0.0
      %1600 = vmatprep.subr.mxu0 0.0
      %1601 = vmatpush1.msra.mxu0 0.0
      %1602 = vmatprep.subr.mxu0 0.0
      %1603 = vmatpush1.msra.mxu0 0.0
      %1604 = vmatprep.subr.mxu0 0.0
      %1605 = vmatpush1.msra.mxu0 0.0
      %1606 = vmatprep.subr.mxu0 0.0
      %1607 = vmatpush1.msra.mxu0 0.0
      %1608 = vmatprep.subr.mxu0 0.0
      %1609 = vmatpush1.msra.mxu0 0.0
      %1610 = vmatprep.subr.mxu0 0.0
      %1611 = vmatpush1.msra.mxu0 0.0
      %1612 = vmatprep.subr.mxu0 0.0
      %1613 = vmatpush1.msra.mxu0 0.0
      %1614 = vmatprep.subr.mxu0 0.0
      %1615 = vmatpush1.msra.mxu0 0.0
      %1616 = vmatprep.subr.mxu0 0.0
      %1617 = vmatpush1.msra.mxu0 0.0
      %1618 = vmatprep.mubr.f32.mxu0 0.0
      %1619 = vmatmul.mubr.f32.gmra.mrb[0].mxu0 %v1552
      %v1620 = vpop.f32.mrb[0].mxu0
      %v1621 = vadd.f32 0.0, %v1620
      %v1622 = vpop.f32.mrb[0].mxu0
      %v1623 = vadd.f32 0.0, %v1622
      %1624 = vdwg.mxu0
      %1625 = vmatprep.subr.mxu0 %v1548
      %1626 = vmatpush1.msra.mxu0 %v1547
      %1627 = vmatprep.subr.mxu0 0.0
      %1628 = vmatpush1.msra.mxu0 0.0
      %1629 = vmatprep.subr.mxu0 0.0
      %1630 = vmatpush1.msra.mxu0 0.0
      %1631 = vmatprep.subr.mxu0 0.0
      %1632 = vmatpush1.msra.mxu0 0.0
      %1633 = vmatprep.subr.mxu0 0.0
      %1634 = vmatpush1.msra.mxu0 0.0
      %1635 = vmatprep.subr.mxu0 0.0
      %1636 = vmatpush1.msra.mxu0 0.0
      %1637 = vmatprep.subr.mxu0 0.0
      %1638 = vmatpush1.msra.mxu0 0.0
      %1639 = vmatprep.subr.mxu0 0.0
      %1640 = vmatpush1.msra.mxu0 0.0
      %1641 = vmatprep.subr.mxu0 0.0
      %1642 = vmatpush1.msra.mxu0 0.0
      %1643 = vmatprep.subr.mxu0 0.0
      %1644 = vmatpush1.msra.mxu0 0.0
      %1645 = vmatprep.subr.mxu0 0.0
      %1646 = vmatpush1.msra.mxu0 0.0
      %1647 = vmatprep.subr.mxu0 0.0
      %1648 = vmatpush1.msra.mxu0 0.0
      %1649 = vmatprep.subr.mxu0 0.0
      %1650 = vmatpush1.msra.mxu0 0.0
      %1651 = vmatprep.subr.mxu0 0.0
      %1652 = vmatpush1.msra.mxu0 0.0
      %1653 = vmatprep.subr.mxu0 0.0
      %1654 = vmatpush1.msra.mxu0 0.0
      %1655 = vmatprep.subr.mxu0 0.0
      %1656 = vmatpush1.msra.mxu0 0.0
      %1657 = vmatprep.subr.mxu0 0.0
      %1658 = vmatpush1.msra.mxu0 0.0
      %1659 = vmatprep.subr.mxu0 0.0
      %1660 = vmatpush1.msra.mxu0 0.0
      %1661 = vmatprep.subr.mxu0 0.0
      %1662 = vmatpush1.msra.mxu0 0.0
      %1663 = vmatprep.subr.mxu0 0.0
      %1664 = vmatpush1.msra.mxu0 0.0
      %1665 = vmatprep.subr.mxu0 0.0
      %1666 = vmatpush1.msra.mxu0 0.0
      %1667 = vmatprep.subr.mxu0 0.0
      %1668 = vmatpush1.msra.mxu0 0.0
      %1669 = vmatprep.subr.mxu0 0.0
      %1670 = vmatpush1.msra.mxu0 0.0
      %1671 = vmatprep.subr.mxu0 0.0
      %1672 = vmatpush1.msra.mxu0 0.0
      %1673 = vmatprep.subr.mxu0 0.0
      %1674 = vmatpush1.msra.mxu0 0.0
      %1675 = vmatprep.subr.mxu0 0.0
      %1676 = vmatpush1.msra.mxu0 0.0
      %1677 = vmatprep.subr.mxu0 0.0
      %1678 = vmatpush1.msra.mxu0 0.0
      %1679 = vmatprep.subr.mxu0 0.0
      %1680 = vmatpush1.msra.mxu0 0.0
      %1681 = vmatprep.subr.mxu0 0.0
      %1682 = vmatpush1.msra.mxu0 0.0
      %1683 = vmatprep.subr.mxu0 0.0
      %1684 = vmatpush1.msra.mxu0 0.0
      %1685 = vmatprep.subr.mxu0 0.0
      %1686 = vmatpush1.msra.mxu0 0.0
      %1687 = vmatprep.subr.mxu0 0.0
      %1688 = vmatpush1.msra.mxu0 0.0
      %1689 = vmatprep.mubr.f32.mxu0 0.0
      %1690 = vmatmul.mubr.f32.gmra.mrb[0].mxu0 %v1552
      %v1691 = vpop.f32.mrb[0].mxu0
      %v1692 = vadd.f32 0.0, %v1691
      %v1693 = vpop.f32.mrb[0].mxu0
      %v1694 = vadd.f32 0.0, %v1693
      %1695 = vdwg.mxu0
      %v1696 = vadd.f32 %v1512, %v1621
      %v1697 = vadd.f32 %v1513, %v1623
      %v1698 = vadd.f32 %v1514, %v1692
      %v1699 = vadd.f32 %v1515, %v1694
      %1700 = vrot.lane.b32.xlu0 %v263, 111
      %v1701 = vpop.permute.xlu0 %1700
      %1702 = vrot.lane.b32.xlu0 %v264, 111
      %v1703 = vpop.permute.xlu0 %1702
      %1704 = vrot.lane.b32.xlu0 %v265, 111
      %v1705 = vpop.permute.xlu0 %1704
      %1706 = vrot.lane.b32.xlu0 %v266, 111
      %v1707 = vpop.permute.xlu0 %1706
      %vm1708 = vcmp.lt.s32.totalorder %v276, 111
      %v1709 = vsel %vm1708, %v1705, %v1707
      %v1710 = vsel %vm1708, %v1703, %v1705
      %v1711 = vsel %vm1708, %v1701, %v1703
      %v1712 = vsel %vm1708, %v1707, %v1701
      %v1713 = vlaneseq
      %v1714 = vshrl.u32 %v1713, 7
      %v1715 = vsub.s32 0, %v1714
      %v1716 = vrot.slane %v259, %v1715
      %v1717 = vlaneseq
      %v1718 = vshrl.u32 %v1717, 7
      %v1719 = vsub.s32 0, %v1718
      %v1720 = vrot.slane %v260, %v1719
      %v1721 = vlaneseq
      %v1722 = vshrl.u32 %v1721, 7
      %v1723 = vsub.s32 0, %v1722
      %v1724 = vrot.slane %v261, %v1723
      %v1725 = vlaneseq
      %v1726 = vshrl.u32 %v1725, 7
      %v1727 = vsub.s32 0, %v1726
      %v1728 = vrot.slane %v262, %v1727
      %v1729 = vmul.f32 %v1711, %v1716
      %v1730 = vmul.f32 %v1710, %v1720
      %v1731 = vmul.f32 %v1709, %v1724
      %v1732 = vmul.f32 %v1712, %v1728
      %s1733 = scalar_lea.vmem %s1, 64
      %v1734 = vld [vmem:[%s1733] sm:$0xff]
      %v1736 = vsel %vm338, %v1734, 0
      %1738 = vmatprep.subr.mxu0 %v1730
      %1739 = vmatpush1.msra.mxu0 %v1729
      %1740 = vmatprep.subr.mxu0 0.0
      %1741 = vmatpush1.msra.mxu0 0.0
      %1742 = vmatprep.subr.mxu0 0.0
      %1743 = vmatpush1.msra.mxu0 0.0
      %1744 = vmatprep.subr.mxu0 0.0
      %1745 = vmatpush1.msra.mxu0 0.0
      %1746 = vmatprep.subr.mxu0 0.0
      %1747 = vmatpush1.msra.mxu0 0.0
      %1748 = vmatprep.subr.mxu0 0.0
      %1749 = vmatpush1.msra.mxu0 0.0
      %1750 = vmatprep.subr.mxu0 0.0
      %1751 = vmatpush1.msra.mxu0 0.0
      %1752 = vmatprep.subr.mxu0 0.0
      %1753 = vmatpush1.msra.mxu0 0.0
      %1754 = vmatprep.subr.mxu0 0.0
      %1755 = vmatpush1.msra.mxu0 0.0
      %1756 = vmatprep.subr.mxu0 0.0
      %1757 = vmatpush1.msra.mxu0 0.0
      %1758 = vmatprep.subr.mxu0 0.0
      %1759 = vmatpush1.msra.mxu0 0.0
      %1760 = vmatprep.subr.mxu0 0.0
      %1761 = vmatpush1.msra.mxu0 0.0
      %1762 = vmatprep.subr.mxu0 0.0
      %1763 = vmatpush1.msra.mxu0 0.0
      %1764 = vmatprep.subr.mxu0 0.0
      %1765 = vmatpush1.msra.mxu0 0.0
      %1766 = vmatprep.subr.mxu0 0.0
      %1767 = vmatpush1.msra.mxu0 0.0
      %1768 = vmatprep.subr.mxu0 0.0
      %1769 = vmatpush1.msra.mxu0 0.0
      %1770 = vmatprep.subr.mxu0 0.0
      %1771 = vmatpush1.msra.mxu0 0.0
      %1772 = vmatprep.subr.mxu0 0.0
      %1773 = vmatpush1.msra.mxu0 0.0
      %1774 = vmatprep.subr.mxu0 0.0
      %1775 = vmatpush1.msra.mxu0 0.0
      %1776 = vmatprep.subr.mxu0 0.0
      %1777 = vmatpush1.msra.mxu0 0.0
      %1778 = vmatprep.subr.mxu0 0.0
      %1779 = vmatpush1.msra.mxu0 0.0
      %1780 = vmatprep.subr.mxu0 0.0
      %1781 = vmatpush1.msra.mxu0 0.0
      %1782 = vmatprep.subr.mxu0 0.0
      %1783 = vmatpush1.msra.mxu0 0.0
      %1784 = vmatprep.subr.mxu0 0.0
      %1785 = vmatpush1.msra.mxu0 0.0
      %1786 = vmatprep.subr.mxu0 0.0
      %1787 = vmatpush1.msra.mxu0 0.0
      %1788 = vmatprep.subr.mxu0 0.0
      %1789 = vmatpush1.msra.mxu0 0.0
      %1790 = vmatprep.subr.mxu0 0.0
      %1791 = vmatpush1.msra.mxu0 0.0
      %1792 = vmatprep.subr.mxu0 0.0
      %1793 = vmatpush1.msra.mxu0 0.0
      %1794 = vmatprep.subr.mxu0 0.0
      %1795 = vmatpush1.msra.mxu0 0.0
      %1796 = vmatprep.subr.mxu0 0.0
      %1797 = vmatpush1.msra.mxu0 0.0
      %1798 = vmatprep.subr.mxu0 0.0
      %1799 = vmatpush1.msra.mxu0 0.0
      %1800 = vmatprep.subr.mxu0 0.0
      %1801 = vmatpush1.msra.mxu0 0.0
      %1802 = vmatprep.mubr.f32.mxu0 0.0
      %1803 = vmatmul.mubr.f32.gmra.mrb[0].mxu0 %v1736
      %v1804 = vpop.f32.mrb[0].mxu0
      %v1805 = vadd.f32 0.0, %v1804
      %v1806 = vpop.f32.mrb[0].mxu0
      %v1807 = vadd.f32 0.0, %v1806
      %1808 = vdwg.mxu0
      %1809 = vmatprep.subr.mxu0 %v1732
      %1810 = vmatpush1.msra.mxu0 %v1731
      %1811 = vmatprep.subr.mxu0 0.0
      %1812 = vmatpush1.msra.mxu0 0.0
      %1813 = vmatprep.subr.mxu0 0.0
      %1814 = vmatpush1.msra.mxu0 0.0
      %1815 = vmatprep.subr.mxu0 0.0
      %1816 = vmatpush1.msra.mxu0 0.0
      %1817 = vmatprep.subr.mxu0 0.0
      %1818 = vmatpush1.msra.mxu0 0.0
      %1819 = vmatprep.subr.mxu0 0.0
      %1820 = vmatpush1.msra.mxu0 0.0
      %1821 = vmatprep.subr.mxu0 0.0
      %1822 = vmatpush1.msra.mxu0 0.0
      %1823 = vmatprep.subr.mxu0 0.0
      %1824 = vmatpush1.msra.mxu0 0.0
      %1825 = vmatprep.subr.mxu0 0.0
      %1826 = vmatpush1.msra.mxu0 0.0
      %1827 = vmatprep.subr.mxu0 0.0
      %1828 = vmatpush1.msra.mxu0 0.0
      %1829 = vmatprep.subr.mxu0 0.0
      %1830 = vmatpush1.msra.mxu0 0.0
      %1831 = vmatprep.subr.mxu0 0.0
      %1832 = vmatpush1.msra.mxu0 0.0
      %1833 = vmatprep.subr.mxu0 0.0
      %1834 = vmatpush1.msra.mxu0 0.0
      %1835 = vmatprep.subr.mxu0 0.0
      %1836 = vmatpush1.msra.mxu0 0.0
      %1837 = vmatprep.subr.mxu0 0.0
      %1838 = vmatpush1.msra.mxu0 0.0
      %1839 = vmatprep.subr.mxu0 0.0
      %1840 = vmatpush1.msra.mxu0 0.0
      %1841 = vmatprep.subr.mxu0 0.0
      %1842 = vmatpush1.msra.mxu0 0.0
      %1843 = vmatprep.subr.mxu0 0.0
      %1844 = vmatpush1.msra.mxu0 0.0
      %1845 = vmatprep.subr.mxu0 0.0
      %1846 = vmatpush1.msra.mxu0 0.0
      %1847 = vmatprep.subr.mxu0 0.0
      %1848 = vmatpush1.msra.mxu0 0.0
      %1849 = vmatprep.subr.mxu0 0.0
      %1850 = vmatpush1.msra.mxu0 0.0
      %1851 = vmatprep.subr.mxu0 0.0
      %1852 = vmatpush1.msra.mxu0 0.0
      %1853 = vmatprep.subr.mxu0 0.0
      %1854 = vmatpush1.msra.mxu0 0.0
      %1855 = vmatprep.subr.mxu0 0.0
      %1856 = vmatpush1.msra.mxu0 0.0
      %1857 = vmatprep.subr.mxu0 0.0
      %1858 = vmatpush1.msra.mxu0 0.0
      %1859 = vmatprep.subr.mxu0 0.0
      %1860 = vmatpush1.msra.mxu0 0.0
      %1861 = vmatprep.subr.mxu0 0.0
      %1862 = vmatpush1.msra.mxu0 0.0
      %1863 = vmatprep.subr.mxu0 0.0
      %1864 = vmatpush1.msra.mxu0 0.0
      %1865 = vmatprep.subr.mxu0 0.0
      %1866 = vmatpush1.msra.mxu0 0.0
      %1867 = vmatprep.subr.mxu0 0.0
      %1868 = vmatpush1.msra.mxu0 0.0
      %1869 = vmatprep.subr.mxu0 0.0
      %1870 = vmatpush1.msra.mxu0 0.0
      %1871 = vmatprep.subr.mxu0 0.0
      %1872 = vmatpush1.msra.mxu0 0.0
      %1873 = vmatprep.mubr.f32.mxu0 0.0
      %1874 = vmatmul.mubr.f32.gmra.mrb[0].mxu0 %v1736
      %v1875 = vpop.f32.mrb[0].mxu0
      %v1876 = vadd.f32 0.0, %v1875
      %v1877 = vpop.f32.mrb[0].mxu0
      %v1878 = vadd.f32 0.0, %v1877
      %1879 = vdwg.mxu0
      %v1880 = vadd.f32 %v1696, %v1805
      %v1881 = vadd.f32 %v1697, %v1807
      %v1882 = vadd.f32 %v1698, %v1876
      %v1883 = vadd.f32 %v1699, %v1878
      %v1884 = vld [vmem:[%s2] sm:$0xff]
      %1886 = vset.pattern.permute.xlu0 0
      %1887 = vperm.xlu0 %1886, %v1884
      %v1888 = vpop.permute.xlu0 %1887
      %v1890 = vadd.f32 %v1880, %v1888
      %v1891 = vadd.f32 %v1881, %v1888
      %v1892 = vadd.f32 %v1882, %v1888
      %v1893 = vadd.f32 %v1883, %v1888
      %v1894 = vxor.u32 %v1890, 2147483648
      %v1895 = vxor.u32 %v1891, 2147483648
      %v1896 = vxor.u32 %v1892, 2147483648
      %v1897 = vxor.u32 %v1893, 2147483648
      %v1898 = vmul.f32 %v1894, 1.442695
      %v1899 = vpow.pop %v1898
      %v1900 = vmul.f32 %v1895, 1.442695
      %v1901 = vpow.pop %v1900
      %v1902 = vmul.f32 %v1896, 1.442695
      %v1903 = vpow.pop %v1902
      %v1904 = vmul.f32 %v1897, 1.442695
      %v1905 = vpow.pop %v1904
      %v1906 = vadd.f32 %v1899, 1.0
      %v1907 = vadd.f32 %v1901, 1.0
      %v1908 = vadd.f32 %v1903, 1.0
      %v1909 = vadd.f32 %v1905, 1.0
      %v1910 = vrcp.pop %v1906
      %v1911 = vmul.f32 1.0, %v1910
      %v1912 = vrcp.pop %v1907
      %v1913 = vmul.f32 1.0, %v1912
      %v1914 = vrcp.pop %v1908
      %v1915 = vmul.f32 1.0, %v1914
      %v1916 = vrcp.pop %v1909
      %v1917 = vmul.f32 1.0, %v1916
      %v1918 = vmul.f32 %v1890, %v1911
      %v1919 = vmul.f32 %v1891, %v1913
      %v1920 = vmul.f32 %v1892, %v1915
      %v1921 = vmul.f32 %v1893, %v1917
      %1922 = vrot.lane.b32.xlu0 %v1918, 17
      %v1923 = vpop.permute.xlu0 %1922
      %1924 = vrot.lane.b32.xlu0 %v1919, 17
      %v1925 = vpop.permute.xlu0 %1924
      %1926 = vrot.lane.b32.xlu0 %v1920, 17
      %v1927 = vpop.permute.xlu0 %1926
      %1928 = vrot.lane.b32.xlu0 %v1921, 17
      %v1929 = vpop.permute.xlu0 %1928
      %v1930 = vsel %vm277, %v1927, %v1929
      %v1931 = vsel %vm277, %v1925, %v1927
      %v1932 = vsel %vm277, %v1923, %v1925
      %v1933 = vsel %vm277, %v1929, %v1923
      %v1934 = vmul.f32 %v1933, %v285
      %v1935 = vmul.f32 %v1932, %v289
      %v1936 = vmul.f32 %v1931, %v293
      %v1937 = vmul.f32 %v1930, %v297
      %v1938 = vld [vmem:[%s3] sm:$0xff]
      %1939 = vrot.lane.b32.xlu0 %v1918, 16
      %v1940 = vpop.permute.xlu0 %1939
      %1941 = vrot.lane.b32.xlu0 %v1919, 16
      %v1942 = vpop.permute.xlu0 %1941
      %1943 = vrot.lane.b32.xlu0 %v1920, 16
      %v1944 = vpop.permute.xlu0 %1943
      %1945 = vrot.lane.b32.xlu0 %v1921, 16
      %v1946 = vpop.permute.xlu0 %1945
      %v1947 = vsel %vm311, %v1944, %v1946
      %v1948 = vsel %vm311, %v1942, %v1944
      %v1949 = vsel %vm311, %v1940, %v1942
      %v1950 = vsel %vm311, %v1946, %v1940
      %v1951 = vmul.f32 %v1950, %v319
      %v1952 = vmul.f32 %v1949, %v323
      %v1953 = vmul.f32 %v1948, %v327
      %v1954 = vmul.f32 %v1947, %v331
      %s1955 = scalar_lea.vmem %s3, 8
      %v1956 = vld [vmem:[%s1955] sm:$0xff]
      %v1958 = vsel %vm338, %v1956, 0
      %1960 = vmatprep.subr.mxu0 %v1952
      %1961 = vmatpush1.msra.mxu0 %v1951
      %1962 = vmatprep.subr.mxu0 0.0
      %1963 = vmatpush1.msra.mxu0 0.0
      %1964 = vmatprep.subr.mxu0 0.0
      %1965 = vmatpush1.msra.mxu0 0.0
      %1966 = vmatprep.subr.mxu0 0.0
      %1967 = vmatpush1.msra.mxu0 0.0
      %1968 = vmatprep.subr.mxu0 0.0
      %1969 = vmatpush1.msra.mxu0 0.0
      %1970 = vmatprep.subr.mxu0 0.0
      %1971 = vmatpush1.msra.mxu0 0.0
      %1972 = vmatprep.subr.mxu0 0.0
      %1973 = vmatpush1.msra.mxu0 0.0
      %1974 = vmatprep.subr.mxu0 0.0
      %1975 = vmatpush1.msra.mxu0 0.0
      %1976 = vmatprep.subr.mxu0 0.0
      %1977 = vmatpush1.msra.mxu0 0.0
      %1978 = vmatprep.subr.mxu0 0.0
      %1979 = vmatpush1.msra.mxu0 0.0
      %1980 = vmatprep.subr.mxu0 0.0
      %1981 = vmatpush1.msra.mxu0 0.0
      %1982 = vmatprep.subr.mxu0 0.0
      %1983 = vmatpush1.msra.mxu0 0.0
      %1984 = vmatprep.subr.mxu0 0.0
      %1985 = vmatpush1.msra.mxu0 0.0
      %1986 = vmatprep.subr.mxu0 0.0
      %1987 = vmatpush1.msra.mxu0 0.0
      %1988 = vmatprep.subr.mxu0 0.0
      %1989 = vmatpush1.msra.mxu0 0.0
      %1990 = vmatprep.subr.mxu0 0.0
      %1991 = vmatpush1.msra.mxu0 0.0
      %1992 = vmatprep.subr.mxu0 0.0
      %1993 = vmatpush1.msra.mxu0 0.0
      %1994 = vmatprep.subr.mxu0 0.0
      %1995 = vmatpush1.msra.mxu0 0.0
      %1996 = vmatprep.subr.mxu0 0.0
      %1997 = vmatpush1.msra.mxu0 0.0
      %1998 = vmatprep.subr.mxu0 0.0
      %1999 = vmatpush1.msra.mxu0 0.0
      %2000 = vmatprep.subr.mxu0 0.0
      %2001 = vmatpush1.msra.mxu0 0.0
      %2002 = vmatprep.subr.mxu0 0.0
      %2003 = vmatpush1.msra.mxu0 0.0
      %2004 = vmatprep.subr.mxu0 0.0
      %2005 = vmatpush1.msra.mxu0 0.0
      %2006 = vmatprep.subr.mxu0 0.0
      %2007 = vmatpush1.msra.mxu0 0.0
      %2008 = vmatprep.subr.mxu0 0.0
      %2009 = vmatpush1.msra.mxu0 0.0
      %2010 = vmatprep.subr.mxu0 0.0
      %2011 = vmatpush1.msra.mxu0 0.0
      %2012 = vmatprep.subr.mxu0 0.0
      %2013 = vmatpush1.msra.mxu0 0.0
      %2014 = vmatprep.subr.mxu0 0.0
      %2015 = vmatpush1.msra.mxu0 0.0
      %2016 = vmatprep.subr.mxu0 0.0
      %2017 = vmatpush1.msra.mxu0 0.0
      %2018 = vmatprep.subr.mxu0 0.0
      %2019 = vmatpush1.msra.mxu0 0.0
      %2020 = vmatprep.subr.mxu0 0.0
      %2021 = vmatpush1.msra.mxu0 0.0
      %2022 = vmatprep.subr.mxu0 0.0
      %2023 = vmatpush1.msra.mxu0 0.0
      %2024 = vmatprep.mubr.f32.mxu0 0.0
      %2025 = vmatmul.mubr.f32.gmra.mrb[0].mxu0 %v1958
      %v2026 = vpop.f32.mrb[0].mxu0
      %v2027 = vadd.f32 0.0, %v2026
      %v2028 = vpop.f32.mrb[0].mxu0
      %v2029 = vadd.f32 0.0, %v2028
      %2030 = vdwg.mxu0
      %2031 = vmatprep.subr.mxu0 %v1954
      %2032 = vmatpush1.msra.mxu0 %v1953
      %2033 = vmatprep.subr.mxu0 0.0
      %2034 = vmatpush1.msra.mxu0 0.0
      %2035 = vmatprep.subr.mxu0 0.0
      %2036 = vmatpush1.msra.mxu0 0.0
      %2037 = vmatprep.subr.mxu0 0.0
      %2038 = vmatpush1.msra.mxu0 0.0
      %2039 = vmatprep.subr.mxu0 0.0
      %2040 = vmatpush1.msra.mxu0 0.0
      %2041 = vmatprep.subr.mxu0 0.0
      %2042 = vmatpush1.msra.mxu0 0.0
      %2043 = vmatprep.subr.mxu0 0.0
      %2044 = vmatpush1.msra.mxu0 0.0
      %2045 = vmatprep.subr.mxu0 0.0
      %2046 = vmatpush1.msra.mxu0 0.0
      %2047 = vmatprep.subr.mxu0 0.0
      %2048 = vmatpush1.msra.mxu0 0.0
      %2049 = vmatprep.subr.mxu0 0.0
      %2050 = vmatpush1.msra.mxu0 0.0
      %2051 = vmatprep.subr.mxu0 0.0
      %2052 = vmatpush1.msra.mxu0 0.0
      %2053 = vmatprep.subr.mxu0 0.0
      %2054 = vmatpush1.msra.mxu0 0.0
      %2055 = vmatprep.subr.mxu0 0.0
      %2056 = vmatpush1.msra.mxu0 0.0
      %2057 = vmatprep.subr.mxu0 0.0
      %2058 = vmatpush1.msra.mxu0 0.0
      %2059 = vmatprep.subr.mxu0 0.0
      %2060 = vmatpush1.msra.mxu0 0.0
      %2061 = vmatprep.subr.mxu0 0.0
      %2062 = vmatpush1.msra.mxu0 0.0
      %2063 = vmatprep.subr.mxu0 0.0
      %2064 = vmatpush1.msra.mxu0 0.0
      %2065 = vmatprep.subr.mxu0 0.0
      %2066 = vmatpush1.msra.mxu0 0.0
      %2067 = vmatprep.subr.mxu0 0.0
      %2068 = vmatpush1.msra.mxu0 0.0
      %2069 = vmatprep.subr.mxu0 0.0
      %2070 = vmatpush1.msra.mxu0 0.0
      %2071 = vmatprep.subr.mxu0 0.0
      %2072 = vmatpush1.msra.mxu0 0.0
      %2073 = vmatprep.subr.mxu0 0.0
      %2074 = vmatpush1.msra.mxu0 0.0
      %2075 = vmatprep.subr.mxu0 0.0
      %2076 = vmatpush1.msra.mxu0 0.0
      %2077 = vmatprep.subr.mxu0 0.0
      %2078 = vmatpush1.msra.mxu0 0.0
      %2079 = vmatprep.subr.mxu0 0.0
      %2080 = vmatpush1.msra.mxu0 0.0
      %2081 = vmatprep.subr.mxu0 0.0
      %2082 = vmatpush1.msra.mxu0 0.0
      %2083 = vmatprep.subr.mxu0 0.0
      %2084 = vmatpush1.msra.mxu0 0.0
      %2085 = vmatprep.subr.mxu0 0.0
      %2086 = vmatpush1.msra.mxu0 0.0
      %2087 = vmatprep.subr.mxu0 0.0
      %2088 = vmatpush1.msra.mxu0 0.0
      %2089 = vmatprep.subr.mxu0 0.0
      %2090 = vmatpush1.msra.mxu0 0.0
      %2091 = vmatprep.subr.mxu0 0.0
      %2092 = vmatpush1.msra.mxu0 0.0
      %2093 = vmatprep.subr.mxu0 0.0
      %2094 = vmatpush1.msra.mxu0 0.0
      %2095 = vmatprep.mubr.f32.mxu0 0.0
      %2096 = vmatmul.mubr.f32.gmra.mrb[0].mxu0 %v1958
      %v2097 = vpop.f32.mrb[0].mxu0
      %v2098 = vadd.f32 0.0, %v2097
      %v2099 = vpop.f32.mrb[0].mxu0
      %v2100 = vadd.f32 0.0, %v2099
      %2101 = vdwg.mxu0
      %v2103 = vsel %vm338, %v1938, 0
      %2105 = vmatprep.subr.mxu0 %v1935
      %2106 = vmatpush1.msra.mxu0 %v1934
      %2107 = vmatprep.subr.mxu0 0.0
      %2108 = vmatpush1.msra.mxu0 0.0
      %2109 = vmatprep.subr.mxu0 0.0
      %2110 = vmatpush1.msra.mxu0 0.0
      %2111 = vmatprep.subr.mxu0 0.0
      %2112 = vmatpush1.msra.mxu0 0.0
      %2113 = vmatprep.subr.mxu0 0.0
      %2114 = vmatpush1.msra.mxu0 0.0
      %2115 = vmatprep.subr.mxu0 0.0
      %2116 = vmatpush1.msra.mxu0 0.0
      %2117 = vmatprep.subr.mxu0 0.0
      %2118 = vmatpush1.msra.mxu0 0.0
      %2119 = vmatprep.subr.mxu0 0.0
      %2120 = vmatpush1.msra.mxu0 0.0
      %2121 = vmatprep.subr.mxu0 0.0
      %2122 = vmatpush1.msra.mxu0 0.0
      %2123 = vmatprep.subr.mxu0 0.0
      %2124 = vmatpush1.msra.mxu0 0.0
      %2125 = vmatprep.subr.mxu0 0.0
      %2126 = vmatpush1.msra.mxu0 0.0
      %2127 = vmatprep.subr.mxu0 0.0
      %2128 = vmatpush1.msra.mxu0 0.0
      %2129 = vmatprep.subr.mxu0 0.0
      %2130 = vmatpush1.msra.mxu0 0.0
      %2131 = vmatprep.subr.mxu0 0.0
      %2132 = vmatpush1.msra.mxu0 0.0
      %2133 = vmatprep.subr.mxu0 0.0
      %2134 = vmatpush1.msra.mxu0 0.0
      %2135 = vmatprep.subr.mxu0 0.0
      %2136 = vmatpush1.msra.mxu0 0.0
      %2137 = vmatprep.subr.mxu0 0.0
      %2138 = vmatpush1.msra.mxu0 0.0
      %2139 = vmatprep.subr.mxu0 0.0
      %2140 = vmatpush1.msra.mxu0 0.0
      %2141 = vmatprep.subr.mxu0 0.0
      %2142 = vmatpush1.msra.mxu0 0.0
      %2143 = vmatprep.subr.mxu0 0.0
      %2144 = vmatpush1.msra.mxu0 0.0
      %2145 = vmatprep.subr.mxu0 0.0
      %2146 = vmatpush1.msra.mxu0 0.0
      %2147 = vmatprep.subr.mxu0 0.0
      %2148 = vmatpush1.msra.mxu0 0.0
      %2149 = vmatprep.subr.mxu0 0.0
      %2150 = vmatpush1.msra.mxu0 0.0
      %2151 = vmatprep.subr.mxu0 0.0
      %2152 = vmatpush1.msra.mxu0 0.0
      %2153 = vmatprep.subr.mxu0 0.0
      %2154 = vmatpush1.msra.mxu0 0.0
      %2155 = vmatprep.subr.mxu0 0.0
      %2156 = vmatpush1.msra.mxu0 0.0
      %2157 = vmatprep.subr.mxu0 0.0
      %2158 = vmatpush1.msra.mxu0 0.0
      %2159 = vmatprep.subr.mxu0 0.0
      %2160 = vmatpush1.msra.mxu0 0.0
      %2161 = vmatprep.subr.mxu0 0.0
      %2162 = vmatpush1.msra.mxu0 0.0
      %2163 = vmatprep.subr.mxu0 0.0
      %2164 = vmatpush1.msra.mxu0 0.0
      %2165 = vmatprep.subr.mxu0 0.0
      %2166 = vmatpush1.msra.mxu0 0.0
      %2167 = vmatprep.subr.mxu0 0.0
      %2168 = vmatpush1.msra.mxu0 0.0
      %2169 = vmatprep.mubr.f32.mxu0 0.0
      %2170 = vmatmul.mubr.f32.gmra.mrb[0].mxu0 %v2103
      %v2171 = vpop.f32.mrb[0].mxu0
      %v2172 = vadd.f32 %v2027, %v2171
      %v2173 = vpop.f32.mrb[0].mxu0
      %v2174 = vadd.f32 %v2029, %v2173
      %2175 = vdwg.mxu0
      %2176 = vmatprep.subr.mxu0 %v1937
      %2177 = vmatpush1.msra.mxu0 %v1936
      %2178 = vmatprep.subr.mxu0 0.0
      %2179 = vmatpush1.msra.mxu0 0.0
      %2180 = vmatprep.subr.mxu0 0.0
      %2181 = vmatpush1.msra.mxu0 0.0
      %2182 = vmatprep.subr.mxu0 0.0
      %2183 = vmatpush1.msra.mxu0 0.0
      %2184 = vmatprep.subr.mxu0 0.0
      %2185 = vmatpush1.msra.mxu0 0.0
      %2186 = vmatprep.subr.mxu0 0.0
      %2187 = vmatpush1.msra.mxu0 0.0
      %2188 = vmatprep.subr.mxu0 0.0
      %2189 = vmatpush1.msra.mxu0 0.0
      %2190 = vmatprep.subr.mxu0 0.0
      %2191 = vmatpush1.msra.mxu0 0.0
      %2192 = vmatprep.subr.mxu0 0.0
      %2193 = vmatpush1.msra.mxu0 0.0
      %2194 = vmatprep.subr.mxu0 0.0
      %2195 = vmatpush1.msra.mxu0 0.0
      %2196 = vmatprep.subr.mxu0 0.0
      %2197 = vmatpush1.msra.mxu0 0.0
      %2198 = vmatprep.subr.mxu0 0.0
      %2199 = vmatpush1.msra.mxu0 0.0
      %2200 = vmatprep.subr.mxu0 0.0
      %2201 = vmatpush1.msra.mxu0 0.0
      %2202 = vmatprep.subr.mxu0 0.0
      %2203 = vmatpush1.msra.mxu0 0.0
      %2204 = vmatprep.subr.mxu0 0.0
      %2205 = vmatpush1.msra.mxu0 0.0
      %2206 = vmatprep.subr.mxu0 0.0
      %2207 = vmatpush1.msra.mxu0 0.0
      %2208 = vmatprep.subr.mxu0 0.0
      %2209 = vmatpush1.msra.mxu0 0.0
      %2210 = vmatprep.subr.mxu0 0.0
      %2211 = vmatpush1.msra.mxu0 0.0
      %2212 = vmatprep.subr.mxu0 0.0
      %2213 = vmatpush1.msra.mxu0 0.0
      %2214 = vmatprep.subr.mxu0 0.0
      %2215 = vmatpush1.msra.mxu0 0.0
      %2216 = vmatprep.subr.mxu0 0.0
      %2217 = vmatpush1.msra.mxu0 0.0
      %2218 = vmatprep.subr.mxu0 0.0
      %2219 = vmatpush1.msra.mxu0 0.0
      %2220 = vmatprep.subr.mxu0 0.0
      %2221 = vmatpush1.msra.mxu0 0.0
      %2222 = vmatprep.subr.mxu0 0.0
      %2223 = vmatpush1.msra.mxu0 0.0
      %2224 = vmatprep.subr.mxu0 0.0
      %2225 = vmatpush1.msra.mxu0 0.0
      %2226 = vmatprep.subr.mxu0 0.0
      %2227 = vmatpush1.msra.mxu0 0.0
      %2228 = vmatprep.subr.mxu0 0.0
      %2229 = vmatpush1.msra.mxu0 0.0
      %2230 = vmatprep.subr.mxu0 0.0
      %2231 = vmatpush1.msra.mxu0 0.0
      %2232 = vmatprep.subr.mxu0 0.0
      %2233 = vmatpush1.msra.mxu0 0.0
      %2234 = vmatprep.subr.mxu0 0.0
      %2235 = vmatpush1.msra.mxu0 0.0
      %2236 = vmatprep.subr.mxu0 0.0
      %2237 = vmatpush1.msra.mxu0 0.0
      %2238 = vmatprep.subr.mxu0 0.0
      %2239 = vmatpush1.msra.mxu0 0.0
      %2240 = vmatprep.mubr.f32.mxu0 0.0
      %2241 = vmatmul.mubr.f32.gmra.mrb[0].mxu0 %v2103
      %v2242 = vpop.f32.mrb[0].mxu0
      %v2243 = vadd.f32 %v2098, %v2242
      %v2244 = vpop.f32.mrb[0].mxu0
      %v2245 = vadd.f32 %v2100, %v2244
      %2246 = vdwg.mxu0
      %2247 = vrot.lane.b32.xlu0 %v1918, 15
      %v2248 = vpop.permute.xlu0 %2247
      %2249 = vrot.lane.b32.xlu0 %v1919, 15
      %v2250 = vpop.permute.xlu0 %2249
      %2251 = vrot.lane.b32.xlu0 %v1920, 15
      %v2252 = vpop.permute.xlu0 %2251
      %2253 = vrot.lane.b32.xlu0 %v1921, 15
      %v2254 = vpop.permute.xlu0 %2253
      %v2255 = vsel %vm637, %v2252, %v2254
      %v2256 = vsel %vm637, %v2250, %v2252
      %v2257 = vsel %vm637, %v2248, %v2250
      %v2258 = vsel %vm637, %v2254, %v2248
      %v2259 = vmul.f32 %v2258, %v645
      %v2260 = vmul.f32 %v2257, %v649
      %v2261 = vmul.f32 %v2256, %v653
      %v2262 = vmul.f32 %v2255, %v657
      %s2263 = scalar_lea.vmem %s3, 16
      %v2264 = vld [vmem:[%s2263] sm:$0xff]
      %v2266 = vsel %vm338, %v2264, 0
      %2268 = vmatprep.subr.mxu0 %v2260
      %2269 = vmatpush1.msra.mxu0 %v2259
      %2270 = vmatprep.subr.mxu0 0.0
      %2271 = vmatpush1.msra.mxu0 0.0
      %2272 = vmatprep.subr.mxu0 0.0
      %2273 = vmatpush1.msra.mxu0 0.0
      %2274 = vmatprep.subr.mxu0 0.0
      %2275 = vmatpush1.msra.mxu0 0.0
      %2276 = vmatprep.subr.mxu0 0.0
      %2277 = vmatpush1.msra.mxu0 0.0
      %2278 = vmatprep.subr.mxu0 0.0
      %2279 = vmatpush1.msra.mxu0 0.0
      %2280 = vmatprep.subr.mxu0 0.0
      %2281 = vmatpush1.msra.mxu0 0.0
      %2282 = vmatprep.subr.mxu0 0.0
      %2283 = vmatpush1.msra.mxu0 0.0
      %2284 = vmatprep.subr.mxu0 0.0
      %2285 = vmatpush1.msra.mxu0 0.0
      %2286 = vmatprep.subr.mxu0 0.0
      %2287 = vmatpush1.msra.mxu0 0.0
      %2288 = vmatprep.subr.mxu0 0.0
      %2289 = vmatpush1.msra.mxu0 0.0
      %2290 = vmatprep.subr.mxu0 0.0
      %2291 = vmatpush1.msra.mxu0 0.0
      %2292 = vmatprep.subr.mxu0 0.0
      %2293 = vmatpush1.msra.mxu0 0.0
      %2294 = vmatprep.subr.mxu0 0.0
      %2295 = vmatpush1.msra.mxu0 0.0
      %2296 = vmatprep.subr.mxu0 0.0
      %2297 = vmatpush1.msra.mxu0 0.0
      %2298 = vmatprep.subr.mxu0 0.0
      %2299 = vmatpush1.msra.mxu0 0.0
      %2300 = vmatprep.subr.mxu0 0.0
      %2301 = vmatpush1.msra.mxu0 0.0
      %2302 = vmatprep.subr.mxu0 0.0
      %2303 = vmatpush1.msra.mxu0 0.0
      %2304 = vmatprep.subr.mxu0 0.0
      %2305 = vmatpush1.msra.mxu0 0.0
      %2306 = vmatprep.subr.mxu0 0.0
      %2307 = vmatpush1.msra.mxu0 0.0
      %2308 = vmatprep.subr.mxu0 0.0
      %2309 = vmatpush1.msra.mxu0 0.0
      %2310 = vmatprep.subr.mxu0 0.0
      %2311 = vmatpush1.msra.mxu0 0.0
      %2312 = vmatprep.subr.mxu0 0.0
      %2313 = vmatpush1.msra.mxu0 0.0
      %2314 = vmatprep.subr.mxu0 0.0
      %2315 = vmatpush1.msra.mxu0 0.0
      %2316 = vmatprep.subr.mxu0 0.0
      %2317 = vmatpush1.msra.mxu0 0.0
      %2318 = vmatprep.subr.mxu0 0.0
      %2319 = vmatpush1.msra.mxu0 0.0
      %2320 = vmatprep.subr.mxu0 0.0
      %2321 = vmatpush1.msra.mxu0 0.0
      %2322 = vmatprep.subr.mxu0 0.0
      %2323 = vmatpush1.msra.mxu0 0.0
      %2324 = vmatprep.subr.mxu0 0.0
      %2325 = vmatpush1.msra.mxu0 0.0
      %2326 = vmatprep.subr.mxu0 0.0
      %2327 = vmatpush1.msra.mxu0 0.0
      %2328 = vmatprep.subr.mxu0 0.0
      %2329 = vmatpush1.msra.mxu0 0.0
      %2330 = vmatprep.subr.mxu0 0.0
      %2331 = vmatpush1.msra.mxu0 0.0
      %2332 = vmatprep.mubr.f32.mxu0 0.0
      %2333 = vmatmul.mubr.f32.gmra.mrb[0].mxu0 %v2266
      %v2334 = vpop.f32.mrb[0].mxu0
      %v2335 = vadd.f32 0.0, %v2334
      %v2336 = vpop.f32.mrb[0].mxu0
      %v2337 = vadd.f32 0.0, %v2336
      %2338 = vdwg.mxu0
      %2339 = vmatprep.subr.mxu0 %v2262
      %2340 = vmatpush1.msra.mxu0 %v2261
      %2341 = vmatprep.subr.mxu0 0.0
      %2342 = vmatpush1.msra.mxu0 0.0
      %2343 = vmatprep.subr.mxu0 0.0
      %2344 = vmatpush1.msra.mxu0 0.0
      %2345 = vmatprep.subr.mxu0 0.0
      %2346 = vmatpush1.msra.mxu0 0.0
      %2347 = vmatprep.subr.mxu0 0.0
      %2348 = vmatpush1.msra.mxu0 0.0
      %2349 = vmatprep.subr.mxu0 0.0
      %2350 = vmatpush1.msra.mxu0 0.0
      %2351 = vmatprep.subr.mxu0 0.0
      %2352 = vmatpush1.msra.mxu0 0.0
      %2353 = vmatprep.subr.mxu0 0.0
      %2354 = vmatpush1.msra.mxu0 0.0
      %2355 = vmatprep.subr.mxu0 0.0
      %2356 = vmatpush1.msra.mxu0 0.0
      %2357 = vmatprep.subr.mxu0 0.0
      %2358 = vmatpush1.msra.mxu0 0.0
      %2359 = vmatprep.subr.mxu0 0.0
      %2360 = vmatpush1.msra.mxu0 0.0
      %2361 = vmatprep.subr.mxu0 0.0
      %2362 = vmatpush1.msra.mxu0 0.0
      %2363 = vmatprep.subr.mxu0 0.0
      %2364 = vmatpush1.msra.mxu0 0.0
      %2365 = vmatprep.subr.mxu0 0.0
      %2366 = vmatpush1.msra.mxu0 0.0
      %2367 = vmatprep.subr.mxu0 0.0
      %2368 = vmatpush1.msra.mxu0 0.0
      %2369 = vmatprep.subr.mxu0 0.0
      %2370 = vmatpush1.msra.mxu0 0.0
      %2371 = vmatprep.subr.mxu0 0.0
      %2372 = vmatpush1.msra.mxu0 0.0
      %2373 = vmatprep.subr.mxu0 0.0
      %2374 = vmatpush1.msra.mxu0 0.0
      %2375 = vmatprep.subr.mxu0 0.0
      %2376 = vmatpush1.msra.mxu0 0.0
      %2377 = vmatprep.subr.mxu0 0.0
      %2378 = vmatpush1.msra.mxu0 0.0
      %2379 = vmatprep.subr.mxu0 0.0
      %2380 = vmatpush1.msra.mxu0 0.0
      %2381 = vmatprep.subr.mxu0 0.0
      %2382 = vmatpush1.msra.mxu0 0.0
      %2383 = vmatprep.subr.mxu0 0.0
      %2384 = vmatpush1.msra.mxu0 0.0
      %2385 = vmatprep.subr.mxu0 0.0
      %2386 = vmatpush1.msra.mxu0 0.0
      %2387 = vmatprep.subr.mxu0 0.0
      %2388 = vmatpush1.msra.mxu0 0.0
      %2389 = vmatprep.subr.mxu0 0.0
      %2390 = vmatpush1.msra.mxu0 0.0
      %2391 = vmatprep.subr.mxu0 0.0
      %2392 = vmatpush1.msra.mxu0 0.0
      %2393 = vmatprep.subr.mxu0 0.0
      %2394 = vmatpush1.msra.mxu0 0.0
      %2395 = vmatprep.subr.mxu0 0.0
      %2396 = vmatpush1.msra.mxu0 0.0
      %2397 = vmatprep.subr.mxu0 0.0
      %2398 = vmatpush1.msra.mxu0 0.0
      %2399 = vmatprep.subr.mxu0 0.0
      %2400 = vmatpush1.msra.mxu0 0.0
      %2401 = vmatprep.subr.mxu0 0.0
      %2402 = vmatpush1.msra.mxu0 0.0
      %2403 = vmatprep.mubr.f32.mxu0 0.0
      %2404 = vmatmul.mubr.f32.gmra.mrb[0].mxu0 %v2266
      %v2405 = vpop.f32.mrb[0].mxu0
      %v2406 = vadd.f32 0.0, %v2405
      %v2407 = vpop.f32.mrb[0].mxu0
      %v2408 = vadd.f32 0.0, %v2407
      %2409 = vdwg.mxu0
      %v2410 = vadd.f32 %v2172, %v2335
      %v2411 = vadd.f32 %v2174, %v2337
      %v2412 = vadd.f32 %v2243, %v2406
      %v2413 = vadd.f32 %v2245, %v2408
      %2414 = vrot.lane.b32.xlu0 %v1918, 1
      %v2415 = vpop.permute.xlu0 %2414
      %2416 = vrot.lane.b32.xlu0 %v1919, 1
      %v2417 = vpop.permute.xlu0 %2416
      %2418 = vrot.lane.b32.xlu0 %v1920, 1
      %v2419 = vpop.permute.xlu0 %2418
      %2420 = vrot.lane.b32.xlu0 %v1921, 1
      %v2421 = vpop.permute.xlu0 %2420
      %v2422 = vsel %vm821, %v2419, %v2421
      %v2423 = vsel %vm821, %v2417, %v2419
      %v2424 = vsel %vm821, %v2415, %v2417
      %v2425 = vsel %vm821, %v2421, %v2415
      %v2426 = vmul.f32 %v2425, %v829
      %v2427 = vmul.f32 %v2424, %v833
      %v2428 = vmul.f32 %v2423, %v837
      %v2429 = vmul.f32 %v2422, %v841
      %s2430 = scalar_lea.vmem %s3, 24
      %v2431 = vld [vmem:[%s2430] sm:$0xff]
      %v2433 = vsel %vm338, %v2431, 0
      %2435 = vmatprep.subr.mxu0 %v2427
      %2436 = vmatpush1.msra.mxu0 %v2426
      %2437 = vmatprep.subr.mxu0 0.0
      %2438 = vmatpush1.msra.mxu0 0.0
      %2439 = vmatprep.subr.mxu0 0.0
      %2440 = vmatpush1.msra.mxu0 0.0
      %2441 = vmatprep.subr.mxu0 0.0
      %2442 = vmatpush1.msra.mxu0 0.0
      %2443 = vmatprep.subr.mxu0 0.0
      %2444 = vmatpush1.msra.mxu0 0.0
      %2445 = vmatprep.subr.mxu0 0.0
      %2446 = vmatpush1.msra.mxu0 0.0
      %2447 = vmatprep.subr.mxu0 0.0
      %2448 = vmatpush1.msra.mxu0 0.0
      %2449 = vmatprep.subr.mxu0 0.0
      %2450 = vmatpush1.msra.mxu0 0.0
      %2451 = vmatprep.subr.mxu0 0.0
      %2452 = vmatpush1.msra.mxu0 0.0
      %2453 = vmatprep.subr.mxu0 0.0
      %2454 = vmatpush1.msra.mxu0 0.0
      %2455 = vmatprep.subr.mxu0 0.0
      %2456 = vmatpush1.msra.mxu0 0.0
      %2457 = vmatprep.subr.mxu0 0.0
      %2458 = vmatpush1.msra.mxu0 0.0
      %2459 = vmatprep.subr.mxu0 0.0
      %2460 = vmatpush1.msra.mxu0 0.0
      %2461 = vmatprep.subr.mxu0 0.0
      %2462 = vmatpush1.msra.mxu0 0.0
      %2463 = vmatprep.subr.mxu0 0.0
      %2464 = vmatpush1.msra.mxu0 0.0
      %2465 = vmatprep.subr.mxu0 0.0
      %2466 = vmatpush1.msra.mxu0 0.0
      %2467 = vmatprep.subr.mxu0 0.0
      %2468 = vmatpush1.msra.mxu0 0.0
      %2469 = vmatprep.subr.mxu0 0.0
      %2470 = vmatpush1.msra.mxu0 0.0
      %2471 = vmatprep.subr.mxu0 0.0
      %2472 = vmatpush1.msra.mxu0 0.0
      %2473 = vmatprep.subr.mxu0 0.0
      %2474 = vmatpush1.msra.mxu0 0.0
      %2475 = vmatprep.subr.mxu0 0.0
      %2476 = vmatpush1.msra.mxu0 0.0
      %2477 = vmatprep.subr.mxu0 0.0
      %2478 = vmatpush1.msra.mxu0 0.0
      %2479 = vmatprep.subr.mxu0 0.0
      %2480 = vmatpush1.msra.mxu0 0.0
      %2481 = vmatprep.subr.mxu0 0.0
      %2482 = vmatpush1.msra.mxu0 0.0
      %2483 = vmatprep.subr.mxu0 0.0
      %2484 = vmatpush1.msra.mxu0 0.0
      %2485 = vmatprep.subr.mxu0 0.0
      %2486 = vmatpush1.msra.mxu0 0.0
      %2487 = vmatprep.subr.mxu0 0.0
      %2488 = vmatpush1.msra.mxu0 0.0
      %2489 = vmatprep.subr.mxu0 0.0
      %2490 = vmatpush1.msra.mxu0 0.0
      %2491 = vmatprep.subr.mxu0 0.0
      %2492 = vmatpush1.msra.mxu0 0.0
      %2493 = vmatprep.subr.mxu0 0.0
      %2494 = vmatpush1.msra.mxu0 0.0
      %2495 = vmatprep.subr.mxu0 0.0
      %2496 = vmatpush1.msra.mxu0 0.0
      %2497 = vmatprep.subr.mxu0 0.0
      %2498 = vmatpush1.msra.mxu0 0.0
      %2499 = vmatprep.mubr.f32.mxu0 0.0
      %2500 = vmatmul.mubr.f32.gmra.mrb[0].mxu0 %v2433
      %v2501 = vpop.f32.mrb[0].mxu0
      %v2502 = vadd.f32 0.0, %v2501
      %v2503 = vpop.f32.mrb[0].mxu0
      %v2504 = vadd.f32 0.0, %v2503
      %2505 = vdwg.mxu0
      %2506 = vmatprep.subr.mxu0 %v2429
      %2507 = vmatpush1.msra.mxu0 %v2428
      %2508 = vmatprep.subr.mxu0 0.0
      %2509 = vmatpush1.msra.mxu0 0.0
      %2510 = vmatprep.subr.mxu0 0.0
      %2511 = vmatpush1.msra.mxu0 0.0
      %2512 = vmatprep.subr.mxu0 0.0
      %2513 = vmatpush1.msra.mxu0 0.0
      %2514 = vmatprep.subr.mxu0 0.0
      %2515 = vmatpush1.msra.mxu0 0.0
      %2516 = vmatprep.subr.mxu0 0.0
      %2517 = vmatpush1.msra.mxu0 0.0
      %2518 = vmatprep.subr.mxu0 0.0
      %2519 = vmatpush1.msra.mxu0 0.0
      %2520 = vmatprep.subr.mxu0 0.0
      %2521 = vmatpush1.msra.mxu0 0.0
      %2522 = vmatprep.subr.mxu0 0.0
      %2523 = vmatpush1.msra.mxu0 0.0
      %2524 = vmatprep.subr.mxu0 0.0
      %2525 = vmatpush1.msra.mxu0 0.0
      %2526 = vmatprep.subr.mxu0 0.0
      %2527 = vmatpush1.msra.mxu0 0.0
      %2528 = vmatprep.subr.mxu0 0.0
      %2529 = vmatpush1.msra.mxu0 0.0
      %2530 = vmatprep.subr.mxu0 0.0
      %2531 = vmatpush1.msra.mxu0 0.0
      %2532 = vmatprep.subr.mxu0 0.0
      %2533 = vmatpush1.msra.mxu0 0.0
      %2534 = vmatprep.subr.mxu0 0.0
      %2535 = vmatpush1.msra.mxu0 0.0
      %2536 = vmatprep.subr.mxu0 0.0
      %2537 = vmatpush1.msra.mxu0 0.0
      %2538 = vmatprep.subr.mxu0 0.0
      %2539 = vmatpush1.msra.mxu0 0.0
      %2540 = vmatprep.subr.mxu0 0.0
      %2541 = vmatpush1.msra.mxu0 0.0
      %2542 = vmatprep.subr.mxu0 0.0
      %2543 = vmatpush1.msra.mxu0 0.0
      %2544 = vmatprep.subr.mxu0 0.0
      %2545 = vmatpush1.msra.mxu0 0.0
      %2546 = vmatprep.subr.mxu0 0.0
      %2547 = vmatpush1.msra.mxu0 0.0
      %2548 = vmatprep.subr.mxu0 0.0
      %2549 = vmatpush1.msra.mxu0 0.0
      %2550 = vmatprep.subr.mxu0 0.0
      %2551 = vmatpush1.msra.mxu0 0.0
      %2552 = vmatprep.subr.mxu0 0.0
      %2553 = vmatpush1.msra.mxu0 0.0
      %2554 = vmatprep.subr.mxu0 0.0
      %2555 = vmatpush1.msra.mxu0 0.0
      %2556 = vmatprep.subr.mxu0 0.0
      %2557 = vmatpush1.msra.mxu0 0.0
      %2558 = vmatprep.subr.mxu0 0.0
      %2559 = vmatpush1.msra.mxu0 0.0
      %2560 = vmatprep.subr.mxu0 0.0
      %2561 = vmatpush1.msra.mxu0 0.0
      %2562 = vmatprep.subr.mxu0 0.0
      %2563 = vmatpush1.msra.mxu0 0.0
      %2564 = vmatprep.subr.mxu0 0.0
      %2565 = vmatpush1.msra.mxu0 0.0
      %2566 = vmatprep.subr.mxu0 0.0
      %2567 = vmatpush1.msra.mxu0 0.0
      %2568 = vmatprep.subr.mxu0 0.0
      %2569 = vmatpush1.msra.mxu0 0.0
      %2570 = vmatprep.mubr.f32.mxu0 0.0
      %2571 = vmatmul.mubr.f32.gmra.mrb[0].mxu0 %v2433
      %v2572 = vpop.f32.mrb[0].mxu0
      %v2573 = vadd.f32 0.0, %v2572
      %v2574 = vpop.f32.mrb[0].mxu0
      %v2575 = vadd.f32 0.0, %v2574
      %2576 = vdwg.mxu0
      %v2577 = vadd.f32 %v2410, %v2502
      %v2578 = vadd.f32 %v2411, %v2504
      %v2579 = vadd.f32 %v2412, %v2573
      %v2580 = vadd.f32 %v2413, %v2575
      %s2581 = scalar_lea.vmem %s3, 32
      %v2582 = vld [vmem:[%s2581] sm:$0xff]
      %v2584 = vsel %vm338, %v2582, 0
      %2586 = vmatprep.subr.mxu0 %v1919
      %2587 = vmatpush1.msra.mxu0 %v1918
      %2588 = vmatprep.subr.mxu0 0.0
      %2589 = vmatpush1.msra.mxu0 0.0
      %2590 = vmatprep.subr.mxu0 0.0
      %2591 = vmatpush1.msra.mxu0 0.0
      %2592 = vmatprep.subr.mxu0 0.0
      %2593 = vmatpush1.msra.mxu0 0.0
      %2594 = vmatprep.subr.mxu0 0.0
      %2595 = vmatpush1.msra.mxu0 0.0
      %2596 = vmatprep.subr.mxu0 0.0
      %2597 = vmatpush1.msra.mxu0 0.0
      %2598 = vmatprep.subr.mxu0 0.0
      %2599 = vmatpush1.msra.mxu0 0.0
      %2600 = vmatprep.subr.mxu0 0.0
      %2601 = vmatpush1.msra.mxu0 0.0
      %2602 = vmatprep.subr.mxu0 0.0
      %2603 = vmatpush1.msra.mxu0 0.0
      %2604 = vmatprep.subr.mxu0 0.0
      %2605 = vmatpush1.msra.mxu0 0.0
      %2606 = vmatprep.subr.mxu0 0.0
      %2607 = vmatpush1.msra.mxu0 0.0
      %2608 = vmatprep.subr.mxu0 0.0
      %2609 = vmatpush1.msra.mxu0 0.0
      %2610 = vmatprep.subr.mxu0 0.0
      %2611 = vmatpush1.msra.mxu0 0.0
      %2612 = vmatprep.subr.mxu0 0.0
      %2613 = vmatpush1.msra.mxu0 0.0
      %2614 = vmatprep.subr.mxu0 0.0
      %2615 = vmatpush1.msra.mxu0 0.0
      %2616 = vmatprep.subr.mxu0 0.0
      %2617 = vmatpush1.msra.mxu0 0.0
      %2618 = vmatprep.subr.mxu0 0.0
      %2619 = vmatpush1.msra.mxu0 0.0
      %2620 = vmatprep.subr.mxu0 0.0
      %2621 = vmatpush1.msra.mxu0 0.0
      %2622 = vmatprep.subr.mxu0 0.0
      %2623 = vmatpush1.msra.mxu0 0.0
      %2624 = vmatprep.subr.mxu0 0.0
      %2625 = vmatpush1.msra.mxu0 0.0
      %2626 = vmatprep.subr.mxu0 0.0
      %2627 = vmatpush1.msra.mxu0 0.0
      %2628 = vmatprep.subr.mxu0 0.0
      %2629 = vmatpush1.msra.mxu0 0.0
      %2630 = vmatprep.subr.mxu0 0.0
      %2631 = vmatpush1.msra.mxu0 0.0
      %2632 = vmatprep.subr.mxu0 0.0
      %2633 = vmatpush1.msra.mxu0 0.0
      %2634 = vmatprep.subr.mxu0 0.0
      %2635 = vmatpush1.msra.mxu0 0.0
      %2636 = vmatprep.subr.mxu0 0.0
      %2637 = vmatpush1.msra.mxu0 0.0
      %2638 = vmatprep.subr.mxu0 0.0
      %2639 = vmatpush1.msra.mxu0 0.0
      %2640 = vmatprep.subr.mxu0 0.0
      %2641 = vmatpush1.msra.mxu0 0.0
      %2642 = vmatprep.subr.mxu0 0.0
      %2643 = vmatpush1.msra.mxu0 0.0
      %2644 = vmatprep.subr.mxu0 0.0
      %2645 = vmatpush1.msra.mxu0 0.0
      %2646 = vmatprep.subr.mxu0 0.0
      %2647 = vmatpush1.msra.mxu0 0.0
      %2648 = vmatprep.subr.mxu0 0.0
      %2649 = vmatpush1.msra.mxu0 0.0
      %2650 = vmatprep.mubr.f32.mxu0 0.0
      %2651 = vmatmul.mubr.f32.gmra.mrb[0].mxu0 %v2584
      %v2652 = vpop.f32.mrb[0].mxu0
      %v2653 = vadd.f32 0.0, %v2652
      %v2654 = vpop.f32.mrb[0].mxu0
      %v2655 = vadd.f32 0.0, %v2654
      %2656 = vdwg.mxu0
      %2657 = vmatprep.subr.mxu0 %v1921
      %2658 = vmatpush1.msra.mxu0 %v1920
      %2659 = vmatprep.subr.mxu0 0.0
      %2660 = vmatpush1.msra.mxu0 0.0
      %2661 = vmatprep.subr.mxu0 0.0
      %2662 = vmatpush1.msra.mxu0 0.0
      %2663 = vmatprep.subr.mxu0 0.0
      %2664 = vmatpush1.msra.mxu0 0.0
      %2665 = vmatprep.subr.mxu0 0.0
      %2666 = vmatpush1.msra.mxu0 0.0
      %2667 = vmatprep.subr.mxu0 0.0
      %2668 = vmatpush1.msra.mxu0 0.0
      %2669 = vmatprep.subr.mxu0 0.0
      %2670 = vmatpush1.msra.mxu0 0.0
      %2671 = vmatprep.subr.mxu0 0.0
      %2672 = vmatpush1.msra.mxu0 0.0
      %2673 = vmatprep.subr.mxu0 0.0
      %2674 = vmatpush1.msra.mxu0 0.0
      %2675 = vmatprep.subr.mxu0 0.0
      %2676 = vmatpush1.msra.mxu0 0.0
      %2677 = vmatprep.subr.mxu0 0.0
      %2678 = vmatpush1.msra.mxu0 0.0
      %2679 = vmatprep.subr.mxu0 0.0
      %2680 = vmatpush1.msra.mxu0 0.0
      %2681 = vmatprep.subr.mxu0 0.0
      %2682 = vmatpush1.msra.mxu0 0.0
      %2683 = vmatprep.subr.mxu0 0.0
      %2684 = vmatpush1.msra.mxu0 0.0
      %2685 = vmatprep.subr.mxu0 0.0
      %2686 = vmatpush1.msra.mxu0 0.0
      %2687 = vmatprep.subr.mxu0 0.0
      %2688 = vmatpush1.msra.mxu0 0.0
      %2689 = vmatprep.subr.mxu0 0.0
      %2690 = vmatpush1.msra.mxu0 0.0
      %2691 = vmatprep.subr.mxu0 0.0
      %2692 = vmatpush1.msra.mxu0 0.0
      %2693 = vmatprep.subr.mxu0 0.0
      %2694 = vmatpush1.msra.mxu0 0.0
      %2695 = vmatprep.subr.mxu0 0.0
      %2696 = vmatpush1.msra.mxu0 0.0
      %2697 = vmatprep.subr.mxu0 0.0
      %2698 = vmatpush1.msra.mxu0 0.0
      %2699 = vmatprep.subr.mxu0 0.0
      %2700 = vmatpush1.msra.mxu0 0.0
      %2701 = vmatprep.subr.mxu0 0.0
      %2702 = vmatpush1.msra.mxu0 0.0
      %2703 = vmatprep.subr.mxu0 0.0
      %2704 = vmatpush1.msra.mxu0 0.0
      %2705 = vmatprep.subr.mxu0 0.0
      %2706 = vmatpush1.msra.mxu0 0.0
      %2707 = vmatprep.subr.mxu0 0.0
      %2708 = vmatpush1.msra.mxu0 0.0
      %2709 = vmatprep.subr.mxu0 0.0
      %2710 = vmatpush1.msra.mxu0 0.0
      %2711 = vmatprep.subr.mxu0 0.0
      %2712 = vmatpush1.msra.mxu0 0.0
      %2713 = vmatprep.subr.mxu0 0.0
      %2714 = vmatpush1.msra.mxu0 0.0
      %2715 = vmatprep.subr.mxu0 0.0
      %2716 = vmatpush1.msra.mxu0 0.0
      %2717 = vmatprep.subr.mxu0 0.0
      %2718 = vmatpush1.msra.mxu0 0.0
      %2719 = vmatprep.subr.mxu0 0.0
      %2720 = vmatpush1.msra.mxu0 0.0
      %2721 = vmatprep.mubr.f32.mxu0 0.0
      %2722 = vmatmul.mubr.f32.gmra.mrb[0].mxu0 %v2584
      %v2723 = vpop.f32.mrb[0].mxu0
      %v2724 = vadd.f32 0.0, %v2723
      %v2725 = vpop.f32.mrb[0].mxu0
      %v2726 = vadd.f32 0.0, %v2725
      %2727 = vdwg.mxu0
      %v2728 = vadd.f32 %v2577, %v2653
      %v2729 = vadd.f32 %v2578, %v2655
      %v2730 = vadd.f32 %v2579, %v2724
      %v2731 = vadd.f32 %v2580, %v2726
      %2732 = vrot.lane.b32.xlu0 %v1918, 127
      %v2733 = vpop.permute.xlu0 %2732
      %2734 = vrot.lane.b32.xlu0 %v1919, 127
      %v2735 = vpop.permute.xlu0 %2734
      %2736 = vrot.lane.b32.xlu0 %v1920, 127
      %v2737 = vpop.permute.xlu0 %2736
      %2738 = vrot.lane.b32.xlu0 %v1921, 127
      %v2739 = vpop.permute.xlu0 %2738
      %v2740 = vsel %vm1156, %v2737, %v2739
      %v2741 = vsel %vm1156, %v2735, %v2737
      %v2742 = vsel %vm1156, %v2733, %v2735
      %v2743 = vsel %vm1156, %v2739, %v2733
      %v2744 = vmul.f32 %v2742, %v1164
      %v2745 = vmul.f32 %v2741, %v1168
      %v2746 = vmul.f32 %v2740, %v1172
      %v2747 = vmul.f32 %v2743, %v1176
      %s2748 = scalar_lea.vmem %s3, 40
      %v2749 = vld [vmem:[%s2748] sm:$0xff]
      %v2751 = vsel %vm338, %v2749, 0
      %2753 = vmatprep.subr.mxu0 %v2745
      %2754 = vmatpush1.msra.mxu0 %v2744
      %2755 = vmatprep.subr.mxu0 0.0
      %2756 = vmatpush1.msra.mxu0 0.0
      %2757 = vmatprep.subr.mxu0 0.0
      %2758 = vmatpush1.msra.mxu0 0.0
      %2759 = vmatprep.subr.mxu0 0.0
      %2760 = vmatpush1.msra.mxu0 0.0
      %2761 = vmatprep.subr.mxu0 0.0
      %2762 = vmatpush1.msra.mxu0 0.0
      %2763 = vmatprep.subr.mxu0 0.0
      %2764 = vmatpush1.msra.mxu0 0.0
      %2765 = vmatprep.subr.mxu0 0.0
      %2766 = vmatpush1.msra.mxu0 0.0
      %2767 = vmatprep.subr.mxu0 0.0
      %2768 = vmatpush1.msra.mxu0 0.0
      %2769 = vmatprep.subr.mxu0 0.0
      %2770 = vmatpush1.msra.mxu0 0.0
      %2771 = vmatprep.subr.mxu0 0.0
      %2772 = vmatpush1.msra.mxu0 0.0
      %2773 = vmatprep.subr.mxu0 0.0
      %2774 = vmatpush1.msra.mxu0 0.0
      %2775 = vmatprep.subr.mxu0 0.0
      %2776 = vmatpush1.msra.mxu0 0.0
      %2777 = vmatprep.subr.mxu0 0.0
      %2778 = vmatpush1.msra.mxu0 0.0
      %2779 = vmatprep.subr.mxu0 0.0
      %2780 = vmatpush1.msra.mxu0 0.0
      %2781 = vmatprep.subr.mxu0 0.0
      %2782 = vmatpush1.msra.mxu0 0.0
      %2783 = vmatprep.subr.mxu0 0.0
      %2784 = vmatpush1.msra.mxu0 0.0
      %2785 = vmatprep.subr.mxu0 0.0
      %2786 = vmatpush1.msra.mxu0 0.0
      %2787 = vmatprep.subr.mxu0 0.0
      %2788 = vmatpush1.msra.mxu0 0.0
      %2789 = vmatprep.subr.mxu0 0.0
      %2790 = vmatpush1.msra.mxu0 0.0
      %2791 = vmatprep.subr.mxu0 0.0
      %2792 = vmatpush1.msra.mxu0 0.0
      %2793 = vmatprep.subr.mxu0 0.0
      %2794 = vmatpush1.msra.mxu0 0.0
      %2795 = vmatprep.subr.mxu0 0.0
      %2796 = vmatpush1.msra.mxu0 0.0
      %2797 = vmatprep.subr.mxu0 0.0
      %2798 = vmatpush1.msra.mxu0 0.0
      %2799 = vmatprep.subr.mxu0 0.0
      %2800 = vmatpush1.msra.mxu0 0.0
      %2801 = vmatprep.subr.mxu0 0.0
      %2802 = vmatpush1.msra.mxu0 0.0
      %2803 = vmatprep.subr.mxu0 0.0
      %2804 = vmatpush1.msra.mxu0 0.0
      %2805 = vmatprep.subr.mxu0 0.0
      %2806 = vmatpush1.msra.mxu0 0.0
      %2807 = vmatprep.subr.mxu0 0.0
      %2808 = vmatpush1.msra.mxu0 0.0
      %2809 = vmatprep.subr.mxu0 0.0
      %2810 = vmatpush1.msra.mxu0 0.0
      %2811 = vmatprep.subr.mxu0 0.0
      %2812 = vmatpush1.msra.mxu0 0.0
      %2813 = vmatprep.subr.mxu0 0.0
      %2814 = vmatpush1.msra.mxu0 0.0
      %2815 = vmatprep.subr.mxu0 0.0
      %2816 = vmatpush1.msra.mxu0 0.0
      %2817 = vmatprep.mubr.f32.mxu0 0.0
      %2818 = vmatmul.mubr.f32.gmra.mrb[0].mxu0 %v2751
      %v2819 = vpop.f32.mrb[0].mxu0
      %v2820 = vadd.f32 0.0, %v2819
      %v2821 = vpop.f32.mrb[0].mxu0
      %v2822 = vadd.f32 0.0, %v2821
      %2823 = vdwg.mxu0
      %2824 = vmatprep.subr.mxu0 %v2747
      %2825 = vmatpush1.msra.mxu0 %v2746
      %2826 = vmatprep.subr.mxu0 0.0
      %2827 = vmatpush1.msra.mxu0 0.0
      %2828 = vmatprep.subr.mxu0 0.0
      %2829 = vmatpush1.msra.mxu0 0.0
      %2830 = vmatprep.subr.mxu0 0.0
      %2831 = vmatpush1.msra.mxu0 0.0
      %2832 = vmatprep.subr.mxu0 0.0
      %2833 = vmatpush1.msra.mxu0 0.0
      %2834 = vmatprep.subr.mxu0 0.0
      %2835 = vmatpush1.msra.mxu0 0.0
      %2836 = vmatprep.subr.mxu0 0.0
      %2837 = vmatpush1.msra.mxu0 0.0
      %2838 = vmatprep.subr.mxu0 0.0
      %2839 = vmatpush1.msra.mxu0 0.0
      %2840 = vmatprep.subr.mxu0 0.0
      %2841 = vmatpush1.msra.mxu0 0.0
      %2842 = vmatprep.subr.mxu0 0.0
      %2843 = vmatpush1.msra.mxu0 0.0
      %2844 = vmatprep.subr.mxu0 0.0
      %2845 = vmatpush1.msra.mxu0 0.0
      %2846 = vmatprep.subr.mxu0 0.0
      %2847 = vmatpush1.msra.mxu0 0.0
      %2848 = vmatprep.subr.mxu0 0.0
      %2849 = vmatpush1.msra.mxu0 0.0
      %2850 = vmatprep.subr.mxu0 0.0
      %2851 = vmatpush1.msra.mxu0 0.0
      %2852 = vmatprep.subr.mxu0 0.0
      %2853 = vmatpush1.msra.mxu0 0.0
      %2854 = vmatprep.subr.mxu0 0.0
      %2855 = vmatpush1.msra.mxu0 0.0
      %2856 = vmatprep.subr.mxu0 0.0
      %2857 = vmatpush1.msra.mxu0 0.0
      %2858 = vmatprep.subr.mxu0 0.0
      %2859 = vmatpush1.msra.mxu0 0.0
      %2860 = vmatprep.subr.mxu0 0.0
      %2861 = vmatpush1.msra.mxu0 0.0
      %2862 = vmatprep.subr.mxu0 0.0
      %2863 = vmatpush1.msra.mxu0 0.0
      %2864 = vmatprep.subr.mxu0 0.0
      %2865 = vmatpush1.msra.mxu0 0.0
      %2866 = vmatprep.subr.mxu0 0.0
      %2867 = vmatpush1.msra.mxu0 0.0
      %2868 = vmatprep.subr.mxu0 0.0
      %2869 = vmatpush1.msra.mxu0 0.0
      %2870 = vmatprep.subr.mxu0 0.0
      %2871 = vmatpush1.msra.mxu0 0.0
      %2872 = vmatprep.subr.mxu0 0.0
      %2873 = vmatpush1.msra.mxu0 0.0
      %2874 = vmatprep.subr.mxu0 0.0
      %2875 = vmatpush1.msra.mxu0 0.0
      %2876 = vmatprep.subr.mxu0 0.0
      %2877 = vmatpush1.msra.mxu0 0.0
      %2878 = vmatprep.subr.mxu0 0.0
      %2879 = vmatpush1.msra.mxu0 0.0
      %2880 = vmatprep.subr.mxu0 0.0
      %2881 = vmatpush1.msra.mxu0 0.0
      %2882 = vmatprep.subr.mxu0 0.0
      %2883 = vmatpush1.msra.mxu0 0.0
      %2884 = vmatprep.subr.mxu0 0.0
      %2885 = vmatpush1.msra.mxu0 0.0
      %2886 = vmatprep.subr.mxu0 0.0
      %2887 = vmatpush1.msra.mxu0 0.0
      %2888 = vmatprep.mubr.f32.mxu0 0.0
      %2889 = vmatmul.mubr.f32.gmra.mrb[0].mxu0 %v2751
      %v2890 = vpop.f32.mrb[0].mxu0
      %v2891 = vadd.f32 0.0, %v2890
      %v2892 = vpop.f32.mrb[0].mxu0
      %v2893 = vadd.f32 0.0, %v2892
      %2894 = vdwg.mxu0
      %v2895 = vadd.f32 %v2728, %v2820
      %v2896 = vadd.f32 %v2729, %v2822
      %v2897 = vadd.f32 %v2730, %v2891
      %v2898 = vadd.f32 %v2731, %v2893
      %2899 = vrot.lane.b32.xlu0 %v1918, 113
      %v2900 = vpop.permute.xlu0 %2899
      %2901 = vrot.lane.b32.xlu0 %v1919, 113
      %v2902 = vpop.permute.xlu0 %2901
      %2903 = vrot.lane.b32.xlu0 %v1920, 113
      %v2904 = vpop.permute.xlu0 %2903
      %2905 = vrot.lane.b32.xlu0 %v1921, 113
      %v2906 = vpop.permute.xlu0 %2905
      %v2907 = vsel %vm1340, %v2904, %v2906
      %v2908 = vsel %vm1340, %v2902, %v2904
      %v2909 = vsel %vm1340, %v2900, %v2902
      %v2910 = vsel %vm1340, %v2906, %v2900
      %v2911 = vmul.f32 %v2909, %v1348
      %v2912 = vmul.f32 %v2908, %v1352
      %v2913 = vmul.f32 %v2907, %v1356
      %v2914 = vmul.f32 %v2910, %v1360
      %s2915 = scalar_lea.vmem %s3, 48
      %v2916 = vld [vmem:[%s2915] sm:$0xff]
      %v2918 = vsel %vm338, %v2916, 0
      %2920 = vmatprep.subr.mxu0 %v2912
      %2921 = vmatpush1.msra.mxu0 %v2911
      %2922 = vmatprep.subr.mxu0 0.0
      %2923 = vmatpush1.msra.mxu0 0.0
      %2924 = vmatprep.subr.mxu0 0.0
      %2925 = vmatpush1.msra.mxu0 0.0
      %2926 = vmatprep.subr.mxu0 0.0
      %2927 = vmatpush1.msra.mxu0 0.0
      %2928 = vmatprep.subr.mxu0 0.0
      %2929 = vmatpush1.msra.mxu0 0.0
      %2930 = vmatprep.subr.mxu0 0.0
      %2931 = vmatpush1.msra.mxu0 0.0
      %2932 = vmatprep.subr.mxu0 0.0
      %2933 = vmatpush1.msra.mxu0 0.0
      %2934 = vmatprep.subr.mxu0 0.0
      %2935 = vmatpush1.msra.mxu0 0.0
      %2936 = vmatprep.subr.mxu0 0.0
      %2937 = vmatpush1.msra.mxu0 0.0
      %2938 = vmatprep.subr.mxu0 0.0
      %2939 = vmatpush1.msra.mxu0 0.0
      %2940 = vmatprep.subr.mxu0 0.0
      %2941 = vmatpush1.msra.mxu0 0.0
      %2942 = vmatprep.subr.mxu0 0.0
      %2943 = vmatpush1.msra.mxu0 0.0
      %2944 = vmatprep.subr.mxu0 0.0
      %2945 = vmatpush1.msra.mxu0 0.0
      %2946 = vmatprep.subr.mxu0 0.0
      %2947 = vmatpush1.msra.mxu0 0.0
      %2948 = vmatprep.subr.mxu0 0.0
      %2949 = vmatpush1.msra.mxu0 0.0
      %2950 = vmatprep.subr.mxu0 0.0
      %2951 = vmatpush1.msra.mxu0 0.0
      %2952 = vmatprep.subr.mxu0 0.0
      %2953 = vmatpush1.msra.mxu0 0.0
      %2954 = vmatprep.subr.mxu0 0.0
      %2955 = vmatpush1.msra.mxu0 0.0
      %2956 = vmatprep.subr.mxu0 0.0
      %2957 = vmatpush1.msra.mxu0 0.0
      %2958 = vmatprep.subr.mxu0 0.0
      %2959 = vmatpush1.msra.mxu0 0.0
      %2960 = vmatprep.subr.mxu0 0.0
      %2961 = vmatpush1.msra.mxu0 0.0
      %2962 = vmatprep.subr.mxu0 0.0
      %2963 = vmatpush1.msra.mxu0 0.0
      %2964 = vmatprep.subr.mxu0 0.0
      %2965 = vmatpush1.msra.mxu0 0.0
      %2966 = vmatprep.subr.mxu0 0.0
      %2967 = vmatpush1.msra.mxu0 0.0
      %2968 = vmatprep.subr.mxu0 0.0
      %2969 = vmatpush1.msra.mxu0 0.0
      %2970 = vmatprep.subr.mxu0 0.0
      %2971 = vmatpush1.msra.mxu0 0.0
      %2972 = vmatprep.subr.mxu0 0.0
      %2973 = vmatpush1.msra.mxu0 0.0
      %2974 = vmatprep.subr.mxu0 0.0
      %2975 = vmatpush1.msra.mxu0 0.0
      %2976 = vmatprep.subr.mxu0 0.0
      %2977 = vmatpush1.msra.mxu0 0.0
      %2978 = vmatprep.subr.mxu0 0.0
      %2979 = vmatpush1.msra.mxu0 0.0
      %2980 = vmatprep.subr.mxu0 0.0
      %2981 = vmatpush1.msra.mxu0 0.0
      %2982 = vmatprep.subr.mxu0 0.0
      %2983 = vmatpush1.msra.mxu0 0.0
      %2984 = vmatprep.mubr.f32.mxu0 0.0
      %2985 = vmatmul.mubr.f32.gmra.mrb[0].mxu0 %v2918
      %v2986 = vpop.f32.mrb[0].mxu0
      %v2987 = vadd.f32 0.0, %v2986
      %v2988 = vpop.f32.mrb[0].mxu0
      %v2989 = vadd.f32 0.0, %v2988
      %2990 = vdwg.mxu0
      %2991 = vmatprep.subr.mxu0 %v2914
      %2992 = vmatpush1.msra.mxu0 %v2913
      %2993 = vmatprep.subr.mxu0 0.0
      %2994 = vmatpush1.msra.mxu0 0.0
      %2995 = vmatprep.subr.mxu0 0.0
      %2996 = vmatpush1.msra.mxu0 0.0
      %2997 = vmatprep.subr.mxu0 0.0
      %2998 = vmatpush1.msra.mxu0 0.0
      %2999 = vmatprep.subr.mxu0 0.0
      %3000 = vmatpush1.msra.mxu0 0.0
      %3001 = vmatprep.subr.mxu0 0.0
      %3002 = vmatpush1.msra.mxu0 0.0
      %3003 = vmatprep.subr.mxu0 0.0
      %3004 = vmatpush1.msra.mxu0 0.0
      %3005 = vmatprep.subr.mxu0 0.0
      %3006 = vmatpush1.msra.mxu0 0.0
      %3007 = vmatprep.subr.mxu0 0.0
      %3008 = vmatpush1.msra.mxu0 0.0
      %3009 = vmatprep.subr.mxu0 0.0
      %3010 = vmatpush1.msra.mxu0 0.0
      %3011 = vmatprep.subr.mxu0 0.0
      %3012 = vmatpush1.msra.mxu0 0.0
      %3013 = vmatprep.subr.mxu0 0.0
      %3014 = vmatpush1.msra.mxu0 0.0
      %3015 = vmatprep.subr.mxu0 0.0
      %3016 = vmatpush1.msra.mxu0 0.0
      %3017 = vmatprep.subr.mxu0 0.0
      %3018 = vmatpush1.msra.mxu0 0.0
      %3019 = vmatprep.subr.mxu0 0.0
      %3020 = vmatpush1.msra.mxu0 0.0
      %3021 = vmatprep.subr.mxu0 0.0
      %3022 = vmatpush1.msra.mxu0 0.0
      %3023 = vmatprep.subr.mxu0 0.0
      %3024 = vmatpush1.msra.mxu0 0.0
      %3025 = vmatprep.subr.mxu0 0.0
      %3026 = vmatpush1.msra.mxu0 0.0
      %3027 = vmatprep.subr.mxu0 0.0
      %3028 = vmatpush1.msra.mxu0 0.0
      %3029 = vmatprep.subr.mxu0 0.0
      %3030 = vmatpush1.msra.mxu0 0.0
      %3031 = vmatprep.subr.mxu0 0.0
      %3032 = vmatpush1.msra.mxu0 0.0
      %3033 = vmatprep.subr.mxu0 0.0
      %3034 = vmatpush1.msra.mxu0 0.0
      %3035 = vmatprep.subr.mxu0 0.0
      %3036 = vmatpush1.msra.mxu0 0.0
      %3037 = vmatprep.subr.mxu0 0.0
      %3038 = vmatpush1.msra.mxu0 0.0
      %3039 = vmatprep.subr.mxu0 0.0
      %3040 = vmatpush1.msra.mxu0 0.0
      %3041 = vmatprep.subr.mxu0 0.0
      %3042 = vmatpush1.msra.mxu0 0.0
      %3043 = vmatprep.subr.mxu0 0.0
      %3044 = vmatpush1.msra.mxu0 0.0
      %3045 = vmatprep.subr.mxu0 0.0
      %3046 = vmatpush1.msra.mxu0 0.0
      %3047 = vmatprep.subr.mxu0 0.0
      %3048 = vmatpush1.msra.mxu0 0.0
      %3049 = vmatprep.subr.mxu0 0.0
      %3050 = vmatpush1.msra.mxu0 0.0
      %3051 = vmatprep.subr.mxu0 0.0
      %3052 = vmatpush1.msra.mxu0 0.0
      %3053 = vmatprep.subr.mxu0 0.0
      %3054 = vmatpush1.msra.mxu0 0.0
      %3055 = vmatprep.mubr.f32.mxu0 0.0
      %3056 = vmatmul.mubr.f32.gmra.mrb[0].mxu0 %v2918
      %v3057 = vpop.f32.mrb[0].mxu0
      %v3058 = vadd.f32 0.0, %v3057
      %v3059 = vpop.f32.mrb[0].mxu0
      %v3060 = vadd.f32 0.0, %v3059
      %3061 = vdwg.mxu0
      %v3062 = vadd.f32 %v2895, %v2987
      %v3063 = vadd.f32 %v2896, %v2989
      %v3064 = vadd.f32 %v2897, %v3058
      %v3065 = vadd.f32 %v2898, %v3060
      %3066 = vrot.lane.b32.xlu0 %v1918, 112
      %v3067 = vpop.permute.xlu0 %3066
      %3068 = vrot.lane.b32.xlu0 %v1919, 112
      %v3069 = vpop.permute.xlu0 %3068
      %3070 = vrot.lane.b32.xlu0 %v1920, 112
      %v3071 = vpop.permute.xlu0 %3070
      %3072 = vrot.lane.b32.xlu0 %v1921, 112
      %v3073 = vpop.permute.xlu0 %3072
      %v3074 = vsel %vm1524, %v3071, %v3073
      %v3075 = vsel %vm1524, %v3069, %v3071
      %v3076 = vsel %vm1524, %v3067, %v3069
      %v3077 = vsel %vm1524, %v3073, %v3067
      %v3078 = vmul.f32 %v3076, %v1532
      %v3079 = vmul.f32 %v3075, %v1536
      %v3080 = vmul.f32 %v3074, %v1540
      %v3081 = vmul.f32 %v3077, %v1544
      %s3082 = scalar_lea.vmem %s3, 56
      %v3083 = vld [vmem:[%s3082] sm:$0xff]
      %v3085 = vsel %vm338, %v3083, 0
      %3087 = vmatprep.subr.mxu0 %v3079
      %3088 = vmatpush1.msra.mxu0 %v3078
      %3089 = vmatprep.subr.mxu0 0.0
      %3090 = vmatpush1.msra.mxu0 0.0
      %3091 = vmatprep.subr.mxu0 0.0
      %3092 = vmatpush1.msra.mxu0 0.0
      %3093 = vmatprep.subr.mxu0 0.0
      %3094 = vmatpush1.msra.mxu0 0.0
      %3095 = vmatprep.subr.mxu0 0.0
      %3096 = vmatpush1.msra.mxu0 0.0
      %3097 = vmatprep.subr.mxu0 0.0
      %3098 = vmatpush1.msra.mxu0 0.0
      %3099 = vmatprep.subr.mxu0 0.0
      %3100 = vmatpush1.msra.mxu0 0.0
      %3101 = vmatprep.subr.mxu0 0.0
      %3102 = vmatpush1.msra.mxu0 0.0
      %3103 = vmatprep.subr.mxu0 0.0
      %3104 = vmatpush1.msra.mxu0 0.0
      %3105 = vmatprep.subr.mxu0 0.0
      %3106 = vmatpush1.msra.mxu0 0.0
      %3107 = vmatprep.subr.mxu0 0.0
      %3108 = vmatpush1.msra.mxu0 0.0
      %3109 = vmatprep.subr.mxu0 0.0
      %3110 = vmatpush1.msra.mxu0 0.0
      %3111 = vmatprep.subr.mxu0 0.0
      %3112 = vmatpush1.msra.mxu0 0.0
      %3113 = vmatprep.subr.mxu0 0.0
      %3114 = vmatpush1.msra.mxu0 0.0
      %3115 = vmatprep.subr.mxu0 0.0
      %3116 = vmatpush1.msra.mxu0 0.0
      %3117 = vmatprep.subr.mxu0 0.0
      %3118 = vmatpush1.msra.mxu0 0.0
      %3119 = vmatprep.subr.mxu0 0.0
      %3120 = vmatpush1.msra.mxu0 0.0
      %3121 = vmatprep.subr.mxu0 0.0
      %3122 = vmatpush1.msra.mxu0 0.0
      %3123 = vmatprep.subr.mxu0 0.0
      %3124 = vmatpush1.msra.mxu0 0.0
      %3125 = vmatprep.subr.mxu0 0.0
      %3126 = vmatpush1.msra.mxu0 0.0
      %3127 = vmatprep.subr.mxu0 0.0
      %3128 = vmatpush1.msra.mxu0 0.0
      %3129 = vmatprep.subr.mxu0 0.0
      %3130 = vmatpush1.msra.mxu0 0.0
      %3131 = vmatprep.subr.mxu0 0.0
      %3132 = vmatpush1.msra.mxu0 0.0
      %3133 = vmatprep.subr.mxu0 0.0
      %3134 = vmatpush1.msra.mxu0 0.0
      %3135 = vmatprep.subr.mxu0 0.0
      %3136 = vmatpush1.msra.mxu0 0.0
      %3137 = vmatprep.subr.mxu0 0.0
      %3138 = vmatpush1.msra.mxu0 0.0
      %3139 = vmatprep.subr.mxu0 0.0
      %3140 = vmatpush1.msra.mxu0 0.0
      %3141 = vmatprep.subr.mxu0 0.0
      %3142 = vmatpush1.msra.mxu0 0.0
      %3143 = vmatprep.subr.mxu0 0.0
      %3144 = vmatpush1.msra.mxu0 0.0
      %3145 = vmatprep.subr.mxu0 0.0
      %3146 = vmatpush1.msra.mxu0 0.0
      %3147 = vmatprep.subr.mxu0 0.0
      %3148 = vmatpush1.msra.mxu0 0.0
      %3149 = vmatprep.subr.mxu0 0.0
      %3150 = vmatpush1.msra.mxu0 0.0
      %3151 = vmatprep.mubr.f32.mxu0 0.0
      %3152 = vmatmul.mubr.f32.gmra.mrb[0].mxu0 %v3085
      %v3153 = vpop.f32.mrb[0].mxu0
      %v3154 = vadd.f32 0.0, %v3153
      %v3155 = vpop.f32.mrb[0].mxu0
      %v3156 = vadd.f32 0.0, %v3155
      %3157 = vdwg.mxu0
      %3158 = vmatprep.subr.mxu0 %v3081
      %3159 = vmatpush1.msra.mxu0 %v3080
      %3160 = vmatprep.subr.mxu0 0.0
      %3161 = vmatpush1.msra.mxu0 0.0
      %3162 = vmatprep.subr.mxu0 0.0
      %3163 = vmatpush1.msra.mxu0 0.0
      %3164 = vmatprep.subr.mxu0 0.0
      %3165 = vmatpush1.msra.mxu0 0.0
      %3166 = vmatprep.subr.mxu0 0.0
      %3167 = vmatpush1.msra.mxu0 0.0
      %3168 = vmatprep.subr.mxu0 0.0
      %3169 = vmatpush1.msra.mxu0 0.0
      %3170 = vmatprep.subr.mxu0 0.0
      %3171 = vmatpush1.msra.mxu0 0.0
      %3172 = vmatprep.subr.mxu0 0.0
      %3173 = vmatpush1.msra.mxu0 0.0
      %3174 = vmatprep.subr.mxu0 0.0
      %3175 = vmatpush1.msra.mxu0 0.0
      %3176 = vmatprep.subr.mxu0 0.0
      %3177 = vmatpush1.msra.mxu0 0.0
      %3178 = vmatprep.subr.mxu0 0.0
      %3179 = vmatpush1.msra.mxu0 0.0
      %3180 = vmatprep.subr.mxu0 0.0
      %3181 = vmatpush1.msra.mxu0 0.0
      %3182 = vmatprep.subr.mxu0 0.0
      %3183 = vmatpush1.msra.mxu0 0.0
      %3184 = vmatprep.subr.mxu0 0.0
      %3185 = vmatpush1.msra.mxu0 0.0
      %3186 = vmatprep.subr.mxu0 0.0
      %3187 = vmatpush1.msra.mxu0 0.0
      %3188 = vmatprep.subr.mxu0 0.0
      %3189 = vmatpush1.msra.mxu0 0.0
      %3190 = vmatprep.subr.mxu0 0.0
      %3191 = vmatpush1.msra.mxu0 0.0
      %3192 = vmatprep.subr.mxu0 0.0
      %3193 = vmatpush1.msra.mxu0 0.0
      %3194 = vmatprep.subr.mxu0 0.0
      %3195 = vmatpush1.msra.mxu0 0.0
      %3196 = vmatprep.subr.mxu0 0.0
      %3197 = vmatpush1.msra.mxu0 0.0
      %3198 = vmatprep.subr.mxu0 0.0
      %3199 = vmatpush1.msra.mxu0 0.0
      %3200 = vmatprep.subr.mxu0 0.0
      %3201 = vmatpush1.msra.mxu0 0.0
      %3202 = vmatprep.subr.mxu0 0.0
      %3203 = vmatpush1.msra.mxu0 0.0
      %3204 = vmatprep.subr.mxu0 0.0
      %3205 = vmatpush1.msra.mxu0 0.0
      %3206 = vmatprep.subr.mxu0 0.0
      %3207 = vmatpush1.msra.mxu0 0.0
      %3208 = vmatprep.subr.mxu0 0.0
      %3209 = vmatpush1.msra.mxu0 0.0
      %3210 = vmatprep.subr.mxu0 0.0
      %3211 = vmatpush1.msra.mxu0 0.0
      %3212 = vmatprep.subr.mxu0 0.0
      %3213 = vmatpush1.msra.mxu0 0.0
      %3214 = vmatprep.subr.mxu0 0.0
      %3215 = vmatpush1.msra.mxu0 0.0
      %3216 = vmatprep.subr.mxu0 0.0
      %3217 = vmatpush1.msra.mxu0 0.0
      %3218 = vmatprep.subr.mxu0 0.0
      %3219 = vmatpush1.msra.mxu0 0.0
      %3220 = vmatprep.subr.mxu0 0.0
      %3221 = vmatpush1.msra.mxu0 0.0
      %3222 = vmatprep.mubr.f32.mxu0 0.0
      %3223 = vmatmul.mubr.f32.gmra.mrb[0].mxu0 %v3085
      %v3224 = vpop.f32.mrb[0].mxu0
      %v3225 = vadd.f32 0.0, %v3224
      %v3226 = vpop.f32.mrb[0].mxu0
      %v3227 = vadd.f32 0.0, %v3226
      %3228 = vdwg.mxu0
      %v3229 = vadd.f32 %v3062, %v3154
      %v3230 = vadd.f32 %v3063, %v3156
      %v3231 = vadd.f32 %v3064, %v3225
      %v3232 = vadd.f32 %v3065, %v3227
      %3233 = vrot.lane.b32.xlu0 %v1918, 111
      %v3234 = vpop.permute.xlu0 %3233
      %3235 = vrot.lane.b32.xlu0 %v1919, 111
      %v3236 = vpop.permute.xlu0 %3235
      %3237 = vrot.lane.b32.xlu0 %v1920, 111
      %v3238 = vpop.permute.xlu0 %3237
      %3239 = vrot.lane.b32.xlu0 %v1921, 111
      %v3240 = vpop.permute.xlu0 %3239
      %v3241 = vsel %vm1708, %v3238, %v3240
      %v3242 = vsel %vm1708, %v3236, %v3238
      %v3243 = vsel %vm1708, %v3234, %v3236
      %v3244 = vsel %vm1708, %v3240, %v3234
      %v3245 = vmul.f32 %v3243, %v1716
      %v3246 = vmul.f32 %v3242, %v1720
      %v3247 = vmul.f32 %v3241, %v1724
      %v3248 = vmul.f32 %v3244, %v1728
      %s3249 = scalar_lea.vmem %s3, 64
      %v3250 = vld [vmem:[%s3249] sm:$0xff]
      %v3252 = vsel %vm338, %v3250, 0
      %3254 = vmatprep.subr.mxu0 %v3246
      %3255 = vmatpush1.msra.mxu0 %v3245
      %3256 = vmatprep.subr.mxu0 0.0
      %3257 = vmatpush1.msra.mxu0 0.0
      %3258 = vmatprep.subr.mxu0 0.0
      %3259 = vmatpush1.msra.mxu0 0.0
      %3260 = vmatprep.subr.mxu0 0.0
      %3261 = vmatpush1.msra.mxu0 0.0
      %3262 = vmatprep.subr.mxu0 0.0
      %3263 = vmatpush1.msra.mxu0 0.0
      %3264 = vmatprep.subr.mxu0 0.0
      %3265 = vmatpush1.msra.mxu0 0.0
      %3266 = vmatprep.subr.mxu0 0.0
      %3267 = vmatpush1.msra.mxu0 0.0
      %3268 = vmatprep.subr.mxu0 0.0
      %3269 = vmatpush1.msra.mxu0 0.0
      %3270 = vmatprep.subr.mxu0 0.0
      %3271 = vmatpush1.msra.mxu0 0.0
      %3272 = vmatprep.subr.mxu0 0.0
      %3273 = vmatpush1.msra.mxu0 0.0
      %3274 = vmatprep.subr.mxu0 0.0
      %3275 = vmatpush1.msra.mxu0 0.0
      %3276 = vmatprep.subr.mxu0 0.0
      %3277 = vmatpush1.msra.mxu0 0.0
      %3278 = vmatprep.subr.mxu0 0.0
      %3279 = vmatpush1.msra.mxu0 0.0
      %3280 = vmatprep.subr.mxu0 0.0
      %3281 = vmatpush1.msra.mxu0 0.0
      %3282 = vmatprep.subr.mxu0 0.0
      %3283 = vmatpush1.msra.mxu0 0.0
      %3284 = vmatprep.subr.mxu0 0.0
      %3285 = vmatpush1.msra.mxu0 0.0
      %3286 = vmatprep.subr.mxu0 0.0
      %3287 = vmatpush1.msra.mxu0 0.0
      %3288 = vmatprep.subr.mxu0 0.0
      %3289 = vmatpush1.msra.mxu0 0.0
      %3290 = vmatprep.subr.mxu0 0.0
      %3291 = vmatpush1.msra.mxu0 0.0
      %3292 = vmatprep.subr.mxu0 0.0
      %3293 = vmatpush1.msra.mxu0 0.0
      %3294 = vmatprep.subr.mxu0 0.0
      %3295 = vmatpush1.msra.mxu0 0.0
      %3296 = vmatprep.subr.mxu0 0.0
      %3297 = vmatpush1.msra.mxu0 0.0
      %3298 = vmatprep.subr.mxu0 0.0
      %3299 = vmatpush1.msra.mxu0 0.0
      %3300 = vmatprep.subr.mxu0 0.0
      %3301 = vmatpush1.msra.mxu0 0.0
      %3302 = vmatprep.subr.mxu0 0.0
      %3303 = vmatpush1.msra.mxu0 0.0
      %3304 = vmatprep.subr.mxu0 0.0
      %3305 = vmatpush1.msra.mxu0 0.0
      %3306 = vmatprep.subr.mxu0 0.0
      %3307 = vmatpush1.msra.mxu0 0.0
      %3308 = vmatprep.subr.mxu0 0.0
      %3309 = vmatpush1.msra.mxu0 0.0
      %3310 = vmatprep.subr.mxu0 0.0
      %3311 = vmatpush1.msra.mxu0 0.0
      %3312 = vmatprep.subr.mxu0 0.0
      %3313 = vmatpush1.msra.mxu0 0.0
      %3314 = vmatprep.subr.mxu0 0.0
      %3315 = vmatpush1.msra.mxu0 0.0
      %3316 = vmatprep.subr.mxu0 0.0
      %3317 = vmatpush1.msra.mxu0 0.0
      %3318 = vmatprep.mubr.f32.mxu0 0.0
      %3319 = vmatmul.mubr.f32.gmra.mrb[0].mxu0 %v3252
      %v3320 = vpop.f32.mrb[0].mxu0
      %v3321 = vadd.f32 0.0, %v3320
      %v3322 = vpop.f32.mrb[0].mxu0
      %v3323 = vadd.f32 0.0, %v3322
      %3324 = vdwg.mxu0
      %3325 = vmatprep.subr.mxu0 %v3248
      %3326 = vmatpush1.msra.mxu0 %v3247
      %3327 = vmatprep.subr.mxu0 0.0
      %3328 = vmatpush1.msra.mxu0 0.0
      %3329 = vmatprep.subr.mxu0 0.0
      %3330 = vmatpush1.msra.mxu0 0.0
      %3331 = vmatprep.subr.mxu0 0.0
      %3332 = vmatpush1.msra.mxu0 0.0
      %3333 = vmatprep.subr.mxu0 0.0
      %3334 = vmatpush1.msra.mxu0 0.0
      %3335 = vmatprep.subr.mxu0 0.0
      %3336 = vmatpush1.msra.mxu0 0.0
      %3337 = vmatprep.subr.mxu0 0.0
      %3338 = vmatpush1.msra.mxu0 0.0
      %3339 = vmatprep.subr.mxu0 0.0
      %3340 = vmatpush1.msra.mxu0 0.0
      %3341 = vmatprep.subr.mxu0 0.0
      %3342 = vmatpush1.msra.mxu0 0.0
      %3343 = vmatprep.subr.mxu0 0.0
      %3344 = vmatpush1.msra.mxu0 0.0
      %3345 = vmatprep.subr.mxu0 0.0
      %3346 = vmatpush1.msra.mxu0 0.0
      %3347 = vmatprep.subr.mxu0 0.0
      %3348 = vmatpush1.msra.mxu0 0.0
      %3349 = vmatprep.subr.mxu0 0.0
      %3350 = vmatpush1.msra.mxu0 0.0
      %3351 = vmatprep.subr.mxu0 0.0
      %3352 = vmatpush1.msra.mxu0 0.0
      %3353 = vmatprep.subr.mxu0 0.0
      %3354 = vmatpush1.msra.mxu0 0.0
      %3355 = vmatprep.subr.mxu0 0.0
      %3356 = vmatpush1.msra.mxu0 0.0
      %3357 = vmatprep.subr.mxu0 0.0
      %3358 = vmatpush1.msra.mxu0 0.0
      %3359 = vmatprep.subr.mxu0 0.0
      %3360 = vmatpush1.msra.mxu0 0.0
      %3361 = vmatprep.subr.mxu0 0.0
      %3362 = vmatpush1.msra.mxu0 0.0
      %3363 = vmatprep.subr.mxu0 0.0
      %3364 = vmatpush1.msra.mxu0 0.0
      %3365 = vmatprep.subr.mxu0 0.0
      %3366 = vmatpush1.msra.mxu0 0.0
      %3367 = vmatprep.subr.mxu0 0.0
      %3368 = vmatpush1.msra.mxu0 0.0
      %3369 = vmatprep.subr.mxu0 0.0
      %3370 = vmatpush1.msra.mxu0 0.0
      %3371 = vmatprep.subr.mxu0 0.0
      %3372 = vmatpush1.msra.mxu0 0.0
      %3373 = vmatprep.subr.mxu0 0.0
      %3374 = vmatpush1.msra.mxu0 0.0
      %3375 = vmatprep.subr.mxu0 0.0
      %3376 = vmatpush1.msra.mxu0 0.0
      %3377 = vmatprep.subr.mxu0 0.0
      %3378 = vmatpush1.msra.mxu0 0.0
      %3379 = vmatprep.subr.mxu0 0.0
      %3380 = vmatpush1.msra.mxu0 0.0
      %3381 = vmatprep.subr.mxu0 0.0
      %3382 = vmatpush1.msra.mxu0 0.0
      %3383 = vmatprep.subr.mxu0 0.0
      %3384 = vmatpush1.msra.mxu0 0.0
      %3385 = vmatprep.subr.mxu0 0.0
      %3386 = vmatpush1.msra.mxu0 0.0
      %3387 = vmatprep.subr.mxu0 0.0
      %3388 = vmatpush1.msra.mxu0 0.0
      %3389 = vmatprep.mubr.f32.mxu0 0.0
      %3390 = vmatmul.mubr.f32.gmra.mrb[0].mxu0 %v3252
      %v3391 = vpop.f32.mrb[0].mxu0
      %v3392 = vadd.f32 0.0, %v3391
      %v3393 = vpop.f32.mrb[0].mxu0
      %v3394 = vadd.f32 0.0, %v3393
      %3395 = vdwg.mxu0
      %v3396 = vadd.f32 %v3229, %v3321
      %v3397 = vadd.f32 %v3230, %v3323
      %v3398 = vadd.f32 %v3231, %v3392
      %v3399 = vadd.f32 %v3232, %v3394
      %v3400 = vld [vmem:[%s4] sm:$0xff]
      %3402 = vset.pattern.permute.xlu0 0
      %3403 = vperm.xlu0 %3402, %v3400
      %v3404 = vpop.permute.xlu0 %3403
      %v3406 = vadd.f32 %v3396, %v3404
      %v3407 = vadd.f32 %v3397, %v3404
      %v3408 = vadd.f32 %v3398, %v3404
      %v3409 = vadd.f32 %v3399, %v3404
      %v3410 = vxor.u32 %v3406, 2147483648
      %v3411 = vxor.u32 %v3407, 2147483648
      %v3412 = vxor.u32 %v3408, 2147483648
      %v3413 = vxor.u32 %v3409, 2147483648
      %v3414 = vmul.f32 %v3410, 1.442695
      %v3415 = vpow.pop %v3414
      %v3416 = vmul.f32 %v3411, 1.442695
      %v3417 = vpow.pop %v3416
      %v3418 = vmul.f32 %v3412, 1.442695
      %v3419 = vpow.pop %v3418
      %v3420 = vmul.f32 %v3413, 1.442695
      %v3421 = vpow.pop %v3420
      %v3422 = vadd.f32 %v3415, 1.0
      %v3423 = vadd.f32 %v3417, 1.0
      %v3424 = vadd.f32 %v3419, 1.0
      %v3425 = vadd.f32 %v3421, 1.0
      %v3426 = vrcp.pop %v3422
      %v3427 = vmul.f32 1.0, %v3426
      %v3428 = vrcp.pop %v3423
      %v3429 = vmul.f32 1.0, %v3428
      %v3430 = vrcp.pop %v3424
      %v3431 = vmul.f32 1.0, %v3430
      %v3432 = vrcp.pop %v3425
      %v3433 = vmul.f32 1.0, %v3432
      %v3434 = vmul.f32 %v3406, %v3427
      %v3435 = vmul.f32 %v3407, %v3429
      %v3436 = vmul.f32 %v3408, %v3431
      %v3437 = vmul.f32 %v3409, %v3433
      %3438 = vst [vmem:[%s253] sm:$0xff] %v3434
      %3439 = vst [vmem:[%s253 + $0x8] sm:$0xff] %v3435
      %3440 = vst [vmem:[%s253 + $0x10] sm:$0xff] %v3436
      %3441 = vst [vmem:[%s253 + $0x18] sm:$0xff] %v3437
      %s3442 = smul.u32 4, %s17
      %p3443 = scmp.lt.s32.totalorder %s3442, 7
      %s3444 = scalar_select %p3443, %s3442, 7
      %s3445 = smul.addr %s3444, 8
      %s3446 = scalar_lea.vmem %s6, %s3445
      // Predicated region
      $region45: #{intermediate_forward.1} parent=43 // pred_check
        %p3447 = pneg %p166
      $region46: #{intermediate_forward.1} parent=43 // pred_check_branch
        %3449 = sbr.rel (%p3447) target = $region48
      $region47: #{intermediate_forward.1} parent=43 // pred_region
        %s3450 = smul.u32 4, %s17
      $region48: #{intermediate_forward.1} parent=43 // pred_fallthru
        _
    $region44: #{intermediate_forward.1} parent=5 // pred_fallthru
      _
    %p3451 = scmp.le.s32.totalorder 2, %s12
    // Predicated region
    $region49: #{intermediate_forward.1} parent=5 // pred_check
      %p3452 = pneg %p3451
    $region50: #{intermediate_forward.1} parent=5 // pred_check_branch
      %3454 = sbr.rel (%p3452) target = $region52
    $region51: #{intermediate_forward.1} parent=5 // pred_region
      %s3455 = ssub.s32 %s12, 2
      // Predicated region
      $region53: #{intermediate_forward.1} parent=51 // pred_check
        %p3456 = pneg %p172
      $region54: #{intermediate_forward.1} parent=51 // pred_check_branch
        %3458 = sbr.rel (%p3456) target = $region56
      $region55: #{intermediate_forward.1} parent=51 // pred_region
        %s3459 = smul.u32 4, %s18
        %p3460 = scmp.lt.s32.totalorder %s3459, 7
        %s3461 = scalar_select %p3460, %s3459, 7
        %s3462 = smul.addr %s3461, 8
        %s3463 = scalar_lea.vmem %s6, %s3462
      $region56: #{intermediate_forward.1} parent=51 // pred_fallthru
        _
    $region52: #{intermediate_forward.1} parent=5 // pred_fallthru
      _
  $region6: #{intermediate_forward.1} parent=0 // loop_footer
    %s16 = sadd.s32 1, %s12
  $region7: #{intermediate_forward.1} parent=0 // loop_footer_branch
    %11 = sbr.rel target = $region3
  $region8: #{intermediate_forward.1} parent=0 // loop_exit
    _

</llo_original>
